<compile_context>
chip_gen: v7x
topology: tpu7x:2x2x1
jax: 0.10.0
libtpu: 0.0.40
codegen_flags: <defaults>
</compile_context>

<pallas_src>
import jax
import jax.numpy as jnp
from jax.experimental import pallas as pl
from jax.experimental.pallas import tpu as pltpu


# ----------------------------------------------------------------------------
# In-kernel helpers
# ----------------------------------------------------------------------------
def _causal_shift(x, s):
    """y[t] = x[t - s] for t >= s else 0, along axis 0. `s` is a static int."""
    if s == 0:
        return x
    S = x.shape[0]
    rows = jax.lax.broadcasted_iota(jnp.int32, x.shape, 0)
    if s % S != 0:
        x = pltpu.roll(x, shift=s % S, axis=0)
    return jnp.where(rows >= s, x, jnp.zeros_like(x))


def _make_tcn_kernel(S, block_meta, kernel_size, eps):
    """Fully fused TCN: all TemporalBlocks + residual-add + LayerNorm."""

    def kernel(*refs):
        it = iter(refs)
        x_ref = next(it)
        x = x_ref[0].astype(jnp.float32)                       # (S, c0)

        h = x
        for m in block_meta:
            c_out, d, k = m["c_out"], m["dilation"], kernel_size
            w1_ref, b1_ref, w2_ref, b2_ref = next(it), next(it), next(it), next(it)
            if m["has_ds"]:
                wd_ref, bd_ref = next(it), next(it)

            # conv1 (causal, dilated) + bias + ReLU
            h1 = jnp.zeros((S, c_out), jnp.float32) + b1_ref[...]
            for j in range(k):
                hs = _causal_shift(h, (k - 1 - j) * d)
                h1 = h1 + jnp.dot(hs, w1_ref[j].astype(jnp.float32),
                                  preferred_element_type=jnp.float32)
            h1 = jnp.maximum(h1, 0.0)
            # TODO(synk): training-mode dropout (inference => identity)

            # conv2 (causal, dilated) + bias + ReLU
            h2 = jnp.zeros((S, c_out), jnp.float32) + b2_ref[...]
            for j in range(k):
                hs = _causal_shift(h1, (k - 1 - j) * d)
                h2 = h2 + jnp.dot(hs, w2_ref[j].astype(jnp.float32),
                                  preferred_element_type=jnp.float32)
            h2 = jnp.maximum(h2, 0.0)

            # residual branch (1x1 conv only when channel counts differ)
            if m["has_ds"]:
                res = jnp.dot(h, wd_ref[...].astype(jnp.float32),
                              preferred_element_type=jnp.float32) + bd_ref[...]
            else:
                res = h
            h = jnp.maximum(h2 + res, 0.0)

        # residual add with the original input + LayerNorm over channels
        g_ref, b_ref, o_ref = next(it), next(it), next(it)
        y = h + x
        mean = jnp.mean(y, axis=-1, keepdims=True)
        yc = y - mean
        var = jnp.mean(yc * yc, axis=-1, keepdims=True)
        yn = yc * jax.lax.rsqrt(var + eps)
        o_ref[0] = (yn * g_ref[...] + b_ref[...]).astype(o_ref.dtype)

    return kernel


# ----------------------------------------------------------------------------
# pallas_call wrapper (single fused call for the whole forward)
# ----------------------------------------------------------------------------
def tcn_forward(x, blocks, ln_gamma, ln_beta, *, kernel_size, eps=1e-12):
    """Full TCN.forward (eval mode). x: (B, S, num_inputs).
    blocks[i]: dict with w1:(k,c_in,c_out), b1:(c_out,), w2:(k,c_out,c_out),
    b2:(c_out,), optional wd:(c_in,c_out), bd:(c_out,)."""
    B, S, c0 = x.shape

    in_specs = [pl.BlockSpec((1, S, c0), lambda b: (b, 0, 0))]
    args = [x]
    block_meta = []
    c_prev = c0
    for i, p in enumerate(blocks):
        c_out = p["w1"].shape[2]
        has_ds = p.get("wd") is not None
        block_meta.append(dict(c_in=c_prev, c_out=c_out,
                               dilation=2 ** i, has_ds=has_ds))
        in_specs += [
            pl.BlockSpec((kernel_size, c_prev, c_out), lambda b: (0, 0, 0)),
            pl.BlockSpec((1, c_out), lambda b: (0, 0)),
            pl.BlockSpec((kernel_size, c_out, c_out), lambda b: (0, 0, 0)),
            pl.BlockSpec((1, c_out), lambda b: (0, 0)),
        ]
        args += [p["w1"], p["b1"].reshape(1, c_out),
                 p["w2"], p["b2"].reshape(1, c_out)]
        if has_ds:
            in_specs += [
                pl.BlockSpec((c_prev, c_out), lambda b: (0, 0)),
                pl.BlockSpec((1, c_out), lambda b: (0, 0)),
            ]
            args += [p["wd"], p["bd"].reshape(1, c_out)]
        c_prev = c_out

    assert c_prev == c0, (
        "last TCN channel count must equal num_inputs for the residual LayerNorm")

    in_specs += [
        pl.BlockSpec((1, c0), lambda b: (0, 0)),
        pl.BlockSpec((1, c0), lambda b: (0, 0)),
    ]
    args += [ln_gamma.reshape(1, c0), ln_beta.reshape(1, c0)]

    flops = 0
    bytes_accessed = 4 * 2 * x.size                 # x in + out
    for m, p in zip(block_meta, blocks):
        flops += 2 * B * S * kernel_size * m["c_out"] * (m["c_in"] + m["c_out"])
        if m["has_ds"]:
            flops += 2 * B * S * m["c_in"] * m["c_out"]
        bytes_accessed += 4 * (p["w1"].size + p["w2"].size
                               + (p["wd"].size if m["has_ds"] else 0))

    return pl.pallas_call(
        _make_tcn_kernel(S, block_meta, kernel_size, eps),
        out_shape=jax.ShapeDtypeStruct((B, S, c0), x.dtype),
        grid_spec=pltpu.PrefetchScalarGridSpec(
            num_scalar_prefetch=0,
            grid=(B,),
            in_specs=in_specs,
            out_specs=pl.BlockSpec((1, S, c0), lambda b: (b, 0, 0)),
        ),
        compiler_params=pltpu.CompilerParams(
            dimension_semantics=("parallel",),
            vmem_limit_bytes=64 * 1024 * 1024,
        ),
        cost_estimate=pl.CostEstimate(
            flops=flops, transcendentals=0, bytes_accessed=bytes_accessed),
    )(*args)


# ----------------------------------------------------------------------------
# One-time parameter preparation (weight-norm reparam + layout reorder)
# ----------------------------------------------------------------------------
def weight_norm_conv_params(v, g):
    """PyTorch weight_norm(Conv1d): W = g * v / ||v||, norm per out-channel.
    v: (c_out, c_in, k), g: (c_out,). Returns taps in (k, c_in, c_out)."""
    norm = jnp.sqrt(jnp.sum(v.astype(jnp.float32) ** 2, axis=(1, 2), keepdims=True))
    w = (g.reshape(-1, 1, 1) * v) / norm
    return jnp.transpose(w, (2, 1, 0))


# ----------------------------------------------------------------------------
# Plain-JAX reference (mirrors the PyTorch module in eval mode)
# ----------------------------------------------------------------------------
def _ref_causal_conv(x, w_kio, b, dilation):
    B, S, _ = x.shape
    k = w_kio.shape[0]
    y = jnp.zeros((B, S, w_kio.shape[2]), jnp.float32) + b
    for j in range(k):
        s = (k - 1 - j) * dilation
        xs = x if s == 0 else jnp.pad(x, ((0, 0), (s, 0), (0, 0)))[:, :S, :]
        y = y + jnp.einsum("bsc,cd->bsd", xs.astype(jnp.float32), w_kio[j])
    return y


def _ref_tcn(x, blocks, ln_gamma, ln_beta, kernel_size):
    h = x
    for i, p in enumerate(blocks):
        d = 2 ** i
        h1 = jax.nn.relu(_ref_causal_conv(h, p["w1"], p["b1"], d))
        h2 = jax.nn.relu(_ref_causal_conv(h1, p["w2"], p["b2"], d))
        if p.get("wd") is not None:
            res = jnp.einsum("bsc,cd->bsd", h, p["wd"]) + p["bd"]
        else:
            res = h
        h = jax.nn.relu(h2 + res)
    y = h + x
    mean = jnp.mean(y, axis=-1, keepdims=True)
    var = jnp.mean((y - mean) ** 2, axis=-1, keepdims=True)
    return (y - mean) / jnp.sqrt(var + 1e-12) * ln_gamma + ln_beta


# ----------------------------------------------------------------------------
# Demo
# ----------------------------------------------------------------------------
if __name__ == "__main__":
    B, S = 2, 16
    num_inputs = 8                   # ENCODER_DIM
    num_channels = [8, 16, 8]        # exercises identity and 1x1-downsample residuals
    kernel_size = 3
    # dropout = 0.1 in the config; identity here (eval mode)

    key = jax.random.PRNGKey(0)
    x_key, key = jax.random.split(key)
    x = jax.random.normal(x_key, (B, S, num_inputs), dtype=jnp.float32)

    blocks = []
    c_prev = num_inputs
    for i, c_out in enumerate(num_channels):
        keys = jax.random.split(jax.random.fold_in(key, i), 8)
        v1 = jax.random.normal(keys[0], (c_out, c_prev, kernel_size), jnp.float32) * 0.01
        g1 = 1.0 + 0.1 * jax.random.normal(keys[1], (c_out,), jnp.float32)
        b1 = 0.1 * jax.random.normal(keys[2], (c_out,), jnp.float32)
        v2 = jax.random.normal(keys[3], (c_out, c_out, kernel_size), jnp.float32) * 0.01
        g2 = 1.0 + 0.1 * jax.random.normal(keys[4], (c_out,), jnp.float32)
        b2 = 0.1 * jax.random.normal(keys[5], (c_out,), jnp.float32)
        p = {
            "w1": weight_norm_conv_params(v1, g1), "b1": b1,
            "w2": weight_norm_conv_params(v2, g2), "b2": b2,
        }
        if c_prev != c_out:
            wd = jax.random.normal(keys[6], (c_out, c_prev), jnp.float32) * 0.01
            bd = 0.1 * jax.random.normal(keys[7], (c_out,), jnp.float32)
            p["wd"] = jnp.transpose(wd)          # (c_prev, c_out) for x @ Wd
            p["bd"] = bd
        blocks.append(p)
        c_prev = c_out

    ln_gamma = 1.0 + 0.05 * jax.random.normal(
        jax.random.fold_in(key, 100), (num_inputs,), jnp.float32)
    ln_beta = 0.05 * jax.random.normal(
        jax.random.fold_in(key, 101), (num_inputs,), jnp.float32)

    out = tcn_forward(x, blocks, ln_gamma, ln_beta, kernel_size=kernel_size)
    out = jax.block_until_ready(out)

    ref = _ref_tcn(x, blocks, ln_gamma, ln_beta, kernel_size)
    assert out.shape == (B, S, num_inputs), out.shape
    assert jnp.allclose(out, ref, atol=1e-4, rtol=1e-4), \
        float(jnp.max(jnp.abs(out - ref)))

    print("KERNEL_OK")
</pallas_src>

<mosaic_0001>
module attributes {stable_mosaic.version = 11 : i64} {
  func.func @kernel(%arg0: i32, %arg1: memref<1x16x8xf32, #tpu.memory_space<vmem>>, %arg2: memref<3x8x8xf32, #tpu.memory_space<vmem>>, %arg3: memref<1x8xf32, #tpu.memory_space<vmem>>, %arg4: memref<3x8x8xf32, #tpu.memory_space<vmem>>, %arg5: memref<1x8xf32, #tpu.memory_space<vmem>>, %arg6: memref<3x8x16xf32, #tpu.memory_space<vmem>>, %arg7: memref<1x16xf32, #tpu.memory_space<vmem>>, %arg8: memref<3x16x16xf32, #tpu.memory_space<vmem>>, %arg9: memref<1x16xf32, #tpu.memory_space<vmem>>, %arg10: memref<8x16xf32, #tpu.memory_space<vmem>>, %arg11: memref<1x16xf32, #tpu.memory_space<vmem>>, %arg12: memref<3x16x8xf32, #tpu.memory_space<vmem>>, %arg13: memref<1x8xf32, #tpu.memory_space<vmem>>, %arg14: memref<3x8x8xf32, #tpu.memory_space<vmem>>, %arg15: memref<1x8xf32, #tpu.memory_space<vmem>>, %arg16: memref<16x8xf32, #tpu.memory_space<vmem>>, %arg17: memref<1x8xf32, #tpu.memory_space<vmem>>, %arg18: memref<1x8xf32, #tpu.memory_space<vmem>>, %arg19: memref<1x8xf32, #tpu.memory_space<vmem>>, %arg20: memref<1x16x8xf32, #tpu.memory_space<vmem>>) attributes {dimension_semantics = [#tpu.dimension_semantics<parallel>], iteration_bounds = array<i64: 2>, scalar_prefetch = 0 : i64, scratch_operands = 0 : i64, tpu.core_type = #tpu.core_type<tc>, window_params = [{transform_indices = @transform_0, window_bounds = array<i64: 1, 16, 8>}, {pipeline_mode = #tpu.pipeline_mode<synchronous>, transform_indices = @transform_1, window_bounds = array<i64: 3, 8, 8>}, {pipeline_mode = #tpu.pipeline_mode<synchronous>, transform_indices = @transform_2, window_bounds = array<i64: 1, 8>}, {pipeline_mode = #tpu.pipeline_mode<synchronous>, transform_indices = @transform_3, window_bounds = array<i64: 3, 8, 8>}, {pipeline_mode = #tpu.pipeline_mode<synchronous>, transform_indices = @transform_4, window_bounds = array<i64: 1, 8>}, {pipeline_mode = #tpu.pipeline_mode<synchronous>, transform_indices = @transform_5, window_bounds = array<i64: 3, 8, 16>}, {pipeline_mode = #tpu.pipeline_mode<synchronous>, transform_indices = @transform_6, window_bounds = array<i64: 1, 16>}, {pipeline_mode = #tpu.pipeline_mode<synchronous>, transform_indices = @transform_7, window_bounds = array<i64: 3, 16, 16>}, {pipeline_mode = #tpu.pipeline_mode<synchronous>, transform_indices = @transform_8, window_bounds = array<i64: 1, 16>}, {pipeline_mode = #tpu.pipeline_mode<synchronous>, transform_indices = @transform_9, window_bounds = array<i64: 8, 16>}, {pipeline_mode = #tpu.pipeline_mode<synchronous>, transform_indices = @transform_10, window_bounds = array<i64: 1, 16>}, {pipeline_mode = #tpu.pipeline_mode<synchronous>, transform_indices = @transform_11, window_bounds = array<i64: 3, 16, 8>}, {pipeline_mode = #tpu.pipeline_mode<synchronous>, transform_indices = @transform_12, window_bounds = array<i64: 1, 8>}, {pipeline_mode = #tpu.pipeline_mode<synchronous>, transform_indices = @transform_13, window_bounds = array<i64: 3, 8, 8>}, {pipeline_mode = #tpu.pipeline_mode<synchronous>, transform_indices = @transform_14, window_bounds = array<i64: 1, 8>}, {pipeline_mode = #tpu.pipeline_mode<synchronous>, transform_indices = @transform_15, window_bounds = array<i64: 16, 8>}, {pipeline_mode = #tpu.pipeline_mode<synchronous>, transform_indices = @transform_16, window_bounds = array<i64: 1, 8>}, {pipeline_mode = #tpu.pipeline_mode<synchronous>, transform_indices = @transform_17, window_bounds = array<i64: 1, 8>}, {pipeline_mode = #tpu.pipeline_mode<synchronous>, transform_indices = @transform_18, window_bounds = array<i64: 1, 8>}, {transform_indices = @transform_19, window_bounds = array<i64: 1, 16, 8>}]} {
    %c0 = arith.constant 0 : index
    %c0_0 = arith.constant 0 : index
    %c0_1 = arith.constant 0 : index
    %0 = vector.load %arg1[%c0, %c0_0, %c0_1] : memref<1x16x8xf32, #tpu.memory_space<vmem>>, vector<1x16x8xf32>
    %1 = vector.shape_cast %0 : vector<1x16x8xf32> to vector<16x8xf32>
    %cst = arith.constant 0.000000e+00 : f32
    %2 = vector.broadcast %cst : f32 to vector<16x8xf32>
    %c0_2 = arith.constant 0 : index
    %c0_3 = arith.constant 0 : index
    %3 = vector.load %arg3[%c0_2, %c0_3] : memref<1x8xf32, #tpu.memory_space<vmem>>, vector<1x8xf32>
    %4 = vector.broadcast %3 : vector<1x8xf32> to vector<16x8xf32>
    %5 = arith.addf %2, %4 : vector<16x8xf32>
    %6 = tpu.iota {dimensions = array<i32: 0>} : vector<16x8xi32>
    %c2_i32 = arith.constant 2 : i32
    %7 = tpu.dynamic_rotate %1 by %c2_i32 dim 0 : vector<16x8xf32>, i32 -> vector<16x8xf32>
    %c2_i32_4 = arith.constant 2 : i32
    %8 = vector.broadcast %c2_i32_4 : i32 to vector<16x8xi32>
    %9 = arith.cmpi sge, %6, %8 : vector<16x8xi32>
    %cst_5 = arith.constant 0.000000e+00 : f32
    %10 = vector.broadcast %cst_5 : f32 to vector<16x8xf32>
    %11 = arith.select %9, %7, %10 : vector<16x8xi1>, vector<16x8xf32>
    %c0_6 = arith.constant 0 : index
    %c0_7 = arith.constant 0 : index
    %c0_8 = arith.constant 0 : index
    %12 = vector.load %arg2[%c0_6, %c0_7, %c0_8] : memref<3x8x8xf32, #tpu.memory_space<vmem>>, vector<1x8x8xf32>
    %13 = vector.shape_cast %12 : vector<1x8x8xf32> to vector<8x8xf32>
    %cst_9 = arith.constant dense<0.000000e+00> : vector<16x8xf32>
    %14 = tpu.matmul %11, %13, %cst_9 {dimension_numbers = #tpu.dot_dimension_numbers<[1], [0], [0], [1], [0, 0, 1, 1], [], []>} : vector<16x8xf32>, vector<8x8xf32>, vector<16x8xf32> -> vector<16x8xf32>
    %15 = arith.addf %5, %14 : vector<16x8xf32>
    %16 = tpu.iota {dimensions = array<i32: 0>} : vector<16x8xi32>
    %c1_i32 = arith.constant 1 : i32
    %17 = tpu.dynamic_rotate %1 by %c1_i32 dim 0 : vector<16x8xf32>, i32 -> vector<16x8xf32>
    %c1_i32_10 = arith.constant 1 : i32
    %18 = vector.broadcast %c1_i32_10 : i32 to vector<16x8xi32>
    %19 = arith.cmpi sge, %16, %18 : vector<16x8xi32>
    %cst_11 = arith.constant 0.000000e+00 : f32
    %20 = vector.broadcast %cst_11 : f32 to vector<16x8xf32>
    %21 = arith.select %19, %17, %20 : vector<16x8xi1>, vector<16x8xf32>
    %c1 = arith.constant 1 : index
    %c0_12 = arith.constant 0 : index
    %c0_13 = arith.constant 0 : index
    %22 = vector.load %arg2[%c1, %c0_12, %c0_13] : memref<3x8x8xf32, #tpu.memory_space<vmem>>, vector<1x8x8xf32>
    %23 = vector.shape_cast %22 : vector<1x8x8xf32> to vector<8x8xf32>
    %cst_14 = arith.constant dense<0.000000e+00> : vector<16x8xf32>
    %24 = tpu.matmul %21, %23, %cst_14 {dimension_numbers = #tpu.dot_dimension_numbers<[1], [0], [0], [1], [0, 0, 1, 1], [], []>} : vector<16x8xf32>, vector<8x8xf32>, vector<16x8xf32> -> vector<16x8xf32>
    %25 = arith.addf %15, %24 : vector<16x8xf32>
    %c2 = arith.constant 2 : index
    %c0_15 = arith.constant 0 : index
    %c0_16 = arith.constant 0 : index
    %26 = vector.load %arg2[%c2, %c0_15, %c0_16] : memref<3x8x8xf32, #tpu.memory_space<vmem>>, vector<1x8x8xf32>
    %27 = vector.shape_cast %26 : vector<1x8x8xf32> to vector<8x8xf32>
    %cst_17 = arith.constant dense<0.000000e+00> : vector<16x8xf32>
    %28 = tpu.matmul %1, %27, %cst_17 {dimension_numbers = #tpu.dot_dimension_numbers<[1], [0], [0], [1], [0, 0, 1, 1], [], []>} : vector<16x8xf32>, vector<8x8xf32>, vector<16x8xf32> -> vector<16x8xf32>
    %29 = arith.addf %25, %28 : vector<16x8xf32>
    %cst_18 = arith.constant 0.000000e+00 : f32
    %30 = vector.broadcast %cst_18 : f32 to vector<16x8xf32>
    %31 = arith.maximumf %29, %30 : vector<16x8xf32>
    %cst_19 = arith.constant 0.000000e+00 : f32
    %32 = vector.broadcast %cst_19 : f32 to vector<16x8xf32>
    %c0_20 = arith.constant 0 : index
    %c0_21 = arith.constant 0 : index
    %33 = vector.load %arg5[%c0_20, %c0_21] : memref<1x8xf32, #tpu.memory_space<vmem>>, vector<1x8xf32>
    %34 = vector.broadcast %33 : vector<1x8xf32> to vector<16x8xf32>
    %35 = arith.addf %32, %34 : vector<16x8xf32>
    %36 = tpu.iota {dimensions = array<i32: 0>} : vector<16x8xi32>
    %c2_i32_22 = arith.constant 2 : i32
    %37 = tpu.dynamic_rotate %31 by %c2_i32_22 dim 0 : vector<16x8xf32>, i32 -> vector<16x8xf32>
    %c2_i32_23 = arith.constant 2 : i32
    %38 = vector.broadcast %c2_i32_23 : i32 to vector<16x8xi32>
    %39 = arith.cmpi sge, %36, %38 : vector<16x8xi32>
    %cst_24 = arith.constant 0.000000e+00 : f32
    %40 = vector.broadcast %cst_24 : f32 to vector<16x8xf32>
    %41 = arith.select %39, %37, %40 : vector<16x8xi1>, vector<16x8xf32>
    %c0_25 = arith.constant 0 : index
    %c0_26 = arith.constant 0 : index
    %c0_27 = arith.constant 0 : index
    %42 = vector.load %arg4[%c0_25, %c0_26, %c0_27] : memref<3x8x8xf32, #tpu.memory_space<vmem>>, vector<1x8x8xf32>
    %43 = vector.shape_cast %42 : vector<1x8x8xf32> to vector<8x8xf32>
    %cst_28 = arith.constant dense<0.000000e+00> : vector<16x8xf32>
    %44 = tpu.matmul %41, %43, %cst_28 {dimension_numbers = #tpu.dot_dimension_numbers<[1], [0], [0], [1], [0, 0, 1, 1], [], []>} : vector<16x8xf32>, vector<8x8xf32>, vector<16x8xf32> -> vector<16x8xf32>
    %45 = arith.addf %35, %44 : vector<16x8xf32>
    %46 = tpu.iota {dimensions = array<i32: 0>} : vector<16x8xi32>
    %c1_i32_29 = arith.constant 1 : i32
    %47 = tpu.dynamic_rotate %31 by %c1_i32_29 dim 0 : vector<16x8xf32>, i32 -> vector<16x8xf32>
    %c1_i32_30 = arith.constant 1 : i32
    %48 = vector.broadcast %c1_i32_30 : i32 to vector<16x8xi32>
    %49 = arith.cmpi sge, %46, %48 : vector<16x8xi32>
    %cst_31 = arith.constant 0.000000e+00 : f32
    %50 = vector.broadcast %cst_31 : f32 to vector<16x8xf32>
    %51 = arith.select %49, %47, %50 : vector<16x8xi1>, vector<16x8xf32>
    %c1_32 = arith.constant 1 : index
    %c0_33 = arith.constant 0 : index
    %c0_34 = arith.constant 0 : index
    %52 = vector.load %arg4[%c1_32, %c0_33, %c0_34] : memref<3x8x8xf32, #tpu.memory_space<vmem>>, vector<1x8x8xf32>
    %53 = vector.shape_cast %52 : vector<1x8x8xf32> to vector<8x8xf32>
    %cst_35 = arith.constant dense<0.000000e+00> : vector<16x8xf32>
    %54 = tpu.matmul %51, %53, %cst_35 {dimension_numbers = #tpu.dot_dimension_numbers<[1], [0], [0], [1], [0, 0, 1, 1], [], []>} : vector<16x8xf32>, vector<8x8xf32>, vector<16x8xf32> -> vector<16x8xf32>
    %55 = arith.addf %45, %54 : vector<16x8xf32>
    %c2_36 = arith.constant 2 : index
    %c0_37 = arith.constant 0 : index
    %c0_38 = arith.constant 0 : index
    %56 = vector.load %arg4[%c2_36, %c0_37, %c0_38] : memref<3x8x8xf32, #tpu.memory_space<vmem>>, vector<1x8x8xf32>
    %57 = vector.shape_cast %56 : vector<1x8x8xf32> to vector<8x8xf32>
    %cst_39 = arith.constant dense<0.000000e+00> : vector<16x8xf32>
    %58 = tpu.matmul %31, %57, %cst_39 {dimension_numbers = #tpu.dot_dimension_numbers<[1], [0], [0], [1], [0, 0, 1, 1], [], []>} : vector<16x8xf32>, vector<8x8xf32>, vector<16x8xf32> -> vector<16x8xf32>
    %59 = arith.addf %55, %58 : vector<16x8xf32>
    %cst_40 = arith.constant 0.000000e+00 : f32
    %60 = vector.broadcast %cst_40 : f32 to vector<16x8xf32>
    %61 = arith.maximumf %59, %60 : vector<16x8xf32>
    %62 = arith.addf %61, %1 : vector<16x8xf32>
    %cst_41 = arith.constant 0.000000e+00 : f32
    %63 = vector.broadcast %cst_41 : f32 to vector<16x8xf32>
    %64 = arith.maximumf %62, %63 : vector<16x8xf32>
    %cst_42 = arith.constant 0.000000e+00 : f32
    %65 = vector.broadcast %cst_42 : f32 to vector<16x16xf32>
    %c0_43 = arith.constant 0 : index
    %c0_44 = arith.constant 0 : index
    %66 = vector.load %arg7[%c0_43, %c0_44] : memref<1x16xf32, #tpu.memory_space<vmem>>, vector<1x16xf32>
    %67 = vector.broadcast %66 : vector<1x16xf32> to vector<16x16xf32>
    %68 = arith.addf %65, %67 : vector<16x16xf32>
    %69 = tpu.iota {dimensions = array<i32: 0>} : vector<16x8xi32>
    %c4_i32 = arith.constant 4 : i32
    %70 = tpu.dynamic_rotate %64 by %c4_i32 dim 0 : vector<16x8xf32>, i32 -> vector<16x8xf32>
    %c4_i32_45 = arith.constant 4 : i32
    %71 = vector.broadcast %c4_i32_45 : i32 to vector<16x8xi32>
    %72 = arith.cmpi sge, %69, %71 : vector<16x8xi32>
    %cst_46 = arith.constant 0.000000e+00 : f32
    %73 = vector.broadcast %cst_46 : f32 to vector<16x8xf32>
    %74 = arith.select %72, %70, %73 : vector<16x8xi1>, vector<16x8xf32>
    %c0_47 = arith.constant 0 : index
    %c0_48 = arith.constant 0 : index
    %c0_49 = arith.constant 0 : index
    %75 = vector.load %arg6[%c0_47, %c0_48, %c0_49] : memref<3x8x16xf32, #tpu.memory_space<vmem>>, vector<1x8x16xf32>
    %76 = vector.shape_cast %75 : vector<1x8x16xf32> to vector<8x16xf32>
    %cst_50 = arith.constant dense<0.000000e+00> : vector<16x16xf32>
    %77 = tpu.matmul %74, %76, %cst_50 {dimension_numbers = #tpu.dot_dimension_numbers<[1], [0], [0], [1], [0, 0, 1, 1], [], []>} : vector<16x8xf32>, vector<8x16xf32>, vector<16x16xf32> -> vector<16x16xf32>
    %78 = arith.addf %68, %77 : vector<16x16xf32>
    %79 = tpu.iota {dimensions = array<i32: 0>} : vector<16x8xi32>
    %c2_i32_51 = arith.constant 2 : i32
    %80 = tpu.dynamic_rotate %64 by %c2_i32_51 dim 0 : vector<16x8xf32>, i32 -> vector<16x8xf32>
    %c2_i32_52 = arith.constant 2 : i32
    %81 = vector.broadcast %c2_i32_52 : i32 to vector<16x8xi32>
    %82 = arith.cmpi sge, %79, %81 : vector<16x8xi32>
    %cst_53 = arith.constant 0.000000e+00 : f32
    %83 = vector.broadcast %cst_53 : f32 to vector<16x8xf32>
    %84 = arith.select %82, %80, %83 : vector<16x8xi1>, vector<16x8xf32>
    %c1_54 = arith.constant 1 : index
    %c0_55 = arith.constant 0 : index
    %c0_56 = arith.constant 0 : index
    %85 = vector.load %arg6[%c1_54, %c0_55, %c0_56] : memref<3x8x16xf32, #tpu.memory_space<vmem>>, vector<1x8x16xf32>
    %86 = vector.shape_cast %85 : vector<1x8x16xf32> to vector<8x16xf32>
    %cst_57 = arith.constant dense<0.000000e+00> : vector<16x16xf32>
    %87 = tpu.matmul %84, %86, %cst_57 {dimension_numbers = #tpu.dot_dimension_numbers<[1], [0], [0], [1], [0, 0, 1, 1], [], []>} : vector<16x8xf32>, vector<8x16xf32>, vector<16x16xf32> -> vector<16x16xf32>
    %88 = arith.addf %78, %87 : vector<16x16xf32>
    %c2_58 = arith.constant 2 : index
    %c0_59 = arith.constant 0 : index
    %c0_60 = arith.constant 0 : index
    %89 = vector.load %arg6[%c2_58, %c0_59, %c0_60] : memref<3x8x16xf32, #tpu.memory_space<vmem>>, vector<1x8x16xf32>
    %90 = vector.shape_cast %89 : vector<1x8x16xf32> to vector<8x16xf32>
    %cst_61 = arith.constant dense<0.000000e+00> : vector<16x16xf32>
    %91 = tpu.matmul %64, %90, %cst_61 {dimension_numbers = #tpu.dot_dimension_numbers<[1], [0], [0], [1], [0, 0, 1, 1], [], []>} : vector<16x8xf32>, vector<8x16xf32>, vector<16x16xf32> -> vector<16x16xf32>
    %92 = arith.addf %88, %91 : vector<16x16xf32>
    %cst_62 = arith.constant 0.000000e+00 : f32
    %93 = vector.broadcast %cst_62 : f32 to vector<16x16xf32>
    %94 = arith.maximumf %92, %93 : vector<16x16xf32>
    %cst_63 = arith.constant 0.000000e+00 : f32
    %95 = vector.broadcast %cst_63 : f32 to vector<16x16xf32>
    %c0_64 = arith.constant 0 : index
    %c0_65 = arith.constant 0 : index
    %96 = vector.load %arg9[%c0_64, %c0_65] : memref<1x16xf32, #tpu.memory_space<vmem>>, vector<1x16xf32>
    %97 = vector.broadcast %96 : vector<1x16xf32> to vector<16x16xf32>
    %98 = arith.addf %95, %97 : vector<16x16xf32>
    %99 = tpu.iota {dimensions = array<i32: 0>} : vector<16x16xi32>
    %c4_i32_66 = arith.constant 4 : i32
    %100 = tpu.dynamic_rotate %94 by %c4_i32_66 dim 0 : vector<16x16xf32>, i32 -> vector<16x16xf32>
    %c4_i32_67 = arith.constant 4 : i32
    %101 = vector.broadcast %c4_i32_67 : i32 to vector<16x16xi32>
    %102 = arith.cmpi sge, %99, %101 : vector<16x16xi32>
    %cst_68 = arith.constant 0.000000e+00 : f32
    %103 = vector.broadcast %cst_68 : f32 to vector<16x16xf32>
    %104 = arith.select %102, %100, %103 : vector<16x16xi1>, vector<16x16xf32>
    %c0_69 = arith.constant 0 : index
    %c0_70 = arith.constant 0 : index
    %c0_71 = arith.constant 0 : index
    %105 = vector.load %arg8[%c0_69, %c0_70, %c0_71] : memref<3x16x16xf32, #tpu.memory_space<vmem>>, vector<1x16x16xf32>
    %106 = vector.shape_cast %105 : vector<1x16x16xf32> to vector<16x16xf32>
    %cst_72 = arith.constant dense<0.000000e+00> : vector<16x16xf32>
    %107 = tpu.matmul %104, %106, %cst_72 {dimension_numbers = #tpu.dot_dimension_numbers<[1], [0], [0], [1], [0, 0, 1, 1], [], []>} : vector<16x16xf32>, vector<16x16xf32>, vector<16x16xf32> -> vector<16x16xf32>
    %108 = arith.addf %98, %107 : vector<16x16xf32>
    %109 = tpu.iota {dimensions = array<i32: 0>} : vector<16x16xi32>
    %c2_i32_73 = arith.constant 2 : i32
    %110 = tpu.dynamic_rotate %94 by %c2_i32_73 dim 0 : vector<16x16xf32>, i32 -> vector<16x16xf32>
    %c2_i32_74 = arith.constant 2 : i32
    %111 = vector.broadcast %c2_i32_74 : i32 to vector<16x16xi32>
    %112 = arith.cmpi sge, %109, %111 : vector<16x16xi32>
    %cst_75 = arith.constant 0.000000e+00 : f32
    %113 = vector.broadcast %cst_75 : f32 to vector<16x16xf32>
    %114 = arith.select %112, %110, %113 : vector<16x16xi1>, vector<16x16xf32>
    %c1_76 = arith.constant 1 : index
    %c0_77 = arith.constant 0 : index
    %c0_78 = arith.constant 0 : index
    %115 = vector.load %arg8[%c1_76, %c0_77, %c0_78] : memref<3x16x16xf32, #tpu.memory_space<vmem>>, vector<1x16x16xf32>
    %116 = vector.shape_cast %115 : vector<1x16x16xf32> to vector<16x16xf32>
    %cst_79 = arith.constant dense<0.000000e+00> : vector<16x16xf32>
    %117 = tpu.matmul %114, %116, %cst_79 {dimension_numbers = #tpu.dot_dimension_numbers<[1], [0], [0], [1], [0, 0, 1, 1], [], []>} : vector<16x16xf32>, vector<16x16xf32>, vector<16x16xf32> -> vector<16x16xf32>
    %118 = arith.addf %108, %117 : vector<16x16xf32>
    %c2_80 = arith.constant 2 : index
    %c0_81 = arith.constant 0 : index
    %c0_82 = arith.constant 0 : index
    %119 = vector.load %arg8[%c2_80, %c0_81, %c0_82] : memref<3x16x16xf32, #tpu.memory_space<vmem>>, vector<1x16x16xf32>
    %120 = vector.shape_cast %119 : vector<1x16x16xf32> to vector<16x16xf32>
    %cst_83 = arith.constant dense<0.000000e+00> : vector<16x16xf32>
    %121 = tpu.matmul %94, %120, %cst_83 {dimension_numbers = #tpu.dot_dimension_numbers<[1], [0], [0], [1], [0, 0, 1, 1], [], []>} : vector<16x16xf32>, vector<16x16xf32>, vector<16x16xf32> -> vector<16x16xf32>
    %122 = arith.addf %118, %121 : vector<16x16xf32>
    %cst_84 = arith.constant 0.000000e+00 : f32
    %123 = vector.broadcast %cst_84 : f32 to vector<16x16xf32>
    %124 = arith.maximumf %122, %123 : vector<16x16xf32>
    %c0_85 = arith.constant 0 : index
    %c0_86 = arith.constant 0 : index
    %125 = vector.load %arg10[%c0_85, %c0_86] : memref<8x16xf32, #tpu.memory_space<vmem>>, vector<8x16xf32>
    %cst_87 = arith.constant dense<0.000000e+00> : vector<16x16xf32>
    %126 = tpu.matmul %64, %125, %cst_87 {dimension_numbers = #tpu.dot_dimension_numbers<[1], [0], [0], [1], [0, 0, 1, 1], [], []>} : vector<16x8xf32>, vector<8x16xf32>, vector<16x16xf32> -> vector<16x16xf32>
    %c0_88 = arith.constant 0 : index
    %c0_89 = arith.constant 0 : index
    %127 = vector.load %arg11[%c0_88, %c0_89] : memref<1x16xf32, #tpu.memory_space<vmem>>, vector<1x16xf32>
    %128 = vector.broadcast %127 : vector<1x16xf32> to vector<16x16xf32>
    %129 = arith.addf %126, %128 : vector<16x16xf32>
    %130 = arith.addf %124, %129 : vector<16x16xf32>
    %cst_90 = arith.constant 0.000000e+00 : f32
    %131 = vector.broadcast %cst_90 : f32 to vector<16x16xf32>
    %132 = arith.maximumf %130, %131 : vector<16x16xf32>
    %cst_91 = arith.constant 0.000000e+00 : f32
    %133 = vector.broadcast %cst_91 : f32 to vector<16x8xf32>
    %c0_92 = arith.constant 0 : index
    %c0_93 = arith.constant 0 : index
    %134 = vector.load %arg13[%c0_92, %c0_93] : memref<1x8xf32, #tpu.memory_space<vmem>>, vector<1x8xf32>
    %135 = vector.broadcast %134 : vector<1x8xf32> to vector<16x8xf32>
    %136 = arith.addf %133, %135 : vector<16x8xf32>
    %137 = tpu.iota {dimensions = array<i32: 0>} : vector<16x16xi32>
    %c8_i32 = arith.constant 8 : i32
    %138 = tpu.dynamic_rotate %132 by %c8_i32 dim 0 : vector<16x16xf32>, i32 -> vector<16x16xf32>
    %c8_i32_94 = arith.constant 8 : i32
    %139 = vector.broadcast %c8_i32_94 : i32 to vector<16x16xi32>
    %140 = arith.cmpi sge, %137, %139 : vector<16x16xi32>
    %cst_95 = arith.constant 0.000000e+00 : f32
    %141 = vector.broadcast %cst_95 : f32 to vector<16x16xf32>
    %142 = arith.select %140, %138, %141 : vector<16x16xi1>, vector<16x16xf32>
    %c0_96 = arith.constant 0 : index
    %c0_97 = arith.constant 0 : index
    %c0_98 = arith.constant 0 : index
    %143 = vector.load %arg12[%c0_96, %c0_97, %c0_98] : memref<3x16x8xf32, #tpu.memory_space<vmem>>, vector<1x16x8xf32>
    %144 = vector.shape_cast %143 : vector<1x16x8xf32> to vector<16x8xf32>
    %cst_99 = arith.constant dense<0.000000e+00> : vector<16x8xf32>
    %145 = tpu.matmul %142, %144, %cst_99 {dimension_numbers = #tpu.dot_dimension_numbers<[1], [0], [0], [1], [0, 0, 1, 1], [], []>} : vector<16x16xf32>, vector<16x8xf32>, vector<16x8xf32> -> vector<16x8xf32>
    %146 = arith.addf %136, %145 : vector<16x8xf32>
    %147 = tpu.iota {dimensions = array<i32: 0>} : vector<16x16xi32>
    %c4_i32_100 = arith.constant 4 : i32
    %148 = tpu.dynamic_rotate %132 by %c4_i32_100 dim 0 : vector<16x16xf32>, i32 -> vector<16x16xf32>
    %c4_i32_101 = arith.constant 4 : i32
    %149 = vector.broadcast %c4_i32_101 : i32 to vector<16x16xi32>
    %150 = arith.cmpi sge, %147, %149 : vector<16x16xi32>
    %cst_102 = arith.constant 0.000000e+00 : f32
    %151 = vector.broadcast %cst_102 : f32 to vector<16x16xf32>
    %152 = arith.select %150, %148, %151 : vector<16x16xi1>, vector<16x16xf32>
    %c1_103 = arith.constant 1 : index
    %c0_104 = arith.constant 0 : index
    %c0_105 = arith.constant 0 : index
    %153 = vector.load %arg12[%c1_103, %c0_104, %c0_105] : memref<3x16x8xf32, #tpu.memory_space<vmem>>, vector<1x16x8xf32>
    %154 = vector.shape_cast %153 : vector<1x16x8xf32> to vector<16x8xf32>
    %cst_106 = arith.constant dense<0.000000e+00> : vector<16x8xf32>
    %155 = tpu.matmul %152, %154, %cst_106 {dimension_numbers = #tpu.dot_dimension_numbers<[1], [0], [0], [1], [0, 0, 1, 1], [], []>} : vector<16x16xf32>, vector<16x8xf32>, vector<16x8xf32> -> vector<16x8xf32>
    %156 = arith.addf %146, %155 : vector<16x8xf32>
    %c2_107 = arith.constant 2 : index
    %c0_108 = arith.constant 0 : index
    %c0_109 = arith.constant 0 : index
    %157 = vector.load %arg12[%c2_107, %c0_108, %c0_109] : memref<3x16x8xf32, #tpu.memory_space<vmem>>, vector<1x16x8xf32>
    %158 = vector.shape_cast %157 : vector<1x16x8xf32> to vector<16x8xf32>
    %cst_110 = arith.constant dense<0.000000e+00> : vector<16x8xf32>
    %159 = tpu.matmul %132, %158, %cst_110 {dimension_numbers = #tpu.dot_dimension_numbers<[1], [0], [0], [1], [0, 0, 1, 1], [], []>} : vector<16x16xf32>, vector<16x8xf32>, vector<16x8xf32> -> vector<16x8xf32>
    %160 = arith.addf %156, %159 : vector<16x8xf32>
    %cst_111 = arith.constant 0.000000e+00 : f32
    %161 = vector.broadcast %cst_111 : f32 to vector<16x8xf32>
    %162 = arith.maximumf %160, %161 : vector<16x8xf32>
    %cst_112 = arith.constant 0.000000e+00 : f32
    %163 = vector.broadcast %cst_112 : f32 to vector<16x8xf32>
    %c0_113 = arith.constant 0 : index
    %c0_114 = arith.constant 0 : index
    %164 = vector.load %arg15[%c0_113, %c0_114] : memref<1x8xf32, #tpu.memory_space<vmem>>, vector<1x8xf32>
    %165 = vector.broadcast %164 : vector<1x8xf32> to vector<16x8xf32>
    %166 = arith.addf %163, %165 : vector<16x8xf32>
    %167 = tpu.iota {dimensions = array<i32: 0>} : vector<16x8xi32>
    %c8_i32_115 = arith.constant 8 : i32
    %168 = tpu.dynamic_rotate %162 by %c8_i32_115 dim 0 : vector<16x8xf32>, i32 -> vector<16x8xf32>
    %c8_i32_116 = arith.constant 8 : i32
    %169 = vector.broadcast %c8_i32_116 : i32 to vector<16x8xi32>
    %170 = arith.cmpi sge, %167, %169 : vector<16x8xi32>
    %cst_117 = arith.constant 0.000000e+00 : f32
    %171 = vector.broadcast %cst_117 : f32 to vector<16x8xf32>
    %172 = arith.select %170, %168, %171 : vector<16x8xi1>, vector<16x8xf32>
    %c0_118 = arith.constant 0 : index
    %c0_119 = arith.constant 0 : index
    %c0_120 = arith.constant 0 : index
    %173 = vector.load %arg14[%c0_118, %c0_119, %c0_120] : memref<3x8x8xf32, #tpu.memory_space<vmem>>, vector<1x8x8xf32>
    %174 = vector.shape_cast %173 : vector<1x8x8xf32> to vector<8x8xf32>
    %cst_121 = arith.constant dense<0.000000e+00> : vector<16x8xf32>
    %175 = tpu.matmul %172, %174, %cst_121 {dimension_numbers = #tpu.dot_dimension_numbers<[1], [0], [0], [1], [0, 0, 1, 1], [], []>} : vector<16x8xf32>, vector<8x8xf32>, vector<16x8xf32> -> vector<16x8xf32>
    %176 = arith.addf %166, %175 : vector<16x8xf32>
    %177 = tpu.iota {dimensions = array<i32: 0>} : vector<16x8xi32>
    %c4_i32_122 = arith.constant 4 : i32
    %178 = tpu.dynamic_rotate %162 by %c4_i32_122 dim 0 : vector<16x8xf32>, i32 -> vector<16x8xf32>
    %c4_i32_123 = arith.constant 4 : i32
    %179 = vector.broadcast %c4_i32_123 : i32 to vector<16x8xi32>
    %180 = arith.cmpi sge, %177, %179 : vector<16x8xi32>
    %cst_124 = arith.constant 0.000000e+00 : f32
    %181 = vector.broadcast %cst_124 : f32 to vector<16x8xf32>
    %182 = arith.select %180, %178, %181 : vector<16x8xi1>, vector<16x8xf32>
    %c1_125 = arith.constant 1 : index
    %c0_126 = arith.constant 0 : index
    %c0_127 = arith.constant 0 : index
    %183 = vector.load %arg14[%c1_125, %c0_126, %c0_127] : memref<3x8x8xf32, #tpu.memory_space<vmem>>, vector<1x8x8xf32>
    %184 = vector.shape_cast %183 : vector<1x8x8xf32> to vector<8x8xf32>
    %cst_128 = arith.constant dense<0.000000e+00> : vector<16x8xf32>
    %185 = tpu.matmul %182, %184, %cst_128 {dimension_numbers = #tpu.dot_dimension_numbers<[1], [0], [0], [1], [0, 0, 1, 1], [], []>} : vector<16x8xf32>, vector<8x8xf32>, vector<16x8xf32> -> vector<16x8xf32>
    %186 = arith.addf %176, %185 : vector<16x8xf32>
    %c2_129 = arith.constant 2 : index
    %c0_130 = arith.constant 0 : index
    %c0_131 = arith.constant 0 : index
    %187 = vector.load %arg14[%c2_129, %c0_130, %c0_131] : memref<3x8x8xf32, #tpu.memory_space<vmem>>, vector<1x8x8xf32>
    %188 = vector.shape_cast %187 : vector<1x8x8xf32> to vector<8x8xf32>
    %cst_132 = arith.constant dense<0.000000e+00> : vector<16x8xf32>
    %189 = tpu.matmul %162, %188, %cst_132 {dimension_numbers = #tpu.dot_dimension_numbers<[1], [0], [0], [1], [0, 0, 1, 1], [], []>} : vector<16x8xf32>, vector<8x8xf32>, vector<16x8xf32> -> vector<16x8xf32>
    %190 = arith.addf %186, %189 : vector<16x8xf32>
    %cst_133 = arith.constant 0.000000e+00 : f32
    %191 = vector.broadcast %cst_133 : f32 to vector<16x8xf32>
    %192 = arith.maximumf %190, %191 : vector<16x8xf32>
    %c0_134 = arith.constant 0 : index
    %c0_135 = arith.constant 0 : index
    %193 = vector.load %arg16[%c0_134, %c0_135] : memref<16x8xf32, #tpu.memory_space<vmem>>, vector<16x8xf32>
    %cst_136 = arith.constant dense<0.000000e+00> : vector<16x8xf32>
    %194 = tpu.matmul %132, %193, %cst_136 {dimension_numbers = #tpu.dot_dimension_numbers<[1], [0], [0], [1], [0, 0, 1, 1], [], []>} : vector<16x16xf32>, vector<16x8xf32>, vector<16x8xf32> -> vector<16x8xf32>
    %c0_137 = arith.constant 0 : index
    %c0_138 = arith.constant 0 : index
    %195 = vector.load %arg17[%c0_137, %c0_138] : memref<1x8xf32, #tpu.memory_space<vmem>>, vector<1x8xf32>
    %196 = vector.broadcast %195 : vector<1x8xf32> to vector<16x8xf32>
    %197 = arith.addf %194, %196 : vector<16x8xf32>
    %198 = arith.addf %192, %197 : vector<16x8xf32>
    %cst_139 = arith.constant 0.000000e+00 : f32
    %199 = vector.broadcast %cst_139 : f32 to vector<16x8xf32>
    %200 = arith.maximumf %198, %199 : vector<16x8xf32>
    %201 = arith.addf %200, %1 : vector<16x8xf32>
    %cst_140 = arith.constant dense<0.000000e+00> : vector<16xf32>
    %202 = vector.multi_reduction <add>, %201, %cst_140 [1] : vector<16x8xf32> to vector<16xf32>
    %203 = vector.shape_cast %202 : vector<16xf32> to vector<16x1xf32>
    %cst_141 = arith.constant 8.000000e+00 : f32
    %204 = vector.broadcast %cst_141 : f32 to vector<16x1xf32>
    %205 = arith.divf %203, %204 : vector<16x1xf32>
    %206 = vector.broadcast %205 : vector<16x1xf32> to vector<16x8xf32>
    %207 = arith.subf %201, %206 : vector<16x8xf32>
    %208 = arith.mulf %207, %207 : vector<16x8xf32>
    %cst_142 = arith.constant dense<0.000000e+00> : vector<16xf32>
    %209 = vector.multi_reduction <add>, %208, %cst_142 [1] : vector<16x8xf32> to vector<16xf32>
    %210 = vector.shape_cast %209 : vector<16xf32> to vector<16x1xf32>
    %cst_143 = arith.constant 8.000000e+00 : f32
    %211 = vector.broadcast %cst_143 : f32 to vector<16x1xf32>
    %212 = arith.divf %210, %211 : vector<16x1xf32>
    %cst_144 = arith.constant 9.99999996E-13 : f32
    %213 = vector.broadcast %cst_144 : f32 to vector<16x1xf32>
    %214 = arith.addf %212, %213 : vector<16x1xf32>
    %215 = math.rsqrt %214 : vector<16x1xf32>
    %216 = vector.broadcast %215 : vector<16x1xf32> to vector<16x8xf32>
    %217 = arith.mulf %207, %216 : vector<16x8xf32>
    %c0_145 = arith.constant 0 : index
    %c0_146 = arith.constant 0 : index
    %218 = vector.load %arg18[%c0_145, %c0_146] : memref<1x8xf32, #tpu.memory_space<vmem>>, vector<1x8xf32>
    %219 = vector.broadcast %218 : vector<1x8xf32> to vector<16x8xf32>
    %220 = arith.mulf %217, %219 : vector<16x8xf32>
    %c0_147 = arith.constant 0 : index
    %c0_148 = arith.constant 0 : index
    %221 = vector.load %arg19[%c0_147, %c0_148] : memref<1x8xf32, #tpu.memory_space<vmem>>, vector<1x8xf32>
    %222 = vector.broadcast %221 : vector<1x8xf32> to vector<16x8xf32>
    %223 = arith.addf %220, %222 : vector<16x8xf32>
    %c0_149 = arith.constant 0 : index
    %c0_150 = arith.constant 0 : index
    %c0_151 = arith.constant 0 : index
    %224 = vector.load %arg20[%c0_149, %c0_150, %c0_151] : memref<1x16x8xf32, #tpu.memory_space<vmem>>, vector<1x16x8xf32>
    %225 = vector.shape_cast %224 : vector<1x16x8xf32> to vector<16x8xf32>
    %226 = vector.shape_cast %223 : vector<16x8xf32> to vector<1x16x8xf32>
    tpu.vector_store %arg20[%c0_149, %c0_150, %c0_151], %226 {strides = array<i32>} : memref<1x16x8xf32, #tpu.memory_space<vmem>>, vector<1x16x8xf32>,
    return
  }
  func.func @transform_0(%arg0: i32) -> (i32, i32, i32) {
    %c0_i32 = arith.constant 0 : i32
    %c0_i32_0 = arith.constant 0 : i32
    %c0_i32_1 = arith.constant 0 : i32
    return %arg0, %c0_i32, %c0_i32_0 : i32, i32, i32
  }
  func.func @transform_1(%arg0: i32) -> (i32, i32, i32) {
    %c0_i32 = arith.constant 0 : i32
    %c0_i32_0 = arith.constant 0 : i32
    %c0_i32_1 = arith.constant 0 : i32
    %c0_i32_2 = arith.constant 0 : i32
    return %c0_i32, %c0_i32_0, %c0_i32_1 : i32, i32, i32
  }
  func.func @transform_2(%arg0: i32) -> (i32, i32) {
    %c0_i32 = arith.constant 0 : i32
    %c0_i32_0 = arith.constant 0 : i32
    %c0_i32_1 = arith.constant 0 : i32
    return %c0_i32, %c0_i32_0 : i32, i32
  }
  func.func @transform_3(%arg0: i32) -> (i32, i32, i32) {
    %c0_i32 = arith.constant 0 : i32
    %c0_i32_0 = arith.constant 0 : i32
    %c0_i32_1 = arith.constant 0 : i32
    %c0_i32_2 = arith.constant 0 : i32
    return %c0_i32, %c0_i32_0, %c0_i32_1 : i32, i32, i32
  }
  func.func @transform_4(%arg0: i32) -> (i32, i32) {
    %c0_i32 = arith.constant 0 : i32
    %c0_i32_0 = arith.constant 0 : i32
    %c0_i32_1 = arith.constant 0 : i32
    return %c0_i32, %c0_i32_0 : i32, i32
  }
  func.func @transform_5(%arg0: i32) -> (i32, i32, i32) {
    %c0_i32 = arith.constant 0 : i32
    %c0_i32_0 = arith.constant 0 : i32
    %c0_i32_1 = arith.constant 0 : i32
    %c0_i32_2 = arith.constant 0 : i32
    return %c0_i32, %c0_i32_0, %c0_i32_1 : i32, i32, i32
  }
  func.func @transform_6(%arg0: i32) -> (i32, i32) {
    %c0_i32 = arith.constant 0 : i32
    %c0_i32_0 = arith.constant 0 : i32
    %c0_i32_1 = arith.constant 0 : i32
    return %c0_i32, %c0_i32_0 : i32, i32
  }
  func.func @transform_7(%arg0: i32) -> (i32, i32, i32) {
    %c0_i32 = arith.constant 0 : i32
    %c0_i32_0 = arith.constant 0 : i32
    %c0_i32_1 = arith.constant 0 : i32
    %c0_i32_2 = arith.constant 0 : i32
    return %c0_i32, %c0_i32_0, %c0_i32_1 : i32, i32, i32
  }
  func.func @transform_8(%arg0: i32) -> (i32, i32) {
    %c0_i32 = arith.constant 0 : i32
    %c0_i32_0 = arith.constant 0 : i32
    %c0_i32_1 = arith.constant 0 : i32
    return %c0_i32, %c0_i32_0 : i32, i32
  }
  func.func @transform_9(%arg0: i32) -> (i32, i32) {
    %c0_i32 = arith.constant 0 : i32
    %c0_i32_0 = arith.constant 0 : i32
    %c0_i32_1 = arith.constant 0 : i32
    return %c0_i32, %c0_i32_0 : i32, i32
  }
  func.func @transform_10(%arg0: i32) -> (i32, i32) {
    %c0_i32 = arith.constant 0 : i32
    %c0_i32_0 = arith.constant 0 : i32
    %c0_i32_1 = arith.constant 0 : i32
    return %c0_i32, %c0_i32_0 : i32, i32
  }
  func.func @transform_11(%arg0: i32) -> (i32, i32, i32) {
    %c0_i32 = arith.constant 0 : i32
    %c0_i32_0 = arith.constant 0 : i32
    %c0_i32_1 = arith.constant 0 : i32
    %c0_i32_2 = arith.constant 0 : i32
    return %c0_i32, %c0_i32_0, %c0_i32_1 : i32, i32, i32
  }
  func.func @transform_12(%arg0: i32) -> (i32, i32) {
    %c0_i32 = arith.constant 0 : i32
    %c0_i32_0 = arith.constant 0 : i32
    %c0_i32_1 = arith.constant 0 : i32
    return %c0_i32, %c0_i32_0 : i32, i32
  }
  func.func @transform_13(%arg0: i32) -> (i32, i32, i32) {
    %c0_i32 = arith.constant 0 : i32
    %c0_i32_0 = arith.constant 0 : i32
    %c0_i32_1 = arith.constant 0 : i32
    %c0_i32_2 = arith.constant 0 : i32
    return %c0_i32, %c0_i32_0, %c0_i32_1 : i32, i32, i32
  }
  func.func @transform_14(%arg0: i32) -> (i32, i32) {
    %c0_i32 = arith.constant 0 : i32
    %c0_i32_0 = arith.constant 0 : i32
    %c0_i32_1 = arith.constant 0 : i32
    return %c0_i32, %c0_i32_0 : i32, i32
  }
  func.func @transform_15(%arg0: i32) -> (i32, i32) {
    %c0_i32 = arith.constant 0 : i32
    %c0_i32_0 = arith.constant 0 : i32
    %c0_i32_1 = arith.constant 0 : i32
    return %c0_i32, %c0_i32_0 : i32, i32
  }
  func.func @transform_16(%arg0: i32) -> (i32, i32) {
    %c0_i32 = arith.constant 0 : i32
    %c0_i32_0 = arith.constant 0 : i32
    %c0_i32_1 = arith.constant 0 : i32
    return %c0_i32, %c0_i32_0 : i32, i32
  }
  func.func @transform_17(%arg0: i32) -> (i32, i32) {
    %c0_i32 = arith.constant 0 : i32
    %c0_i32_0 = arith.constant 0 : i32
    %c0_i32_1 = arith.constant 0 : i32
    return %c0_i32, %c0_i32_0 : i32, i32
  }
  func.func @transform_18(%arg0: i32) -> (i32, i32) {
    %c0_i32 = arith.constant 0 : i32
    %c0_i32_0 = arith.constant 0 : i32
    %c0_i32_1 = arith.constant 0 : i32
    return %c0_i32, %c0_i32_0 : i32, i32
  }
  func.func @transform_19(%arg0: i32) -> (i32, i32, i32) {
    %c0_i32 = arith.constant 0 : i32
    %c0_i32_0 = arith.constant 0 : i32
    %c0_i32_1 = arith.constant 0 : i32
    return %arg0, %c0_i32, %c0_i32_0 : i32, i32, i32
  }
}

</mosaic_0001>

<llo_original>
// kernel: tpu_custom_call.1
$region0: #{tpu_custom_call.1}
  #allocation0 [shape = 'u32[]', space=smem, size = 0x4, offset = 0x4, fixed_abs, tag = 'smem constant byte address 0x4 - core index']
  #allocation1 [shape = 'u32[144,128]{1,0:T(1,128)}', space=vmem, size = 0x12000, scoped, tag = 'internal scratch']
  %s0 = inlined_call_operand.hbm [shape: f32[2,16,8], index: 0, kind: input, shape index: {}]
  %s1 = inlined_call_operand.hbm [shape: f32[3,8,8], index: 1, kind: input, shape index: {}]
  %s2 = inlined_call_operand.hbm [shape: f32[1,8], index: 2, kind: input, shape index: {}]
  %s3 = inlined_call_operand.hbm [shape: f32[3,8,8], index: 3, kind: input, shape index: {}]
  %s4 = inlined_call_operand.hbm [shape: f32[1,8], index: 4, kind: input, shape index: {}]
  %s5 = inlined_call_operand.hbm [shape: f32[3,8,16], index: 5, kind: input, shape index: {}]
  %s6 = inlined_call_operand.hbm [shape: f32[1,16], index: 6, kind: input, shape index: {}]
  %s7 = inlined_call_operand.hbm [shape: f32[3,16,16], index: 7, kind: input, shape index: {}]
  %s8 = inlined_call_operand.hbm [shape: f32[1,16], index: 8, kind: input, shape index: {}]
  %s9 = inlined_call_operand.hbm [shape: f32[8,16], index: 9, kind: input, shape index: {}]
  %s10 = inlined_call_operand.hbm [shape: f32[1,16], index: 10, kind: input, shape index: {}]
  %s11 = inlined_call_operand.hbm [shape: f32[3,16,8], index: 11, kind: input, shape index: {}]
  %s12 = inlined_call_operand.hbm [shape: f32[1,8], index: 12, kind: input, shape index: {}]
  %s13 = inlined_call_operand.hbm [shape: f32[3,8,8], index: 13, kind: input, shape index: {}]
  %s14 = inlined_call_operand.hbm [shape: f32[1,8], index: 14, kind: input, shape index: {}]
  %s15 = inlined_call_operand.hbm [shape: f32[16,8], index: 15, kind: input, shape index: {}]
  %s16 = inlined_call_operand.hbm [shape: f32[1,8], index: 16, kind: input, shape index: {}]
  %s17 = inlined_call_operand.hbm [shape: f32[1,8], index: 17, kind: input, shape index: {}]
  %s18 = inlined_call_operand.hbm [shape: f32[1,8], index: 18, kind: input, shape index: {}]
  %s19 = inlined_call_operand.hbm [shape: f32[2,16,8], index: 19, kind: output, shape index: {}]
  %s20 = sld [smem:[#allocation0]]
  $region185: #{tpu_custom_call.1} parent=0
    _
  %s22 = ssub.s32 1, %s20
  %s23 = scalar_select 0, %s22, %s20
  $region1: #{tpu_custom_call.1} parent=0
    #allocation2 [shape = 'u8[16384]{0}', space=vmem, size = 0x4000, scoped, tag = 'input window, operand 0']
    #allocation3 [shape = 's32[2]{0}', space=sflag, size = 0x8, scoped, tag = 'scoped memory for tpu_custom_call.1']
    #allocation4 [shape = 's32[2]{0}', space=sflag, size = 0x8, scoped, tag = 'scoped memory for tpu_custom_call.1']
    #allocation5 [shape = 'u8[12288]{0}', space=vmem, size = 0x3000, scoped, tag = 'input window, operand 1, single buffered']
    #allocation6 [shape = 's32[1]{0}', space=sflag, size = 0x4, scoped, tag = 'scoped memory for tpu_custom_call.1']
    #allocation7 [shape = 'u8[512]{0}', space=vmem, size = 0x400, scoped, tag = 'input window, operand 2, single buffered']
    #allocation8 [shape = 'u8[12288]{0}', space=vmem, size = 0x3000, scoped, tag = 'input window, operand 3, single buffered']
    #allocation9 [shape = 's32[1]{0}', space=sflag, size = 0x4, scoped, tag = 'scoped memory for tpu_custom_call.1']
    #allocation10 [shape = 'u8[512]{0}', space=vmem, size = 0x400, scoped, tag = 'input window, operand 4, single buffered']
    #allocation11 [shape = 'u8[12288]{0}', space=vmem, size = 0x3000, scoped, tag = 'input window, operand 5, single buffered']
    #allocation12 [shape = 's32[1]{0}', space=sflag, size = 0x4, scoped, tag = 'scoped memory for tpu_custom_call.1']
    #allocation13 [shape = 'u8[512]{0}', space=vmem, size = 0x400, scoped, tag = 'input window, operand 6, single buffered']
    #allocation14 [shape = 'u8[24576]{0}', space=vmem, size = 0x6000, scoped, tag = 'input window, operand 7, single buffered']
    #allocation15 [shape = 's32[1]{0}', space=sflag, size = 0x4, scoped, tag = 'scoped memory for tpu_custom_call.1']
    #allocation16 [shape = 'u8[512]{0}', space=vmem, size = 0x400, scoped, tag = 'input window, operand 8, single buffered']
    #allocation17 [shape = 'u8[4096]{0}', space=vmem, size = 0x1000, scoped, tag = 'input window, operand 9, single buffered']
    #allocation18 [shape = 's32[1]{0}', space=sflag, size = 0x4, scoped, tag = 'scoped memory for tpu_custom_call.1']
    #allocation19 [shape = 'u8[512]{0}', space=vmem, size = 0x400, scoped, tag = 'input window, operand 10, single buffered']
    #allocation20 [shape = 'u8[24576]{0}', space=vmem, size = 0x6000, scoped, tag = 'input window, operand 11, single buffered']
    #allocation21 [shape = 's32[1]{0}', space=sflag, size = 0x4, scoped, tag = 'scoped memory for tpu_custom_call.1']
    #allocation22 [shape = 'u8[512]{0}', space=vmem, size = 0x400, scoped, tag = 'input window, operand 12, single buffered']
    #allocation23 [shape = 'u8[12288]{0}', space=vmem, size = 0x3000, scoped, tag = 'input window, operand 13, single buffered']
    #allocation24 [shape = 's32[1]{0}', space=sflag, size = 0x4, scoped, tag = 'scoped memory for tpu_custom_call.1']
    #allocation25 [shape = 'u8[512]{0}', space=vmem, size = 0x400, scoped, tag = 'input window, operand 14, single buffered']
    #allocation26 [shape = 'u8[8192]{0}', space=vmem, size = 0x2000, scoped, tag = 'input window, operand 15, single buffered']
    #allocation27 [shape = 's32[1]{0}', space=sflag, size = 0x4, scoped, tag = 'scoped memory for tpu_custom_call.1']
    #allocation28 [shape = 'u8[512]{0}', space=vmem, size = 0x400, scoped, tag = 'input window, operand 16, single buffered']
    #allocation29 [shape = 'u8[512]{0}', space=vmem, size = 0x400, scoped, tag = 'input window, operand 17, single buffered']
    #allocation30 [shape = 's32[1]{0}', space=sflag, size = 0x4, scoped, tag = 'scoped memory for tpu_custom_call.1']
    #allocation31 [shape = 'u8[512]{0}', space=vmem, size = 0x400, scoped, tag = 'input window, operand 18, single buffered']
    #allocation32 [shape = 'u8[16384]{0}', space=vmem, size = 0x4000, scoped, tag = 'output window, operand 0']
    %24 = vsyncpa [#allocation3], 0
    %s25 = scalar_lea.sflag [#allocation3], 1
    %26 = vsyncpa %s25, 0
    %27 = vsyncpa [#allocation6], 0
    %28 = vsyncpa [#allocation9], 0
    %29 = vsyncpa [#allocation12], 0
    %30 = vsyncpa [#allocation15], 0
    %31 = vsyncpa [#allocation18], 0
    %32 = vsyncpa [#allocation21], 0
    %33 = vsyncpa [#allocation24], 0
    %34 = vsyncpa [#allocation27], 0
    %35 = vsyncpa [#allocation30], 0
    %36 = vsyncpa [#allocation4], 0
    %s37 = scalar_lea.sflag [#allocation4], 1
    %38 = vsyncpa %s37, 0
    loop: start=0, step=1, limit=4
    $region2: #{tpu_custom_call.1} parent=1 // loop_pre_header
      _
    $region3: #{tpu_custom_call.1} parent=1 // loop_header
      %s40 = sphi 0, %s44
      %p41 = scmp.ge.s32.totalorder %s40, 4
      %s50 = sphi 0, %s52
      %s53 = sphi 0, %s50
      %s54 = sphi 0, %s53
      %s70 = sphi 0, %s54
      %s74 = sphi 0, %s74
      %s76 = sphi 0, %s74
      %s77 = sphi 0, %s76
      %s91 = sphi 0, %s77
      %s95 = sphi 0, %s95
      %s97 = sphi 0, %s95
      %s98 = sphi 0, %s97
      %s112 = sphi 0, %s98
      %s116 = sphi 0, %s116
      %s118 = sphi 0, %s116
      %s119 = sphi 0, %s118
      %s133 = sphi 0, %s119
      %s137 = sphi 0, %s137
      %s139 = sphi 0, %s137
      %s140 = sphi 0, %s139
      %s154 = sphi 0, %s140
      %s158 = sphi 0, %s158
      %s160 = sphi 0, %s158
      %s161 = sphi 0, %s160
      %s175 = sphi 0, %s161
      %s179 = sphi 0, %s179
      %s181 = sphi 0, %s179
      %s182 = sphi 0, %s181
      %s196 = sphi 0, %s182
      %s200 = sphi 0, %s200
      %s202 = sphi 0, %s200
      %s203 = sphi 0, %s202
      %s217 = sphi 0, %s203
      %s221 = sphi 0, %s221
      %s223 = sphi 0, %s221
      %s224 = sphi 0, %s223
      %s238 = sphi 0, %s224
      %s242 = sphi 0, %s242
      %s244 = sphi 0, %s242
      %s245 = sphi 0, %s244
      %s259 = sphi 0, %s245
      %s263 = sphi 0, %s263
      %s265 = sphi 0, %s263
      %s266 = sphi 0, %s265
      %s280 = sphi 0, %s266
      %s284 = sphi 0, %s284
      %s286 = sphi 0, %s284
      %s287 = sphi 0, %s286
      %s301 = sphi 0, %s287
      %s305 = sphi 0, %s305
      %s307 = sphi 0, %s305
      %s308 = sphi 0, %s307
      %s322 = sphi 0, %s308
      %s326 = sphi 0, %s326
      %s328 = sphi 0, %s326
      %s329 = sphi 0, %s328
      %s343 = sphi 0, %s329
      %s347 = sphi 0, %s347
      %s349 = sphi 0, %s347
      %s350 = sphi 0, %s349
      %s364 = sphi 0, %s350
      %s368 = sphi 0, %s368
      %s370 = sphi 0, %s368
      %s371 = sphi 0, %s370
      %s385 = sphi 0, %s371
      %s389 = sphi 0, %s389
      %s391 = sphi 0, %s389
      %s392 = sphi 0, %s391
      %s406 = sphi 0, %s392
      %s410 = sphi 0, %s410
      %s412 = sphi 0, %s410
      %s413 = sphi 0, %s412
      %s427 = sphi 0, %s413
      %s431 = sphi 0, %s431
      %s433 = sphi 0, %s431
      %s434 = sphi 0, %s433
      %s448 = sphi 0, %s434
      %s454 = sphi 0, %s456
      %s457 = sphi 0, %s454
      %s458 = sphi 0, %s457
      %s474 = sphi 0, %s458
    $region4: #{tpu_custom_call.1} parent=1 // loop_header_branch
      %43 = sbr.rel (%p41) target = $region8
    $region5: #{tpu_custom_call.1} parent=1 // loop_body
      %s45 = ssub.s32 %s40, 1
      %s46 = ssub.s32 %s40, 2
      %s47 = sadd.s32 %s40, 1
      %s48 = ssub.s32 %s40, %s47
      %p49 = scmp.eq.s32.totalorder %s48, 0
      %s51 = sadd.s32 %s50, 1
      %s52 = scalar_select %p49, %s50, %s51
      %p55 = pneg %p49
      %p56 = scmp.eq.s32.totalorder %s40, 1
      %p57 = por %p55, %p56
      %p58 = scmp.ne.s32.totalorder %s50, %s53
      %p59 = scmp.eq.s32.totalorder %s40, 0
      %p60 = por %p58, %p59
      %p61 = scmp.ne.s32.totalorder %s50, %s53
      %p62 = scmp.eq.s32.totalorder %s45, 1
      %p63 = por %p61, %p62
      %p64 = scmp.ne.s32.totalorder %s53, %s54
      %p65 = scmp.eq.s32.totalorder %s45, 0
      %p66 = por %p64, %p65
      %p67 = scmp.ne.s32.totalorder %s53, %s54
      %p68 = scmp.eq.s32.totalorder %s46, 1
      %p69 = por %p67, %p68
      %p71 = scmp.ne.s32.totalorder %s54, %s70
      %p72 = scmp.eq.s32.totalorder %s46, 0
      %p73 = por %p71, %p72
      %s75 = sadd.s32 %s74, 1
      %p78 = scmp.eq.s32.totalorder %s40, 1
      %p79 = scmp.ne.s32.totalorder %s74, %s76
      %p80 = scmp.eq.s32.totalorder %s40, 0
      %p81 = por %p79, %p80
      %p82 = scmp.ne.s32.totalorder %s74, %s76
      %p83 = scmp.eq.s32.totalorder %s45, 1
      %p84 = por %p82, %p83
      %p85 = scmp.ne.s32.totalorder %s76, %s77
      %p86 = scmp.eq.s32.totalorder %s45, 0
      %p87 = por %p85, %p86
      %p88 = scmp.ne.s32.totalorder %s76, %s77
      %p89 = scmp.eq.s32.totalorder %s46, 1
      %p90 = por %p88, %p89
      %p92 = scmp.ne.s32.totalorder %s77, %s91
      %p93 = scmp.eq.s32.totalorder %s46, 0
      %p94 = por %p92, %p93
      %s96 = sadd.s32 %s95, 1
      %p99 = scmp.eq.s32.totalorder %s40, 1
      %p100 = scmp.ne.s32.totalorder %s95, %s97
      %p101 = scmp.eq.s32.totalorder %s40, 0
      %p102 = por %p100, %p101
      %p103 = scmp.ne.s32.totalorder %s95, %s97
      %p104 = scmp.eq.s32.totalorder %s45, 1
      %p105 = por %p103, %p104
      %p106 = scmp.ne.s32.totalorder %s97, %s98
      %p107 = scmp.eq.s32.totalorder %s45, 0
      %p108 = por %p106, %p107
      %p109 = scmp.ne.s32.totalorder %s97, %s98
      %p110 = scmp.eq.s32.totalorder %s46, 1
      %p111 = por %p109, %p110
      %p113 = scmp.ne.s32.totalorder %s98, %s112
      %p114 = scmp.eq.s32.totalorder %s46, 0
      %p115 = por %p113, %p114
      %s117 = sadd.s32 %s116, 1
      %p120 = scmp.eq.s32.totalorder %s40, 1
      %p121 = scmp.ne.s32.totalorder %s116, %s118
      %p122 = scmp.eq.s32.totalorder %s40, 0
      %p123 = por %p121, %p122
      %p124 = scmp.ne.s32.totalorder %s116, %s118
      %p125 = scmp.eq.s32.totalorder %s45, 1
      %p126 = por %p124, %p125
      %p127 = scmp.ne.s32.totalorder %s118, %s119
      %p128 = scmp.eq.s32.totalorder %s45, 0
      %p129 = por %p127, %p128
      %p130 = scmp.ne.s32.totalorder %s118, %s119
      %p131 = scmp.eq.s32.totalorder %s46, 1
      %p132 = por %p130, %p131
      %p134 = scmp.ne.s32.totalorder %s119, %s133
      %p135 = scmp.eq.s32.totalorder %s46, 0
      %p136 = por %p134, %p135
      %s138 = sadd.s32 %s137, 1
      %p141 = scmp.eq.s32.totalorder %s40, 1
      %p142 = scmp.ne.s32.totalorder %s137, %s139
      %p143 = scmp.eq.s32.totalorder %s40, 0
      %p144 = por %p142, %p143
      %p145 = scmp.ne.s32.totalorder %s137, %s139
      %p146 = scmp.eq.s32.totalorder %s45, 1
      %p147 = por %p145, %p146
      %p148 = scmp.ne.s32.totalorder %s139, %s140
      %p149 = scmp.eq.s32.totalorder %s45, 0
      %p150 = por %p148, %p149
      %p151 = scmp.ne.s32.totalorder %s139, %s140
      %p152 = scmp.eq.s32.totalorder %s46, 1
      %p153 = por %p151, %p152
      %p155 = scmp.ne.s32.totalorder %s140, %s154
      %p156 = scmp.eq.s32.totalorder %s46, 0
      %p157 = por %p155, %p156
      %s159 = sadd.s32 %s158, 1
      %p162 = scmp.eq.s32.totalorder %s40, 1
      %p163 = scmp.ne.s32.totalorder %s158, %s160
      %p164 = scmp.eq.s32.totalorder %s40, 0
      %p165 = por %p163, %p164
      %p166 = scmp.ne.s32.totalorder %s158, %s160
      %p167 = scmp.eq.s32.totalorder %s45, 1
      %p168 = por %p166, %p167
      %p169 = scmp.ne.s32.totalorder %s160, %s161
      %p170 = scmp.eq.s32.totalorder %s45, 0
      %p171 = por %p169, %p170
      %p172 = scmp.ne.s32.totalorder %s160, %s161
      %p173 = scmp.eq.s32.totalorder %s46, 1
      %p174 = por %p172, %p173
      %p176 = scmp.ne.s32.totalorder %s161, %s175
      %p177 = scmp.eq.s32.totalorder %s46, 0
      %p178 = por %p176, %p177
      %s180 = sadd.s32 %s179, 1
      %p183 = scmp.eq.s32.totalorder %s40, 1
      %p184 = scmp.ne.s32.totalorder %s179, %s181
      %p185 = scmp.eq.s32.totalorder %s40, 0
      %p186 = por %p184, %p185
      %p187 = scmp.ne.s32.totalorder %s179, %s181
      %p188 = scmp.eq.s32.totalorder %s45, 1
      %p189 = por %p187, %p188
      %p190 = scmp.ne.s32.totalorder %s181, %s182
      %p191 = scmp.eq.s32.totalorder %s45, 0
      %p192 = por %p190, %p191
      %p193 = scmp.ne.s32.totalorder %s181, %s182
      %p194 = scmp.eq.s32.totalorder %s46, 1
      %p195 = por %p193, %p194
      %p197 = scmp.ne.s32.totalorder %s182, %s196
      %p198 = scmp.eq.s32.totalorder %s46, 0
      %p199 = por %p197, %p198
      %s201 = sadd.s32 %s200, 1
      %p204 = scmp.eq.s32.totalorder %s40, 1
      %p205 = scmp.ne.s32.totalorder %s200, %s202
      %p206 = scmp.eq.s32.totalorder %s40, 0
      %p207 = por %p205, %p206
      %p208 = scmp.ne.s32.totalorder %s200, %s202
      %p209 = scmp.eq.s32.totalorder %s45, 1
      %p210 = por %p208, %p209
      %p211 = scmp.ne.s32.totalorder %s202, %s203
      %p212 = scmp.eq.s32.totalorder %s45, 0
      %p213 = por %p211, %p212
      %p214 = scmp.ne.s32.totalorder %s202, %s203
      %p215 = scmp.eq.s32.totalorder %s46, 1
      %p216 = por %p214, %p215
      %p218 = scmp.ne.s32.totalorder %s203, %s217
      %p219 = scmp.eq.s32.totalorder %s46, 0
      %p220 = por %p218, %p219
      %s222 = sadd.s32 %s221, 1
      %p225 = scmp.eq.s32.totalorder %s40, 1
      %p226 = scmp.ne.s32.totalorder %s221, %s223
      %p227 = scmp.eq.s32.totalorder %s40, 0
      %p228 = por %p226, %p227
      %p229 = scmp.ne.s32.totalorder %s221, %s223
      %p230 = scmp.eq.s32.totalorder %s45, 1
      %p231 = por %p229, %p230
      %p232 = scmp.ne.s32.totalorder %s223, %s224
      %p233 = scmp.eq.s32.totalorder %s45, 0
      %p234 = por %p232, %p233
      %p235 = scmp.ne.s32.totalorder %s223, %s224
      %p236 = scmp.eq.s32.totalorder %s46, 1
      %p237 = por %p235, %p236
      %p239 = scmp.ne.s32.totalorder %s224, %s238
      %p240 = scmp.eq.s32.totalorder %s46, 0
      %p241 = por %p239, %p240
      %s243 = sadd.s32 %s242, 1
      %p246 = scmp.eq.s32.totalorder %s40, 1
      %p247 = scmp.ne.s32.totalorder %s242, %s244
      %p248 = scmp.eq.s32.totalorder %s40, 0
      %p249 = por %p247, %p248
      %p250 = scmp.ne.s32.totalorder %s242, %s244
      %p251 = scmp.eq.s32.totalorder %s45, 1
      %p252 = por %p250, %p251
      %p253 = scmp.ne.s32.totalorder %s244, %s245
      %p254 = scmp.eq.s32.totalorder %s45, 0
      %p255 = por %p253, %p254
      %p256 = scmp.ne.s32.totalorder %s244, %s245
      %p257 = scmp.eq.s32.totalorder %s46, 1
      %p258 = por %p256, %p257
      %p260 = scmp.ne.s32.totalorder %s245, %s259
      %p261 = scmp.eq.s32.totalorder %s46, 0
      %p262 = por %p260, %p261
      %s264 = sadd.s32 %s263, 1
      %p267 = scmp.eq.s32.totalorder %s40, 1
      %p268 = scmp.ne.s32.totalorder %s263, %s265
      %p269 = scmp.eq.s32.totalorder %s40, 0
      %p270 = por %p268, %p269
      %p271 = scmp.ne.s32.totalorder %s263, %s265
      %p272 = scmp.eq.s32.totalorder %s45, 1
      %p273 = por %p271, %p272
      %p274 = scmp.ne.s32.totalorder %s265, %s266
      %p275 = scmp.eq.s32.totalorder %s45, 0
      %p276 = por %p274, %p275
      %p277 = scmp.ne.s32.totalorder %s265, %s266
      %p278 = scmp.eq.s32.totalorder %s46, 1
      %p279 = por %p277, %p278
      %p281 = scmp.ne.s32.totalorder %s266, %s280
      %p282 = scmp.eq.s32.totalorder %s46, 0
      %p283 = por %p281, %p282
      %s285 = sadd.s32 %s284, 1
      %p288 = scmp.eq.s32.totalorder %s40, 1
      %p289 = scmp.ne.s32.totalorder %s284, %s286
      %p290 = scmp.eq.s32.totalorder %s40, 0
      %p291 = por %p289, %p290
      %p292 = scmp.ne.s32.totalorder %s284, %s286
      %p293 = scmp.eq.s32.totalorder %s45, 1
      %p294 = por %p292, %p293
      %p295 = scmp.ne.s32.totalorder %s286, %s287
      %p296 = scmp.eq.s32.totalorder %s45, 0
      %p297 = por %p295, %p296
      %p298 = scmp.ne.s32.totalorder %s286, %s287
      %p299 = scmp.eq.s32.totalorder %s46, 1
      %p300 = por %p298, %p299
      %p302 = scmp.ne.s32.totalorder %s287, %s301
      %p303 = scmp.eq.s32.totalorder %s46, 0
      %p304 = por %p302, %p303
      %s306 = sadd.s32 %s305, 1
      %p309 = scmp.eq.s32.totalorder %s40, 1
      %p310 = scmp.ne.s32.totalorder %s305, %s307
      %p311 = scmp.eq.s32.totalorder %s40, 0
      %p312 = por %p310, %p311
      %p313 = scmp.ne.s32.totalorder %s305, %s307
      %p314 = scmp.eq.s32.totalorder %s45, 1
      %p315 = por %p313, %p314
      %p316 = scmp.ne.s32.totalorder %s307, %s308
      %p317 = scmp.eq.s32.totalorder %s45, 0
      %p318 = por %p316, %p317
      %p319 = scmp.ne.s32.totalorder %s307, %s308
      %p320 = scmp.eq.s32.totalorder %s46, 1
      %p321 = por %p319, %p320
      %p323 = scmp.ne.s32.totalorder %s308, %s322
      %p324 = scmp.eq.s32.totalorder %s46, 0
      %p325 = por %p323, %p324
      %s327 = sadd.s32 %s326, 1
      %p330 = scmp.eq.s32.totalorder %s40, 1
      %p331 = scmp.ne.s32.totalorder %s326, %s328
      %p332 = scmp.eq.s32.totalorder %s40, 0
      %p333 = por %p331, %p332
      %p334 = scmp.ne.s32.totalorder %s326, %s328
      %p335 = scmp.eq.s32.totalorder %s45, 1
      %p336 = por %p334, %p335
      %p337 = scmp.ne.s32.totalorder %s328, %s329
      %p338 = scmp.eq.s32.totalorder %s45, 0
      %p339 = por %p337, %p338
      %p340 = scmp.ne.s32.totalorder %s328, %s329
      %p341 = scmp.eq.s32.totalorder %s46, 1
      %p342 = por %p340, %p341
      %p344 = scmp.ne.s32.totalorder %s329, %s343
      %p345 = scmp.eq.s32.totalorder %s46, 0
      %p346 = por %p344, %p345
      %s348 = sadd.s32 %s347, 1
      %p351 = scmp.eq.s32.totalorder %s40, 1
      %p352 = scmp.ne.s32.totalorder %s347, %s349
      %p353 = scmp.eq.s32.totalorder %s40, 0
      %p354 = por %p352, %p353
      %p355 = scmp.ne.s32.totalorder %s347, %s349
      %p356 = scmp.eq.s32.totalorder %s45, 1
      %p357 = por %p355, %p356
      %p358 = scmp.ne.s32.totalorder %s349, %s350
      %p359 = scmp.eq.s32.totalorder %s45, 0
      %p360 = por %p358, %p359
      %p361 = scmp.ne.s32.totalorder %s349, %s350
      %p362 = scmp.eq.s32.totalorder %s46, 1
      %p363 = por %p361, %p362
      %p365 = scmp.ne.s32.totalorder %s350, %s364
      %p366 = scmp.eq.s32.totalorder %s46, 0
      %p367 = por %p365, %p366
      %s369 = sadd.s32 %s368, 1
      %p372 = scmp.eq.s32.totalorder %s40, 1
      %p373 = scmp.ne.s32.totalorder %s368, %s370
      %p374 = scmp.eq.s32.totalorder %s40, 0
      %p375 = por %p373, %p374
      %p376 = scmp.ne.s32.totalorder %s368, %s370
      %p377 = scmp.eq.s32.totalorder %s45, 1
      %p378 = por %p376, %p377
      %p379 = scmp.ne.s32.totalorder %s370, %s371
      %p380 = scmp.eq.s32.totalorder %s45, 0
      %p381 = por %p379, %p380
      %p382 = scmp.ne.s32.totalorder %s370, %s371
      %p383 = scmp.eq.s32.totalorder %s46, 1
      %p384 = por %p382, %p383
      %p386 = scmp.ne.s32.totalorder %s371, %s385
      %p387 = scmp.eq.s32.totalorder %s46, 0
      %p388 = por %p386, %p387
      %s390 = sadd.s32 %s389, 1
      %p393 = scmp.eq.s32.totalorder %s40, 1
      %p394 = scmp.ne.s32.totalorder %s389, %s391
      %p395 = scmp.eq.s32.totalorder %s40, 0
      %p396 = por %p394, %p395
      %p397 = scmp.ne.s32.totalorder %s389, %s391
      %p398 = scmp.eq.s32.totalorder %s45, 1
      %p399 = por %p397, %p398
      %p400 = scmp.ne.s32.totalorder %s391, %s392
      %p401 = scmp.eq.s32.totalorder %s45, 0
      %p402 = por %p400, %p401
      %p403 = scmp.ne.s32.totalorder %s391, %s392
      %p404 = scmp.eq.s32.totalorder %s46, 1
      %p405 = por %p403, %p404
      %p407 = scmp.ne.s32.totalorder %s392, %s406
      %p408 = scmp.eq.s32.totalorder %s46, 0
      %p409 = por %p407, %p408
      %s411 = sadd.s32 %s410, 1
      %p414 = scmp.eq.s32.totalorder %s40, 1
      %p415 = scmp.ne.s32.totalorder %s410, %s412
      %p416 = scmp.eq.s32.totalorder %s40, 0
      %p417 = por %p415, %p416
      %p418 = scmp.ne.s32.totalorder %s410, %s412
      %p419 = scmp.eq.s32.totalorder %s45, 1
      %p420 = por %p418, %p419
      %p421 = scmp.ne.s32.totalorder %s412, %s413
      %p422 = scmp.eq.s32.totalorder %s45, 0
      %p423 = por %p421, %p422
      %p424 = scmp.ne.s32.totalorder %s412, %s413
      %p425 = scmp.eq.s32.totalorder %s46, 1
      %p426 = por %p424, %p425
      %p428 = scmp.ne.s32.totalorder %s413, %s427
      %p429 = scmp.eq.s32.totalorder %s46, 0
      %p430 = por %p428, %p429
      %s432 = sadd.s32 %s431, 1
      %p435 = scmp.eq.s32.totalorder %s40, 1
      %p436 = scmp.ne.s32.totalorder %s431, %s433
      %p437 = scmp.eq.s32.totalorder %s40, 0
      %p438 = por %p436, %p437
      %p439 = scmp.ne.s32.totalorder %s431, %s433
      %p440 = scmp.eq.s32.totalorder %s45, 1
      %p441 = por %p439, %p440
      %p442 = scmp.ne.s32.totalorder %s433, %s434
      %p443 = scmp.eq.s32.totalorder %s45, 0
      %p444 = por %p442, %p443
      %p445 = scmp.ne.s32.totalorder %s433, %s434
      %p446 = scmp.eq.s32.totalorder %s46, 1
      %p447 = por %p445, %p446
      %p449 = scmp.ne.s32.totalorder %s434, %s448
      %p450 = scmp.eq.s32.totalorder %s46, 0
      %p451 = por %p449, %p450
      %s452 = ssub.s32 %s40, %s47
      %p453 = scmp.eq.s32.totalorder %s452, 0
      %s455 = sadd.s32 %s454, 1
      %s456 = scalar_select %p453, %s454, %s455
      %p459 = pneg %p453
      %p460 = scmp.eq.s32.totalorder %s40, 1
      %p461 = por %p459, %p460
      %p462 = scmp.ne.s32.totalorder %s454, %s457
      %p463 = scmp.eq.s32.totalorder %s40, 0
      %p464 = por %p462, %p463
      %p465 = scmp.ne.s32.totalorder %s454, %s457
      %p466 = scmp.eq.s32.totalorder %s45, 1
      %p467 = por %p465, %p466
      %p468 = scmp.ne.s32.totalorder %s457, %s458
      %p469 = scmp.eq.s32.totalorder %s45, 0
      %p470 = por %p468, %p469
      %p471 = scmp.ne.s32.totalorder %s457, %s458
      %p472 = scmp.eq.s32.totalorder %s46, 1
      %p473 = por %p471, %p472
      %p475 = scmp.ne.s32.totalorder %s458, %s474
      %p476 = scmp.eq.s32.totalorder %s46, 0
      %p477 = por %p475, %p476
      %p478 = scmp.le.s32.totalorder 1, %s40
      %p479 = scmp.lt.s32.totalorder %s40, 3
      %p480 = pnand %p478, %p479
      %p481 = pneg %p480
      // Predicated region
      $region9: #{tpu_custom_call.1} parent=5 // pred_check
        _
      $region10: #{tpu_custom_call.1} parent=5 // pred_check_branch
        %483 = sbr.rel (%p480) target = $region12
      $region11: #{tpu_custom_call.1} parent=5 // pred_region
        %s484 = ssub.s32 %s40, 1
        // Predicated region
        $region13: #{tpu_custom_call.1} parent=11 // pred_check
          %p485 = pneg %p87
        $region14: #{tpu_custom_call.1} parent=11 // pred_check_branch
          %487 = sbr.rel (%p485) target = $region16
        $region15: #{tpu_custom_call.1} parent=11 // pred_region
          %s489 = ssub.s32 384, 384
          %490 = vsyncadd [#allocation6], %s489
          %s491 = sshll.u32 [#allocation5], 4
          %s492 = int_to_ptr.vmem [resolvable:$true] %s491
          %497 = dma.hbm_to_vmem [thread:$0]  %s1, 384, %s492, [#allocation6], 128, 128, 8
        $region16: #{tpu_custom_call.1} parent=11 // pred_fallthru
          _
        // Predicated region
        $region17: #{tpu_custom_call.1} parent=11 // pred_check
          %p498 = pneg %p108
        $region18: #{tpu_custom_call.1} parent=11 // pred_check_branch
          %500 = sbr.rel (%p498) target = $region20
        $region19: #{tpu_custom_call.1} parent=11 // pred_region
          %s502 = ssub.s32 16, 16
          %503 = vsyncadd [#allocation6], %s502
          %s505 = sshll.u32 [#allocation7], 4
          %s506 = int_to_ptr.vmem [resolvable:$true] %s505
          %508 = dma.hbm_to_vmem [thread:$0]  %s2, 16, %s506, [#allocation6]
        $region20: #{tpu_custom_call.1} parent=11 // pred_fallthru
          _
        // Predicated region
        $region21: #{tpu_custom_call.1} parent=11 // pred_check
          %p509 = pneg %p129
        $region22: #{tpu_custom_call.1} parent=11 // pred_check_branch
          %511 = sbr.rel (%p509) target = $region24
        $region23: #{tpu_custom_call.1} parent=11 // pred_region
          %s513 = ssub.s32 384, 384
          %514 = vsyncadd [#allocation9], %s513
          %s515 = sshll.u32 [#allocation8], 4
          %s516 = int_to_ptr.vmem [resolvable:$true] %s515
          %521 = dma.hbm_to_vmem [thread:$0]  %s3, 384, %s516, [#allocation9], 128, 128, 8
        $region24: #{tpu_custom_call.1} parent=11 // pred_fallthru
          _
        // Predicated region
        $region25: #{tpu_custom_call.1} parent=11 // pred_check
          %p522 = pneg %p150
        $region26: #{tpu_custom_call.1} parent=11 // pred_check_branch
          %524 = sbr.rel (%p522) target = $region28
        $region27: #{tpu_custom_call.1} parent=11 // pred_region
          %s526 = ssub.s32 16, 16
          %527 = vsyncadd [#allocation9], %s526
          %s529 = sshll.u32 [#allocation10], 4
          %s530 = int_to_ptr.vmem [resolvable:$true] %s529
          %532 = dma.hbm_to_vmem [thread:$0]  %s4, 16, %s530, [#allocation9]
        $region28: #{tpu_custom_call.1} parent=11 // pred_fallthru
          _
        // Predicated region
        $region29: #{tpu_custom_call.1} parent=11 // pred_check
          %p533 = pneg %p171
        $region30: #{tpu_custom_call.1} parent=11 // pred_check_branch
          %535 = sbr.rel (%p533) target = $region32
        $region31: #{tpu_custom_call.1} parent=11 // pred_region
          %s537 = ssub.s32 384, 384
          %538 = vsyncadd [#allocation12], %s537
          %s539 = sshll.u32 [#allocation11], 4
          %s540 = int_to_ptr.vmem [resolvable:$true] %s539
          %545 = dma.hbm_to_vmem [thread:$0]  %s5, 384, %s540, [#allocation12], 128, 128, 8
        $region32: #{tpu_custom_call.1} parent=11 // pred_fallthru
          _
        // Predicated region
        $region33: #{tpu_custom_call.1} parent=11 // pred_check
          %p546 = pneg %p192
        $region34: #{tpu_custom_call.1} parent=11 // pred_check_branch
          %548 = sbr.rel (%p546) target = $region36
        $region35: #{tpu_custom_call.1} parent=11 // pred_region
          %s550 = ssub.s32 16, 16
          %551 = vsyncadd [#allocation12], %s550
          %s553 = sshll.u32 [#allocation13], 4
          %s554 = int_to_ptr.vmem [resolvable:$true] %s553
          %556 = dma.hbm_to_vmem [thread:$0]  %s6, 16, %s554, [#allocation12]
        $region36: #{tpu_custom_call.1} parent=11 // pred_fallthru
          _
        // Predicated region
        $region37: #{tpu_custom_call.1} parent=11 // pred_check
          %p557 = pneg %p213
        $region38: #{tpu_custom_call.1} parent=11 // pred_check_branch
          %559 = sbr.rel (%p557) target = $region40
        $region39: #{tpu_custom_call.1} parent=11 // pred_region
          %s561 = ssub.s32 768, 768
          %562 = vsyncadd [#allocation15], %s561
          %s563 = sshll.u32 [#allocation14], 4
          %s564 = int_to_ptr.vmem [resolvable:$true] %s563
          %569 = dma.hbm_to_vmem [thread:$0]  %s7, 768, %s564, [#allocation15], 128, 128, 8
        $region40: #{tpu_custom_call.1} parent=11 // pred_fallthru
          _
        // Predicated region
        $region41: #{tpu_custom_call.1} parent=11 // pred_check
          %p570 = pneg %p234
        $region42: #{tpu_custom_call.1} parent=11 // pred_check_branch
          %572 = sbr.rel (%p570) target = $region44
        $region43: #{tpu_custom_call.1} parent=11 // pred_region
          %s574 = ssub.s32 16, 16
          %575 = vsyncadd [#allocation15], %s574
          %s577 = sshll.u32 [#allocation16], 4
          %s578 = int_to_ptr.vmem [resolvable:$true] %s577
          %580 = dma.hbm_to_vmem [thread:$0]  %s8, 16, %s578, [#allocation15]
        $region44: #{tpu_custom_call.1} parent=11 // pred_fallthru
          _
        // Predicated region
        $region45: #{tpu_custom_call.1} parent=11 // pred_check
          %p581 = pneg %p255
        $region46: #{tpu_custom_call.1} parent=11 // pred_check_branch
          %583 = sbr.rel (%p581) target = $region48
        $region47: #{tpu_custom_call.1} parent=11 // pred_region
          %s585 = ssub.s32 128, 128
          %586 = vsyncadd [#allocation18], %s585
          %s588 = sshll.u32 [#allocation17], 4
          %s589 = int_to_ptr.vmem [resolvable:$true] %s588
          %591 = dma.hbm_to_vmem [thread:$0]  %s9, 128, %s589, [#allocation18]
        $region48: #{tpu_custom_call.1} parent=11 // pred_fallthru
          _
        // Predicated region
        $region49: #{tpu_custom_call.1} parent=11 // pred_check
          %p592 = pneg %p276
        $region50: #{tpu_custom_call.1} parent=11 // pred_check_branch
          %594 = sbr.rel (%p592) target = $region52
        $region51: #{tpu_custom_call.1} parent=11 // pred_region
          %s596 = ssub.s32 16, 16
          %597 = vsyncadd [#allocation18], %s596
          %s599 = sshll.u32 [#allocation19], 4
          %s600 = int_to_ptr.vmem [resolvable:$true] %s599
          %602 = dma.hbm_to_vmem [thread:$0]  %s10, 16, %s600, [#allocation18]
        $region52: #{tpu_custom_call.1} parent=11 // pred_fallthru
          _
        // Predicated region
        $region53: #{tpu_custom_call.1} parent=11 // pred_check
          %p603 = pneg %p297
        $region54: #{tpu_custom_call.1} parent=11 // pred_check_branch
          %605 = sbr.rel (%p603) target = $region56
        $region55: #{tpu_custom_call.1} parent=11 // pred_region
          %s607 = ssub.s32 768, 768
          %608 = vsyncadd [#allocation21], %s607
          %s609 = sshll.u32 [#allocation20], 4
          %s610 = int_to_ptr.vmem [resolvable:$true] %s609
          %615 = dma.hbm_to_vmem [thread:$0]  %s11, 768, %s610, [#allocation21], 128, 128, 8
        $region56: #{tpu_custom_call.1} parent=11 // pred_fallthru
          _
        // Predicated region
        $region57: #{tpu_custom_call.1} parent=11 // pred_check
          %p616 = pneg %p318
        $region58: #{tpu_custom_call.1} parent=11 // pred_check_branch
          %618 = sbr.rel (%p616) target = $region60
        $region59: #{tpu_custom_call.1} parent=11 // pred_region
          %s620 = ssub.s32 16, 16
          %621 = vsyncadd [#allocation21], %s620
          %s623 = sshll.u32 [#allocation22], 4
          %s624 = int_to_ptr.vmem [resolvable:$true] %s623
          %626 = dma.hbm_to_vmem [thread:$0]  %s12, 16, %s624, [#allocation21]
        $region60: #{tpu_custom_call.1} parent=11 // pred_fallthru
          _
        // Predicated region
        $region61: #{tpu_custom_call.1} parent=11 // pred_check
          %p627 = pneg %p339
        $region62: #{tpu_custom_call.1} parent=11 // pred_check_branch
          %629 = sbr.rel (%p627) target = $region64
        $region63: #{tpu_custom_call.1} parent=11 // pred_region
          %s631 = ssub.s32 384, 384
          %632 = vsyncadd [#allocation24], %s631
          %s633 = sshll.u32 [#allocation23], 4
          %s634 = int_to_ptr.vmem [resolvable:$true] %s633
          %639 = dma.hbm_to_vmem [thread:$0]  %s13, 384, %s634, [#allocation24], 128, 128, 8
        $region64: #{tpu_custom_call.1} parent=11 // pred_fallthru
          _
        // Predicated region
        $region65: #{tpu_custom_call.1} parent=11 // pred_check
          %p640 = pneg %p360
        $region66: #{tpu_custom_call.1} parent=11 // pred_check_branch
          %642 = sbr.rel (%p640) target = $region68
        $region67: #{tpu_custom_call.1} parent=11 // pred_region
          %s644 = ssub.s32 16, 16
          %645 = vsyncadd [#allocation24], %s644
          %s647 = sshll.u32 [#allocation25], 4
          %s648 = int_to_ptr.vmem [resolvable:$true] %s647
          %650 = dma.hbm_to_vmem [thread:$0]  %s14, 16, %s648, [#allocation24]
        $region68: #{tpu_custom_call.1} parent=11 // pred_fallthru
          _
        // Predicated region
        $region69: #{tpu_custom_call.1} parent=11 // pred_check
          %p651 = pneg %p381
        $region70: #{tpu_custom_call.1} parent=11 // pred_check_branch
          %653 = sbr.rel (%p651) target = $region72
        $region71: #{tpu_custom_call.1} parent=11 // pred_region
          %s655 = ssub.s32 256, 256
          %656 = vsyncadd [#allocation27], %s655
          %s657 = sshll.u32 [#allocation26], 4
          %s658 = int_to_ptr.vmem [resolvable:$true] %s657
          %663 = dma.hbm_to_vmem [thread:$0]  %s15, 256, %s658, [#allocation27], 128, 128, 8
        $region72: #{tpu_custom_call.1} parent=11 // pred_fallthru
          _
        // Predicated region
        $region73: #{tpu_custom_call.1} parent=11 // pred_check
          %p664 = pneg %p402
        $region74: #{tpu_custom_call.1} parent=11 // pred_check_branch
          %666 = sbr.rel (%p664) target = $region76
        $region75: #{tpu_custom_call.1} parent=11 // pred_region
          %s668 = ssub.s32 16, 16
          %669 = vsyncadd [#allocation27], %s668
          %s671 = sshll.u32 [#allocation28], 4
          %s672 = int_to_ptr.vmem [resolvable:$true] %s671
          %674 = dma.hbm_to_vmem [thread:$0]  %s16, 16, %s672, [#allocation27]
        $region76: #{tpu_custom_call.1} parent=11 // pred_fallthru
          _
        // Predicated region
        $region77: #{tpu_custom_call.1} parent=11 // pred_check
          %p675 = pneg %p423
        $region78: #{tpu_custom_call.1} parent=11 // pred_check_branch
          %677 = sbr.rel (%p675) target = $region80
        $region79: #{tpu_custom_call.1} parent=11 // pred_region
          %s679 = ssub.s32 16, 16
          %680 = vsyncadd [#allocation30], %s679
          %s682 = sshll.u32 [#allocation29], 4
          %s683 = int_to_ptr.vmem [resolvable:$true] %s682
          %685 = dma.hbm_to_vmem [thread:$0]  %s17, 16, %s683, [#allocation30]
        $region80: #{tpu_custom_call.1} parent=11 // pred_fallthru
          _
        // Predicated region
        $region81: #{tpu_custom_call.1} parent=11 // pred_check
          %p686 = pneg %p444
        $region82: #{tpu_custom_call.1} parent=11 // pred_check_branch
          %688 = sbr.rel (%p686) target = $region84
        $region83: #{tpu_custom_call.1} parent=11 // pred_region
          %s690 = ssub.s32 16, 16
          %691 = vsyncadd [#allocation30], %s690
          %s693 = sshll.u32 [#allocation31], 4
          %s694 = int_to_ptr.vmem [resolvable:$true] %s693
          %696 = dma.hbm_to_vmem [thread:$0]  %s18, 16, %s694, [#allocation30]
        $region84: #{tpu_custom_call.1} parent=11 // pred_fallthru
          _
      $region12: #{tpu_custom_call.1} parent=5 // pred_fallthru
        _
      %p697 = scmp.lt.s32.totalorder %s40, 2
      // Predicated region
      $region85: #{tpu_custom_call.1} parent=5 // pred_check
        %p698 = pneg %p697
      $region86: #{tpu_custom_call.1} parent=5 // pred_check_branch
        %700 = sbr.rel (%p698) target = $region88
      $region87: #{tpu_custom_call.1} parent=5 // pred_region
        // Predicated region
        $region89: #{tpu_custom_call.1} parent=87 // pred_check
          %p701 = pneg %p60
        $region90: #{tpu_custom_call.1} parent=87 // pred_check_branch
          %703 = sbr.rel (%p701) target = $region92
        $region91: #{tpu_custom_call.1} parent=87 // pred_region
          %s704 = sand.u32 %s50, 1
          %s705 = scalar_lea.sflag [#allocation3], %s704
          %s706 = sand.u32 %s50, 1
          %s707 = smul.addr %s706, 16
          %s708 = scalar_lea.vmem [#allocation2], %s707
          %s710 = ssub.s32 256, 256
          %711 = vsyncadd %s705, %s710
          %s712 = smul.addr %s40, 2
          %s713 = smul.addr %s712, 128
          %s714 = scalar_lea.hbm %s0, %s713
          %s715 = sshll.u32 %s708, 4
          %s716 = int_to_ptr.vmem [resolvable:$true] %s715
          %721 = dma.hbm_to_vmem [thread:$0]  %s714, 256, %s716, %s705, 128, 128, 8
        $region92: #{tpu_custom_call.1} parent=87 // pred_fallthru
          _
      $region88: #{tpu_custom_call.1} parent=5 // pred_fallthru
        _
      %p722 = scmp.le.s32.totalorder 1, %s40
      %p723 = scmp.lt.s32.totalorder %s40, 3
      %p724 = pnand %p722, %p723
      %p725 = pneg %p724
      // Predicated region
      $region93: #{tpu_custom_call.1} parent=5 // pred_check
        _
      $region94: #{tpu_custom_call.1} parent=5 // pred_check_branch
        %727 = sbr.rel (%p724) target = $region96
      $region95: #{tpu_custom_call.1} parent=5 // pred_region
        %s728 = ssub.s32 %s40, 1
        %s729 = sand.u32 %s53, 1
        %s730 = scalar_lea.sflag [#allocation3], %s729
        %s731 = sand.u32 %s53, 1
        %s732 = smul.addr %s731, 16
        %s733 = scalar_lea.vmem [#allocation2], %s732
        // Predicated region
        $region97: #{tpu_custom_call.1} parent=95 // pred_check
          %p734 = pneg %p66
        $region98: #{tpu_custom_call.1} parent=95 // pred_check_branch
          %736 = sbr.rel (%p734) target = $region100
        $region99: #{tpu_custom_call.1} parent=95 // pred_region
          %737 = dma.done %s730, 256
        $region100: #{tpu_custom_call.1} parent=95 // pred_fallthru
          _
        // Predicated region
        $region101: #{tpu_custom_call.1} parent=95 // pred_check
          %p738 = pneg %p87
        $region102: #{tpu_custom_call.1} parent=95 // pred_check_branch
          %740 = sbr.rel (%p738) target = $region104
        $region103: #{tpu_custom_call.1} parent=95 // pred_region
          %741 = dma.done [#allocation6], 384
        $region104: #{tpu_custom_call.1} parent=95 // pred_fallthru
          _
        // Predicated region
        $region105: #{tpu_custom_call.1} parent=95 // pred_check
          %p742 = pneg %p108
        $region106: #{tpu_custom_call.1} parent=95 // pred_check_branch
          %744 = sbr.rel (%p742) target = $region108
        $region107: #{tpu_custom_call.1} parent=95 // pred_region
          %745 = dma.done [#allocation6], 16
        $region108: #{tpu_custom_call.1} parent=95 // pred_fallthru
          _
        // Predicated region
        $region109: #{tpu_custom_call.1} parent=95 // pred_check
          %p746 = pneg %p129
        $region110: #{tpu_custom_call.1} parent=95 // pred_check_branch
          %748 = sbr.rel (%p746) target = $region112
        $region111: #{tpu_custom_call.1} parent=95 // pred_region
          %749 = dma.done [#allocation9], 384
        $region112: #{tpu_custom_call.1} parent=95 // pred_fallthru
          _
        // Predicated region
        $region113: #{tpu_custom_call.1} parent=95 // pred_check
          %p750 = pneg %p150
        $region114: #{tpu_custom_call.1} parent=95 // pred_check_branch
          %752 = sbr.rel (%p750) target = $region116
        $region115: #{tpu_custom_call.1} parent=95 // pred_region
          %753 = dma.done [#allocation9], 16
        $region116: #{tpu_custom_call.1} parent=95 // pred_fallthru
          _
        // Predicated region
        $region117: #{tpu_custom_call.1} parent=95 // pred_check
          %p754 = pneg %p171
        $region118: #{tpu_custom_call.1} parent=95 // pred_check_branch
          %756 = sbr.rel (%p754) target = $region120
        $region119: #{tpu_custom_call.1} parent=95 // pred_region
          %757 = dma.done [#allocation12], 384
        $region120: #{tpu_custom_call.1} parent=95 // pred_fallthru
          _
        // Predicated region
        $region121: #{tpu_custom_call.1} parent=95 // pred_check
          %p758 = pneg %p192
        $region122: #{tpu_custom_call.1} parent=95 // pred_check_branch
          %760 = sbr.rel (%p758) target = $region124
        $region123: #{tpu_custom_call.1} parent=95 // pred_region
          %761 = dma.done [#allocation12], 16
        $region124: #{tpu_custom_call.1} parent=95 // pred_fallthru
          _
        // Predicated region
        $region125: #{tpu_custom_call.1} parent=95 // pred_check
          %p762 = pneg %p213
        $region126: #{tpu_custom_call.1} parent=95 // pred_check_branch
          %764 = sbr.rel (%p762) target = $region128
        $region127: #{tpu_custom_call.1} parent=95 // pred_region
          %765 = dma.done [#allocation15], 768
        $region128: #{tpu_custom_call.1} parent=95 // pred_fallthru
          _
        // Predicated region
        $region129: #{tpu_custom_call.1} parent=95 // pred_check
          %p766 = pneg %p234
        $region130: #{tpu_custom_call.1} parent=95 // pred_check_branch
          %768 = sbr.rel (%p766) target = $region132
        $region131: #{tpu_custom_call.1} parent=95 // pred_region
          %769 = dma.done [#allocation15], 16
        $region132: #{tpu_custom_call.1} parent=95 // pred_fallthru
          _
        // Predicated region
        $region133: #{tpu_custom_call.1} parent=95 // pred_check
          %p770 = pneg %p255
        $region134: #{tpu_custom_call.1} parent=95 // pred_check_branch
          %772 = sbr.rel (%p770) target = $region136
        $region135: #{tpu_custom_call.1} parent=95 // pred_region
          %773 = dma.done [#allocation18], 128
        $region136: #{tpu_custom_call.1} parent=95 // pred_fallthru
          _
        // Predicated region
        $region137: #{tpu_custom_call.1} parent=95 // pred_check
          %p774 = pneg %p276
        $region138: #{tpu_custom_call.1} parent=95 // pred_check_branch
          %776 = sbr.rel (%p774) target = $region140
        $region139: #{tpu_custom_call.1} parent=95 // pred_region
          %777 = dma.done [#allocation18], 16
        $region140: #{tpu_custom_call.1} parent=95 // pred_fallthru
          _
        // Predicated region
        $region141: #{tpu_custom_call.1} parent=95 // pred_check
          %p778 = pneg %p297
        $region142: #{tpu_custom_call.1} parent=95 // pred_check_branch
          %780 = sbr.rel (%p778) target = $region144
        $region143: #{tpu_custom_call.1} parent=95 // pred_region
          %781 = dma.done [#allocation21], 768
        $region144: #{tpu_custom_call.1} parent=95 // pred_fallthru
          _
        // Predicated region
        $region145: #{tpu_custom_call.1} parent=95 // pred_check
          %p782 = pneg %p318
        $region146: #{tpu_custom_call.1} parent=95 // pred_check_branch
          %784 = sbr.rel (%p782) target = $region148
        $region147: #{tpu_custom_call.1} parent=95 // pred_region
          %785 = dma.done [#allocation21], 16
        $region148: #{tpu_custom_call.1} parent=95 // pred_fallthru
          _
        // Predicated region
        $region149: #{tpu_custom_call.1} parent=95 // pred_check
          %p786 = pneg %p339
        $region150: #{tpu_custom_call.1} parent=95 // pred_check_branch
          %788 = sbr.rel (%p786) target = $region152
        $region151: #{tpu_custom_call.1} parent=95 // pred_region
          %789 = dma.done [#allocation24], 384
        $region152: #{tpu_custom_call.1} parent=95 // pred_fallthru
          _
        // Predicated region
        $region153: #{tpu_custom_call.1} parent=95 // pred_check
          %p790 = pneg %p360
        $region154: #{tpu_custom_call.1} parent=95 // pred_check_branch
          %792 = sbr.rel (%p790) target = $region156
        $region155: #{tpu_custom_call.1} parent=95 // pred_region
          %793 = dma.done [#allocation24], 16
        $region156: #{tpu_custom_call.1} parent=95 // pred_fallthru
          _
        // Predicated region
        $region157: #{tpu_custom_call.1} parent=95 // pred_check
          %p794 = pneg %p381
        $region158: #{tpu_custom_call.1} parent=95 // pred_check_branch
          %796 = sbr.rel (%p794) target = $region160
        $region159: #{tpu_custom_call.1} parent=95 // pred_region
          %797 = dma.done [#allocation27], 256
        $region160: #{tpu_custom_call.1} parent=95 // pred_fallthru
          _
        // Predicated region
        $region161: #{tpu_custom_call.1} parent=95 // pred_check
          %p798 = pneg %p402
        $region162: #{tpu_custom_call.1} parent=95 // pred_check_branch
          %800 = sbr.rel (%p798) target = $region164
        $region163: #{tpu_custom_call.1} parent=95 // pred_region
          %801 = dma.done [#allocation27], 16
        $region164: #{tpu_custom_call.1} parent=95 // pred_fallthru
          _
        // Predicated region
        $region165: #{tpu_custom_call.1} parent=95 // pred_check
          %p802 = pneg %p423
        $region166: #{tpu_custom_call.1} parent=95 // pred_check_branch
          %804 = sbr.rel (%p802) target = $region168
        $region167: #{tpu_custom_call.1} parent=95 // pred_region
          %805 = dma.done [#allocation30], 16
        $region168: #{tpu_custom_call.1} parent=95 // pred_fallthru
          _
        // Predicated region
        $region169: #{tpu_custom_call.1} parent=95 // pred_check
          %p806 = pneg %p444
        $region170: #{tpu_custom_call.1} parent=95 // pred_check_branch
          %808 = sbr.rel (%p806) target = $region172
        $region171: #{tpu_custom_call.1} parent=95 // pred_region
          %809 = dma.done [#allocation30], 16
        $region172: #{tpu_custom_call.1} parent=95 // pred_fallthru
          _
        %s810 = sand.u32 %s53, 1
        %s811 = scalar_lea.sflag [#allocation3], %s810
        %s812 = sand.u32 %s53, 1
        %s813 = smul.addr %s812, 16
        %s814 = scalar_lea.vmem [#allocation2], %s813
        %p815 = pneg %p66
        %p816 = pneg %p63
        %p817 = pneg %p87
        %p818 = pneg %p84
        %p819 = pneg %p108
        %p820 = pneg %p105
        %p821 = pneg %p129
        %p822 = pneg %p126
        %p823 = pneg %p150
        %p824 = pneg %p147
        %p825 = pneg %p171
        %p826 = pneg %p168
        %p827 = pneg %p192
        %p828 = pneg %p189
        %p829 = pneg %p213
        %p830 = pneg %p210
        %p831 = pneg %p234
        %p832 = pneg %p231
        %p833 = pneg %p255
        %p834 = pneg %p252
        %p835 = pneg %p276
        %p836 = pneg %p273
        %p837 = pneg %p297
        %p838 = pneg %p294
        %p839 = pneg %p318
        %p840 = pneg %p315
        %p841 = pneg %p339
        %p842 = pneg %p336
        %p843 = pneg %p360
        %p844 = pneg %p357
        %p845 = pneg %p381
        %p846 = pneg %p378
        %p847 = pneg %p402
        %p848 = pneg %p399
        %p849 = pneg %p423
        %p850 = pneg %p420
        %p851 = pneg %p444
        %p852 = pneg %p441
        %p853 = pneg %p470
        %p854 = pneg %p467
        %s855 = sand.u32 %s457, 1
        %s856 = scalar_lea.sflag [#allocation4], %s855
        %s857 = sand.u32 %s457, 1
        %s858 = smul.addr %s857, 16
        %s859 = scalar_lea.vmem [#allocation32], %s858
        %v860 = vld [vmem:[%s733] sm:$0xff]
        %v861 = vld [vmem:[%s733 + $0x8] sm:$0xff]
        %v862 = vld [vmem:[#allocation7] sm:$0x1]
        %v864 = vlaneseq
        %v865 = vshrl.u32 %v864, 7
        %v866 = vsub.s32 0, %v865
        %v867 = vrot.slane %v862, %v866
        %v869 = vadd.f32 %v867, 0.0
        %v870 = vlaneseq
        %v871 = vshrl.u32 %v870, 7
        %v872 = vadd.s32 %v871, 8
        %v873 = vrot.slane %v860, 6
        %v874 = vrot.slane %v861, 6
        %vm875 = vcmp.lt.s32.totalorder %v871, 2
        %v876 = vsel %vm875, %v873, %v874
        %v877 = vsel %vm875, %v874, %v873
        %vm878 = vcmp.ge.s32.totalorder %v871, 2
        %vm879 = vcmp.ge.s32.totalorder %v872, 2
        %v880 = vsel %vm878, %v877, 0.0
        %v881 = vsel %vm879, %v876, 0.0
        %v882 = vld [vmem:[#allocation5] sm:$0xff]
        %vm883 = vcmask 64512
        %v885 = vsel %vm883, %v880, 0
        %v888 = vsel %vm883, %v881, 0
        %890 = vmatprep.subr.mxu0 0.0
        %891 = vmatpush1.msra.mxu0 %v882
        %892 = vmatprep.subr.mxu0 0.0
        %893 = vmatpush1.msra.mxu0 0.0
        %894 = vmatprep.subr.mxu0 0.0
        %895 = vmatpush1.msra.mxu0 0.0
        %896 = vmatprep.subr.mxu0 0.0
        %897 = vmatpush1.msra.mxu0 0.0
        %898 = vmatprep.subr.mxu0 0.0
        %899 = vmatpush1.msra.mxu0 0.0
        %900 = vmatprep.subr.mxu0 0.0
        %901 = vmatpush1.msra.mxu0 0.0
        %902 = vmatprep.subr.mxu0 0.0
        %903 = vmatpush1.msra.mxu0 0.0
        %904 = vmatprep.subr.mxu0 0.0
        %905 = vmatpush1.msra.mxu0 0.0
        %906 = vmatprep.subr.mxu0 0.0
        %907 = vmatpush1.msra.mxu0 0.0
        %908 = vmatprep.subr.mxu0 0.0
        %909 = vmatpush1.msra.mxu0 0.0
        %910 = vmatprep.subr.mxu0 0.0
        %911 = vmatpush1.msra.mxu0 0.0
        %912 = vmatprep.subr.mxu0 0.0
        %913 = vmatpush1.msra.mxu0 0.0
        %914 = vmatprep.subr.mxu0 0.0
        %915 = vmatpush1.msra.mxu0 0.0
        %916 = vmatprep.subr.mxu0 0.0
        %917 = vmatpush1.msra.mxu0 0.0
        %918 = vmatprep.subr.mxu0 0.0
        %919 = vmatpush1.msra.mxu0 0.0
        %920 = vmatprep.subr.mxu0 0.0
        %921 = vmatpush1.msra.mxu0 0.0
        %922 = vmatprep.subr.mxu0 0.0
        %923 = vmatpush1.msra.mxu0 0.0
        %924 = vmatprep.subr.mxu0 0.0
        %925 = vmatpush1.msra.mxu0 0.0
        %926 = vmatprep.subr.mxu0 0.0
        %927 = vmatpush1.msra.mxu0 0.0
        %928 = vmatprep.subr.mxu0 0.0
        %929 = vmatpush1.msra.mxu0 0.0
        %930 = vmatprep.subr.mxu0 0.0
        %931 = vmatpush1.msra.mxu0 0.0
        %932 = vmatprep.subr.mxu0 0.0
        %933 = vmatpush1.msra.mxu0 0.0
        %934 = vmatprep.subr.mxu0 0.0
        %935 = vmatpush1.msra.mxu0 0.0
        %936 = vmatprep.subr.mxu0 0.0
        %937 = vmatpush1.msra.mxu0 0.0
        %938 = vmatprep.subr.mxu0 0.0
        %939 = vmatpush1.msra.mxu0 0.0
        %940 = vmatprep.subr.mxu0 0.0
        %941 = vmatpush1.msra.mxu0 0.0
        %942 = vmatprep.subr.mxu0 0.0
        %943 = vmatpush1.msra.mxu0 0.0
        %944 = vmatprep.subr.mxu0 0.0
        %945 = vmatpush1.msra.mxu0 0.0
        %946 = vmatprep.subr.mxu0 0.0
        %947 = vmatpush1.msra.mxu0 0.0
        %948 = vmatprep.subr.mxu0 0.0
        %949 = vmatpush1.msra.mxu0 0.0
        %950 = vmatprep.subr.mxu0 0.0
        %951 = vmatpush1.msra.mxu0 0.0
        %952 = vmatprep.subr.mxu0 0.0
        %953 = vmatpush1.msra.mxu0 0.0
        %954 = vmatprep.mubr.f32.mxu0 0.0
        %955 = vmatmul.mubr.f32.gmra.mrb[0].mxu0 %v885
        %v956 = vpop.f32.mrb[0].mxu0
        %v957 = vadd.f32 0.0, %v956
        %v958 = vpop.f32.mrb[0].mxu0
        %959 = vmatprep.mubr.f32.mxu0 0.0
        %960 = vmatmul.mubr.f32.gmra.mrb[0].mxu0 %v888
        %v961 = vpop.f32.mrb[0].mxu0
        %v962 = vadd.f32 0.0, %v961
        %v963 = vpop.f32.mrb[0].mxu0
        %964 = vdwg.mxu0
        %v965 = vadd.f32 %v869, %v957
        %v966 = vadd.f32 %v869, %v962
        %v967 = vrot.slane %v860, 7
        %v968 = vrot.slane %v861, 7
        %vm969 = vcmp.lt.s32.totalorder %v871, 1
        %v970 = vsel %vm969, %v967, %v968
        %v971 = vsel %vm969, %v968, %v967
        %vm972 = vcmp.ge.s32.totalorder %v871, 1
        %vm973 = vcmp.ge.s32.totalorder %v872, 1
        %v974 = vsel %vm972, %v971, 0.0
        %v975 = vsel %vm973, %v970, 0.0
        %s976 = scalar_lea.vmem [#allocation5], 8
        %v977 = vld [vmem:[%s976] sm:$0xff]
        %v979 = vsel %vm883, %v974, 0
        %v982 = vsel %vm883, %v975, 0
        %984 = vmatprep.subr.mxu0 0.0
        %985 = vmatpush1.msra.mxu0 %v977
        %986 = vmatprep.subr.mxu0 0.0
        %987 = vmatpush1.msra.mxu0 0.0
        %988 = vmatprep.subr.mxu0 0.0
        %989 = vmatpush1.msra.mxu0 0.0
        %990 = vmatprep.subr.mxu0 0.0
        %991 = vmatpush1.msra.mxu0 0.0
        %992 = vmatprep.subr.mxu0 0.0
        %993 = vmatpush1.msra.mxu0 0.0
        %994 = vmatprep.subr.mxu0 0.0
        %995 = vmatpush1.msra.mxu0 0.0
        %996 = vmatprep.subr.mxu0 0.0
        %997 = vmatpush1.msra.mxu0 0.0
        %998 = vmatprep.subr.mxu0 0.0
        %999 = vmatpush1.msra.mxu0 0.0
        %1000 = vmatprep.subr.mxu0 0.0
        %1001 = vmatpush1.msra.mxu0 0.0
        %1002 = vmatprep.subr.mxu0 0.0
        %1003 = vmatpush1.msra.mxu0 0.0
        %1004 = vmatprep.subr.mxu0 0.0
        %1005 = vmatpush1.msra.mxu0 0.0
        %1006 = vmatprep.subr.mxu0 0.0
        %1007 = vmatpush1.msra.mxu0 0.0
        %1008 = vmatprep.subr.mxu0 0.0
        %1009 = vmatpush1.msra.mxu0 0.0
        %1010 = vmatprep.subr.mxu0 0.0
        %1011 = vmatpush1.msra.mxu0 0.0
        %1012 = vmatprep.subr.mxu0 0.0
        %1013 = vmatpush1.msra.mxu0 0.0
        %1014 = vmatprep.subr.mxu0 0.0
        %1015 = vmatpush1.msra.mxu0 0.0
        %1016 = vmatprep.subr.mxu0 0.0
        %1017 = vmatpush1.msra.mxu0 0.0
        %1018 = vmatprep.subr.mxu0 0.0
        %1019 = vmatpush1.msra.mxu0 0.0
        %1020 = vmatprep.subr.mxu0 0.0
        %1021 = vmatpush1.msra.mxu0 0.0
        %1022 = vmatprep.subr.mxu0 0.0
        %1023 = vmatpush1.msra.mxu0 0.0
        %1024 = vmatprep.subr.mxu0 0.0
        %1025 = vmatpush1.msra.mxu0 0.0
        %1026 = vmatprep.subr.mxu0 0.0
        %1027 = vmatpush1.msra.mxu0 0.0
        %1028 = vmatprep.subr.mxu0 0.0
        %1029 = vmatpush1.msra.mxu0 0.0
        %1030 = vmatprep.subr.mxu0 0.0
        %1031 = vmatpush1.msra.mxu0 0.0
        %1032 = vmatprep.subr.mxu0 0.0
        %1033 = vmatpush1.msra.mxu0 0.0
        %1034 = vmatprep.subr.mxu0 0.0
        %1035 = vmatpush1.msra.mxu0 0.0
        %1036 = vmatprep.subr.mxu0 0.0
        %1037 = vmatpush1.msra.mxu0 0.0
        %1038 = vmatprep.subr.mxu0 0.0
        %1039 = vmatpush1.msra.mxu0 0.0
        %1040 = vmatprep.subr.mxu0 0.0
        %1041 = vmatpush1.msra.mxu0 0.0
        %1042 = vmatprep.subr.mxu0 0.0
        %1043 = vmatpush1.msra.mxu0 0.0
        %1044 = vmatprep.subr.mxu0 0.0
        %1045 = vmatpush1.msra.mxu0 0.0
        %1046 = vmatprep.subr.mxu0 0.0
        %1047 = vmatpush1.msra.mxu0 0.0
        %1048 = vmatprep.mubr.f32.mxu0 0.0
        %1049 = vmatmul.mubr.f32.gmra.mrb[0].mxu0 %v979
        %v1050 = vpop.f32.mrb[0].mxu0
        %v1051 = vadd.f32 0.0, %v1050
        %v1052 = vpop.f32.mrb[0].mxu0
        %1053 = vmatprep.mubr.f32.mxu0 0.0
        %1054 = vmatmul.mubr.f32.gmra.mrb[0].mxu0 %v982
        %v1055 = vpop.f32.mrb[0].mxu0
        %v1056 = vadd.f32 0.0, %v1055
        %v1057 = vpop.f32.mrb[0].mxu0
        %1058 = vdwg.mxu0
        %v1059 = vadd.f32 %v965, %v1051
        %v1060 = vadd.f32 %v966, %v1056
        %s1061 = scalar_lea.vmem [#allocation5], 16
        %v1062 = vld [vmem:[%s1061] sm:$0xff]
        %v1064 = vsel %vm883, %v860, 0
        %v1067 = vsel %vm883, %v861, 0
        %1069 = vmatprep.subr.mxu0 0.0
        %1070 = vmatpush1.msra.mxu0 %v1062
        %1071 = vmatprep.subr.mxu0 0.0
        %1072 = vmatpush1.msra.mxu0 0.0
        %1073 = vmatprep.subr.mxu0 0.0
        %1074 = vmatpush1.msra.mxu0 0.0
        %1075 = vmatprep.subr.mxu0 0.0
        %1076 = vmatpush1.msra.mxu0 0.0
        %1077 = vmatprep.subr.mxu0 0.0
        %1078 = vmatpush1.msra.mxu0 0.0
        %1079 = vmatprep.subr.mxu0 0.0
        %1080 = vmatpush1.msra.mxu0 0.0
        %1081 = vmatprep.subr.mxu0 0.0
        %1082 = vmatpush1.msra.mxu0 0.0
        %1083 = vmatprep.subr.mxu0 0.0
        %1084 = vmatpush1.msra.mxu0 0.0
        %1085 = vmatprep.subr.mxu0 0.0
        %1086 = vmatpush1.msra.mxu0 0.0
        %1087 = vmatprep.subr.mxu0 0.0
        %1088 = vmatpush1.msra.mxu0 0.0
        %1089 = vmatprep.subr.mxu0 0.0
        %1090 = vmatpush1.msra.mxu0 0.0
        %1091 = vmatprep.subr.mxu0 0.0
        %1092 = vmatpush1.msra.mxu0 0.0
        %1093 = vmatprep.subr.mxu0 0.0
        %1094 = vmatpush1.msra.mxu0 0.0
        %1095 = vmatprep.subr.mxu0 0.0
        %1096 = vmatpush1.msra.mxu0 0.0
        %1097 = vmatprep.subr.mxu0 0.0
        %1098 = vmatpush1.msra.mxu0 0.0
        %1099 = vmatprep.subr.mxu0 0.0
        %1100 = vmatpush1.msra.mxu0 0.0
        %1101 = vmatprep.subr.mxu0 0.0
        %1102 = vmatpush1.msra.mxu0 0.0
        %1103 = vmatprep.subr.mxu0 0.0
        %1104 = vmatpush1.msra.mxu0 0.0
        %1105 = vmatprep.subr.mxu0 0.0
        %1106 = vmatpush1.msra.mxu0 0.0
        %1107 = vmatprep.subr.mxu0 0.0
        %1108 = vmatpush1.msra.mxu0 0.0
        %1109 = vmatprep.subr.mxu0 0.0
        %1110 = vmatpush1.msra.mxu0 0.0
        %1111 = vmatprep.subr.mxu0 0.0
        %1112 = vmatpush1.msra.mxu0 0.0
        %1113 = vmatprep.subr.mxu0 0.0
        %1114 = vmatpush1.msra.mxu0 0.0
        %1115 = vmatprep.subr.mxu0 0.0
        %1116 = vmatpush1.msra.mxu0 0.0
        %1117 = vmatprep.subr.mxu0 0.0
        %1118 = vmatpush1.msra.mxu0 0.0
        %1119 = vmatprep.subr.mxu0 0.0
        %1120 = vmatpush1.msra.mxu0 0.0
        %1121 = vmatprep.subr.mxu0 0.0
        %1122 = vmatpush1.msra.mxu0 0.0
        %1123 = vmatprep.subr.mxu0 0.0
        %1124 = vmatpush1.msra.mxu0 0.0
        %1125 = vmatprep.subr.mxu0 0.0
        %1126 = vmatpush1.msra.mxu0 0.0
        %1127 = vmatprep.subr.mxu0 0.0
        %1128 = vmatpush1.msra.mxu0 0.0
        %1129 = vmatprep.subr.mxu0 0.0
        %1130 = vmatpush1.msra.mxu0 0.0
        %1131 = vmatprep.subr.mxu0 0.0
        %1132 = vmatpush1.msra.mxu0 0.0
        %1133 = vmatprep.mubr.f32.mxu0 0.0
        %1134 = vmatmul.mubr.f32.gmra.mrb[0].mxu0 %v1064
        %v1135 = vpop.f32.mrb[0].mxu0
        %v1136 = vadd.f32 0.0, %v1135
        %v1137 = vpop.f32.mrb[0].mxu0
        %1138 = vmatprep.mubr.f32.mxu0 0.0
        %1139 = vmatmul.mubr.f32.gmra.mrb[0].mxu0 %v1067
        %v1140 = vpop.f32.mrb[0].mxu0
        %v1141 = vadd.f32 0.0, %v1140
        %v1142 = vpop.f32.mrb[0].mxu0
        %1143 = vdwg.mxu0
        %v1144 = vadd.f32 %v1059, %v1136
        %v1145 = vadd.f32 %v1060, %v1141
        %v1146 = vmax.f32 %v1144, 0.0
        %v1147 = vmax.f32 %v1145, 0.0
        %v1148 = vld [vmem:[#allocation10] sm:$0x1]
        %v1150 = vlaneseq
        %v1151 = vshrl.u32 %v1150, 7
        %v1152 = vsub.s32 0, %v1151
        %v1153 = vrot.slane %v1148, %v1152
        %v1155 = vadd.f32 %v1153, 0.0
        %v1156 = vrot.slane %v1146, 6
        %v1157 = vrot.slane %v1147, 6
        %v1158 = vsel %vm875, %v1156, %v1157
        %v1159 = vsel %vm875, %v1157, %v1156
        %v1160 = vsel %vm878, %v1159, 0.0
        %v1161 = vsel %vm879, %v1158, 0.0
        %v1162 = vld [vmem:[#allocation8] sm:$0xff]
        %v1164 = vsel %vm883, %v1160, 0
        %v1167 = vsel %vm883, %v1161, 0
        %1169 = vmatprep.subr.mxu0 0.0
        %1170 = vmatpush1.msra.mxu0 %v1162
        %1171 = vmatprep.subr.mxu0 0.0
        %1172 = vmatpush1.msra.mxu0 0.0
        %1173 = vmatprep.subr.mxu0 0.0
        %1174 = vmatpush1.msra.mxu0 0.0
        %1175 = vmatprep.subr.mxu0 0.0
        %1176 = vmatpush1.msra.mxu0 0.0
        %1177 = vmatprep.subr.mxu0 0.0
        %1178 = vmatpush1.msra.mxu0 0.0
        %1179 = vmatprep.subr.mxu0 0.0
        %1180 = vmatpush1.msra.mxu0 0.0
        %1181 = vmatprep.subr.mxu0 0.0
        %1182 = vmatpush1.msra.mxu0 0.0
        %1183 = vmatprep.subr.mxu0 0.0
        %1184 = vmatpush1.msra.mxu0 0.0
        %1185 = vmatprep.subr.mxu0 0.0
        %1186 = vmatpush1.msra.mxu0 0.0
        %1187 = vmatprep.subr.mxu0 0.0
        %1188 = vmatpush1.msra.mxu0 0.0
        %1189 = vmatprep.subr.mxu0 0.0
        %1190 = vmatpush1.msra.mxu0 0.0
        %1191 = vmatprep.subr.mxu0 0.0
        %1192 = vmatpush1.msra.mxu0 0.0
        %1193 = vmatprep.subr.mxu0 0.0
        %1194 = vmatpush1.msra.mxu0 0.0
        %1195 = vmatprep.subr.mxu0 0.0
        %1196 = vmatpush1.msra.mxu0 0.0
        %1197 = vmatprep.subr.mxu0 0.0
        %1198 = vmatpush1.msra.mxu0 0.0
        %1199 = vmatprep.subr.mxu0 0.0
        %1200 = vmatpush1.msra.mxu0 0.0
        %1201 = vmatprep.subr.mxu0 0.0
        %1202 = vmatpush1.msra.mxu0 0.0
        %1203 = vmatprep.subr.mxu0 0.0
        %1204 = vmatpush1.msra.mxu0 0.0
        %1205 = vmatprep.subr.mxu0 0.0
        %1206 = vmatpush1.msra.mxu0 0.0
        %1207 = vmatprep.subr.mxu0 0.0
        %1208 = vmatpush1.msra.mxu0 0.0
        %1209 = vmatprep.subr.mxu0 0.0
        %1210 = vmatpush1.msra.mxu0 0.0
        %1211 = vmatprep.subr.mxu0 0.0
        %1212 = vmatpush1.msra.mxu0 0.0
        %1213 = vmatprep.subr.mxu0 0.0
        %1214 = vmatpush1.msra.mxu0 0.0
        %1215 = vmatprep.subr.mxu0 0.0
        %1216 = vmatpush1.msra.mxu0 0.0
        %1217 = vmatprep.subr.mxu0 0.0
        %1218 = vmatpush1.msra.mxu0 0.0
        %1219 = vmatprep.subr.mxu0 0.0
        %1220 = vmatpush1.msra.mxu0 0.0
        %1221 = vmatprep.subr.mxu0 0.0
        %1222 = vmatpush1.msra.mxu0 0.0
        %1223 = vmatprep.subr.mxu0 0.0
        %1224 = vmatpush1.msra.mxu0 0.0
        %1225 = vmatprep.subr.mxu0 0.0
        %1226 = vmatpush1.msra.mxu0 0.0
        %1227 = vmatprep.subr.mxu0 0.0
        %1228 = vmatpush1.msra.mxu0 0.0
        %1229 = vmatprep.subr.mxu0 0.0
        %1230 = vmatpush1.msra.mxu0 0.0
        %1231 = vmatprep.subr.mxu0 0.0
        %1232 = vmatpush1.msra.mxu0 0.0
        %1233 = vmatprep.mubr.f32.mxu0 0.0
        %1234 = vmatmul.mubr.f32.gmra.mrb[0].mxu0 %v1164
        %v1235 = vpop.f32.mrb[0].mxu0
        %v1236 = vadd.f32 0.0, %v1235
        %v1237 = vpop.f32.mrb[0].mxu0
        %1238 = vmatprep.mubr.f32.mxu0 0.0
        %1239 = vmatmul.mubr.f32.gmra.mrb[0].mxu0 %v1167
        %v1240 = vpop.f32.mrb[0].mxu0
        %v1241 = vadd.f32 0.0, %v1240
        %v1242 = vpop.f32.mrb[0].mxu0
        %1243 = vdwg.mxu0
        %v1244 = vadd.f32 %v1155, %v1236
        %v1245 = vadd.f32 %v1155, %v1241
        %v1246 = vrot.slane %v1146, 7
        %v1247 = vrot.slane %v1147, 7
        %v1248 = vsel %vm969, %v1246, %v1247
        %v1249 = vsel %vm969, %v1247, %v1246
        %v1250 = vsel %vm972, %v1249, 0.0
        %v1251 = vsel %vm973, %v1248, 0.0
        %s1252 = scalar_lea.vmem [#allocation8], 8
        %v1253 = vld [vmem:[%s1252] sm:$0xff]
        %v1255 = vsel %vm883, %v1250, 0
        %v1258 = vsel %vm883, %v1251, 0
        %1260 = vmatprep.subr.mxu0 0.0
        %1261 = vmatpush1.msra.mxu0 %v1253
        %1262 = vmatprep.subr.mxu0 0.0
        %1263 = vmatpush1.msra.mxu0 0.0
        %1264 = vmatprep.subr.mxu0 0.0
        %1265 = vmatpush1.msra.mxu0 0.0
        %1266 = vmatprep.subr.mxu0 0.0
        %1267 = vmatpush1.msra.mxu0 0.0
        %1268 = vmatprep.subr.mxu0 0.0
        %1269 = vmatpush1.msra.mxu0 0.0
        %1270 = vmatprep.subr.mxu0 0.0
        %1271 = vmatpush1.msra.mxu0 0.0
        %1272 = vmatprep.subr.mxu0 0.0
        %1273 = vmatpush1.msra.mxu0 0.0
        %1274 = vmatprep.subr.mxu0 0.0
        %1275 = vmatpush1.msra.mxu0 0.0
        %1276 = vmatprep.subr.mxu0 0.0
        %1277 = vmatpush1.msra.mxu0 0.0
        %1278 = vmatprep.subr.mxu0 0.0
        %1279 = vmatpush1.msra.mxu0 0.0
        %1280 = vmatprep.subr.mxu0 0.0
        %1281 = vmatpush1.msra.mxu0 0.0
        %1282 = vmatprep.subr.mxu0 0.0
        %1283 = vmatpush1.msra.mxu0 0.0
        %1284 = vmatprep.subr.mxu0 0.0
        %1285 = vmatpush1.msra.mxu0 0.0
        %1286 = vmatprep.subr.mxu0 0.0
        %1287 = vmatpush1.msra.mxu0 0.0
        %1288 = vmatprep.subr.mxu0 0.0
        %1289 = vmatpush1.msra.mxu0 0.0
        %1290 = vmatprep.subr.mxu0 0.0
        %1291 = vmatpush1.msra.mxu0 0.0
        %1292 = vmatprep.subr.mxu0 0.0
        %1293 = vmatpush1.msra.mxu0 0.0
        %1294 = vmatprep.subr.mxu0 0.0
        %1295 = vmatpush1.msra.mxu0 0.0
        %1296 = vmatprep.subr.mxu0 0.0
        %1297 = vmatpush1.msra.mxu0 0.0
        %1298 = vmatprep.subr.mxu0 0.0
        %1299 = vmatpush1.msra.mxu0 0.0
        %1300 = vmatprep.subr.mxu0 0.0
        %1301 = vmatpush1.msra.mxu0 0.0
        %1302 = vmatprep.subr.mxu0 0.0
        %1303 = vmatpush1.msra.mxu0 0.0
        %1304 = vmatprep.subr.mxu0 0.0
        %1305 = vmatpush1.msra.mxu0 0.0
        %1306 = vmatprep.subr.mxu0 0.0
        %1307 = vmatpush1.msra.mxu0 0.0
        %1308 = vmatprep.subr.mxu0 0.0
        %1309 = vmatpush1.msra.mxu0 0.0
        %1310 = vmatprep.subr.mxu0 0.0
        %1311 = vmatpush1.msra.mxu0 0.0
        %1312 = vmatprep.subr.mxu0 0.0
        %1313 = vmatpush1.msra.mxu0 0.0
        %1314 = vmatprep.subr.mxu0 0.0
        %1315 = vmatpush1.msra.mxu0 0.0
        %1316 = vmatprep.subr.mxu0 0.0
        %1317 = vmatpush1.msra.mxu0 0.0
        %1318 = vmatprep.subr.mxu0 0.0
        %1319 = vmatpush1.msra.mxu0 0.0
        %1320 = vmatprep.subr.mxu0 0.0
        %1321 = vmatpush1.msra.mxu0 0.0
        %1322 = vmatprep.subr.mxu0 0.0
        %1323 = vmatpush1.msra.mxu0 0.0
        %1324 = vmatprep.mubr.f32.mxu0 0.0
        %1325 = vmatmul.mubr.f32.gmra.mrb[0].mxu0 %v1255
        %v1326 = vpop.f32.mrb[0].mxu0
        %v1327 = vadd.f32 0.0, %v1326
        %v1328 = vpop.f32.mrb[0].mxu0
        %1329 = vmatprep.mubr.f32.mxu0 0.0
        %1330 = vmatmul.mubr.f32.gmra.mrb[0].mxu0 %v1258
        %v1331 = vpop.f32.mrb[0].mxu0
        %v1332 = vadd.f32 0.0, %v1331
        %v1333 = vpop.f32.mrb[0].mxu0
        %1334 = vdwg.mxu0
        %v1335 = vadd.f32 %v1244, %v1327
        %v1336 = vadd.f32 %v1245, %v1332
        %s1337 = scalar_lea.vmem [#allocation8], 16
        %v1338 = vld [vmem:[%s1337] sm:$0xff]
        %v1340 = vsel %vm883, %v1146, 0
        %v1343 = vsel %vm883, %v1147, 0
        %1345 = vmatprep.subr.mxu0 0.0
        %1346 = vmatpush1.msra.mxu0 %v1338
        %1347 = vmatprep.subr.mxu0 0.0
        %1348 = vmatpush1.msra.mxu0 0.0
        %1349 = vmatprep.subr.mxu0 0.0
        %1350 = vmatpush1.msra.mxu0 0.0
        %1351 = vmatprep.subr.mxu0 0.0
        %1352 = vmatpush1.msra.mxu0 0.0
        %1353 = vmatprep.subr.mxu0 0.0
        %1354 = vmatpush1.msra.mxu0 0.0
        %1355 = vmatprep.subr.mxu0 0.0
        %1356 = vmatpush1.msra.mxu0 0.0
        %1357 = vmatprep.subr.mxu0 0.0
        %1358 = vmatpush1.msra.mxu0 0.0
        %1359 = vmatprep.subr.mxu0 0.0
        %1360 = vmatpush1.msra.mxu0 0.0
        %1361 = vmatprep.subr.mxu0 0.0
        %1362 = vmatpush1.msra.mxu0 0.0
        %1363 = vmatprep.subr.mxu0 0.0
        %1364 = vmatpush1.msra.mxu0 0.0
        %1365 = vmatprep.subr.mxu0 0.0
        %1366 = vmatpush1.msra.mxu0 0.0
        %1367 = vmatprep.subr.mxu0 0.0
        %1368 = vmatpush1.msra.mxu0 0.0
        %1369 = vmatprep.subr.mxu0 0.0
        %1370 = vmatpush1.msra.mxu0 0.0
        %1371 = vmatprep.subr.mxu0 0.0
        %1372 = vmatpush1.msra.mxu0 0.0
        %1373 = vmatprep.subr.mxu0 0.0
        %1374 = vmatpush1.msra.mxu0 0.0
        %1375 = vmatprep.subr.mxu0 0.0
        %1376 = vmatpush1.msra.mxu0 0.0
        %1377 = vmatprep.subr.mxu0 0.0
        %1378 = vmatpush1.msra.mxu0 0.0
        %1379 = vmatprep.subr.mxu0 0.0
        %1380 = vmatpush1.msra.mxu0 0.0
        %1381 = vmatprep.subr.mxu0 0.0
        %1382 = vmatpush1.msra.mxu0 0.0
        %1383 = vmatprep.subr.mxu0 0.0
        %1384 = vmatpush1.msra.mxu0 0.0
        %1385 = vmatprep.subr.mxu0 0.0
        %1386 = vmatpush1.msra.mxu0 0.0
        %1387 = vmatprep.subr.mxu0 0.0
        %1388 = vmatpush1.msra.mxu0 0.0
        %1389 = vmatprep.subr.mxu0 0.0
        %1390 = vmatpush1.msra.mxu0 0.0
        %1391 = vmatprep.subr.mxu0 0.0
        %1392 = vmatpush1.msra.mxu0 0.0
        %1393 = vmatprep.subr.mxu0 0.0
        %1394 = vmatpush1.msra.mxu0 0.0
        %1395 = vmatprep.subr.mxu0 0.0
        %1396 = vmatpush1.msra.mxu0 0.0
        %1397 = vmatprep.subr.mxu0 0.0
        %1398 = vmatpush1.msra.mxu0 0.0
        %1399 = vmatprep.subr.mxu0 0.0
        %1400 = vmatpush1.msra.mxu0 0.0
        %1401 = vmatprep.subr.mxu0 0.0
        %1402 = vmatpush1.msra.mxu0 0.0
        %1403 = vmatprep.subr.mxu0 0.0
        %1404 = vmatpush1.msra.mxu0 0.0
        %1405 = vmatprep.subr.mxu0 0.0
        %1406 = vmatpush1.msra.mxu0 0.0
        %1407 = vmatprep.subr.mxu0 0.0
        %1408 = vmatpush1.msra.mxu0 0.0
        %1409 = vmatprep.mubr.f32.mxu0 0.0
        %1410 = vmatmul.mubr.f32.gmra.mrb[0].mxu0 %v1340
        %v1411 = vpop.f32.mrb[0].mxu0
        %v1412 = vadd.f32 0.0, %v1411
        %v1413 = vpop.f32.mrb[0].mxu0
        %1414 = vmatprep.mubr.f32.mxu0 0.0
        %1415 = vmatmul.mubr.f32.gmra.mrb[0].mxu0 %v1343
        %v1416 = vpop.f32.mrb[0].mxu0
        %v1417 = vadd.f32 0.0, %v1416
        %v1418 = vpop.f32.mrb[0].mxu0
        %1419 = vdwg.mxu0
        %v1420 = vadd.f32 %v1335, %v1412
        %v1421 = vadd.f32 %v1336, %v1417
        %v1422 = vmax.f32 %v1420, 0.0
        %v1423 = vmax.f32 %v1421, 0.0
        %v1424 = vadd.f32 %v1422, %v860
        %v1425 = vadd.f32 %v1423, %v861
        %v1426 = vmax.f32 %v1424, 0.0
        %v1427 = vmax.f32 %v1425, 0.0
        %v1428 = vld [vmem:[#allocation13] sm:$0x1]
        %v1430 = vlaneseq
        %v1431 = vshrl.u32 %v1430, 7
        %v1432 = vsub.s32 0, %v1431
        %v1433 = vrot.slane %v1428, %v1432
        %v1435 = vadd.f32 %v1433, 0.0
        %v1436 = vrot.slane %v1426, 4
        %v1437 = vrot.slane %v1427, 4
        %vm1438 = vcmp.lt.s32.totalorder %v871, 4
        %v1439 = vsel %vm1438, %v1436, %v1437
        %v1440 = vsel %vm1438, %v1437, %v1436
        %vm1441 = vcmp.ge.s32.totalorder %v871, 4
        %vm1442 = vcmp.ge.s32.totalorder %v872, 4
        %v1443 = vsel %vm1441, %v1440, 0.0
        %v1444 = vsel %vm1442, %v1439, 0.0
        %v1445 = vld [vmem:[#allocation11] sm:$0xff]
        %v1447 = vsel %vm883, %v1443, 0
        %v1450 = vsel %vm883, %v1444, 0
        %1452 = vmatprep.subr.mxu0 0.0
        %1453 = vmatpush1.msra.mxu0 %v1445
        %1454 = vmatprep.subr.mxu0 0.0
        %1455 = vmatpush1.msra.mxu0 0.0
        %1456 = vmatprep.subr.mxu0 0.0
        %1457 = vmatpush1.msra.mxu0 0.0
        %1458 = vmatprep.subr.mxu0 0.0
        %1459 = vmatpush1.msra.mxu0 0.0
        %1460 = vmatprep.subr.mxu0 0.0
        %1461 = vmatpush1.msra.mxu0 0.0
        %1462 = vmatprep.subr.mxu0 0.0
        %1463 = vmatpush1.msra.mxu0 0.0
        %1464 = vmatprep.subr.mxu0 0.0
        %1465 = vmatpush1.msra.mxu0 0.0
        %1466 = vmatprep.subr.mxu0 0.0
        %1467 = vmatpush1.msra.mxu0 0.0
        %1468 = vmatprep.subr.mxu0 0.0
        %1469 = vmatpush1.msra.mxu0 0.0
        %1470 = vmatprep.subr.mxu0 0.0
        %1471 = vmatpush1.msra.mxu0 0.0
        %1472 = vmatprep.subr.mxu0 0.0
        %1473 = vmatpush1.msra.mxu0 0.0
        %1474 = vmatprep.subr.mxu0 0.0
        %1475 = vmatpush1.msra.mxu0 0.0
        %1476 = vmatprep.subr.mxu0 0.0
        %1477 = vmatpush1.msra.mxu0 0.0
        %1478 = vmatprep.subr.mxu0 0.0
        %1479 = vmatpush1.msra.mxu0 0.0
        %1480 = vmatprep.subr.mxu0 0.0
        %1481 = vmatpush1.msra.mxu0 0.0
        %1482 = vmatprep.subr.mxu0 0.0
        %1483 = vmatpush1.msra.mxu0 0.0
        %1484 = vmatprep.subr.mxu0 0.0
        %1485 = vmatpush1.msra.mxu0 0.0
        %1486 = vmatprep.subr.mxu0 0.0
        %1487 = vmatpush1.msra.mxu0 0.0
        %1488 = vmatprep.subr.mxu0 0.0
        %1489 = vmatpush1.msra.mxu0 0.0
        %1490 = vmatprep.subr.mxu0 0.0
        %1491 = vmatpush1.msra.mxu0 0.0
        %1492 = vmatprep.subr.mxu0 0.0
        %1493 = vmatpush1.msra.mxu0 0.0
        %1494 = vmatprep.subr.mxu0 0.0
        %1495 = vmatpush1.msra.mxu0 0.0
        %1496 = vmatprep.subr.mxu0 0.0
        %1497 = vmatpush1.msra.mxu0 0.0
        %1498 = vmatprep.subr.mxu0 0.0
        %1499 = vmatpush1.msra.mxu0 0.0
        %1500 = vmatprep.subr.mxu0 0.0
        %1501 = vmatpush1.msra.mxu0 0.0
        %1502 = vmatprep.subr.mxu0 0.0
        %1503 = vmatpush1.msra.mxu0 0.0
        %1504 = vmatprep.subr.mxu0 0.0
        %1505 = vmatpush1.msra.mxu0 0.0
        %1506 = vmatprep.subr.mxu0 0.0
        %1507 = vmatpush1.msra.mxu0 0.0
        %1508 = vmatprep.subr.mxu0 0.0
        %1509 = vmatpush1.msra.mxu0 0.0
        %1510 = vmatprep.subr.mxu0 0.0
        %1511 = vmatpush1.msra.mxu0 0.0
        %1512 = vmatprep.subr.mxu0 0.0
        %1513 = vmatpush1.msra.mxu0 0.0
        %1514 = vmatprep.subr.mxu0 0.0
        %1515 = vmatpush1.msra.mxu0 0.0
        %1516 = vmatprep.mubr.f32.mxu0 0.0
        %1517 = vmatmul.mubr.f32.gmra.mrb[0].mxu0 %v1447
        %v1518 = vpop.f32.mrb[0].mxu0
        %v1519 = vadd.f32 0.0, %v1518
        %v1520 = vpop.f32.mrb[0].mxu0
        %1521 = vmatprep.mubr.f32.mxu0 0.0
        %1522 = vmatmul.mubr.f32.gmra.mrb[0].mxu0 %v1450
        %v1523 = vpop.f32.mrb[0].mxu0
        %v1524 = vadd.f32 0.0, %v1523
        %v1525 = vpop.f32.mrb[0].mxu0
        %1526 = vdwg.mxu0
        %v1527 = vadd.f32 %v1435, %v1519
        %v1528 = vadd.f32 %v1435, %v1524
        %v1529 = vrot.slane %v1426, 6
        %v1530 = vrot.slane %v1427, 6
        %v1531 = vsel %vm875, %v1529, %v1530
        %v1532 = vsel %vm875, %v1530, %v1529
        %v1533 = vsel %vm878, %v1532, 0.0
        %v1534 = vsel %vm879, %v1531, 0.0
        %s1535 = scalar_lea.vmem [#allocation11], 8
        %v1536 = vld [vmem:[%s1535] sm:$0xff]
        %v1538 = vsel %vm883, %v1533, 0
        %v1541 = vsel %vm883, %v1534, 0
        %1543 = vmatprep.subr.mxu0 0.0
        %1544 = vmatpush1.msra.mxu0 %v1536
        %1545 = vmatprep.subr.mxu0 0.0
        %1546 = vmatpush1.msra.mxu0 0.0
        %1547 = vmatprep.subr.mxu0 0.0
        %1548 = vmatpush1.msra.mxu0 0.0
        %1549 = vmatprep.subr.mxu0 0.0
        %1550 = vmatpush1.msra.mxu0 0.0
        %1551 = vmatprep.subr.mxu0 0.0
        %1552 = vmatpush1.msra.mxu0 0.0
        %1553 = vmatprep.subr.mxu0 0.0
        %1554 = vmatpush1.msra.mxu0 0.0
        %1555 = vmatprep.subr.mxu0 0.0
        %1556 = vmatpush1.msra.mxu0 0.0
        %1557 = vmatprep.subr.mxu0 0.0
        %1558 = vmatpush1.msra.mxu0 0.0
        %1559 = vmatprep.subr.mxu0 0.0
        %1560 = vmatpush1.msra.mxu0 0.0
        %1561 = vmatprep.subr.mxu0 0.0
        %1562 = vmatpush1.msra.mxu0 0.0
        %1563 = vmatprep.subr.mxu0 0.0
        %1564 = vmatpush1.msra.mxu0 0.0
        %1565 = vmatprep.subr.mxu0 0.0
        %1566 = vmatpush1.msra.mxu0 0.0
        %1567 = vmatprep.subr.mxu0 0.0
        %1568 = vmatpush1.msra.mxu0 0.0
        %1569 = vmatprep.subr.mxu0 0.0
        %1570 = vmatpush1.msra.mxu0 0.0
        %1571 = vmatprep.subr.mxu0 0.0
        %1572 = vmatpush1.msra.mxu0 0.0
        %1573 = vmatprep.subr.mxu0 0.0
        %1574 = vmatpush1.msra.mxu0 0.0
        %1575 = vmatprep.subr.mxu0 0.0
        %1576 = vmatpush1.msra.mxu0 0.0
        %1577 = vmatprep.subr.mxu0 0.0
        %1578 = vmatpush1.msra.mxu0 0.0
        %1579 = vmatprep.subr.mxu0 0.0
        %1580 = vmatpush1.msra.mxu0 0.0
        %1581 = vmatprep.subr.mxu0 0.0
        %1582 = vmatpush1.msra.mxu0 0.0
        %1583 = vmatprep.subr.mxu0 0.0
        %1584 = vmatpush1.msra.mxu0 0.0
        %1585 = vmatprep.subr.mxu0 0.0
        %1586 = vmatpush1.msra.mxu0 0.0
        %1587 = vmatprep.subr.mxu0 0.0
        %1588 = vmatpush1.msra.mxu0 0.0
        %1589 = vmatprep.subr.mxu0 0.0
        %1590 = vmatpush1.msra.mxu0 0.0
        %1591 = vmatprep.subr.mxu0 0.0
        %1592 = vmatpush1.msra.mxu0 0.0
        %1593 = vmatprep.subr.mxu0 0.0
        %1594 = vmatpush1.msra.mxu0 0.0
        %1595 = vmatprep.subr.mxu0 0.0
        %1596 = vmatpush1.msra.mxu0 0.0
        %1597 = vmatprep.subr.mxu0 0.0
        %1598 = vmatpush1.msra.mxu0 0.0
        %1599 = vmatprep.subr.mxu0 0.0
        %1600 = vmatpush1.msra.mxu0 0.0
        %1601 = vmatprep.subr.mxu0 0.0
        %1602 = vmatpush1.msra.mxu0 0.0
        %1603 = vmatprep.subr.mxu0 0.0
        %1604 = vmatpush1.msra.mxu0 0.0
        %1605 = vmatprep.subr.mxu0 0.0
        %1606 = vmatpush1.msra.mxu0 0.0
        %1607 = vmatprep.mubr.f32.mxu0 0.0
        %1608 = vmatmul.mubr.f32.gmra.mrb[0].mxu0 %v1538
        %v1609 = vpop.f32.mrb[0].mxu0
        %v1610 = vadd.f32 0.0, %v1609
        %v1611 = vpop.f32.mrb[0].mxu0
        %1612 = vmatprep.mubr.f32.mxu0 0.0
        %1613 = vmatmul.mubr.f32.gmra.mrb[0].mxu0 %v1541
        %v1614 = vpop.f32.mrb[0].mxu0
        %v1615 = vadd.f32 0.0, %v1614
        %v1616 = vpop.f32.mrb[0].mxu0
        %1617 = vdwg.mxu0
        %v1618 = vadd.f32 %v1527, %v1610
        %v1619 = vadd.f32 %v1528, %v1615
        %s1620 = scalar_lea.vmem [#allocation11], 16
        %v1621 = vld [vmem:[%s1620] sm:$0xff]
        %v1623 = vsel %vm883, %v1426, 0
        %v1626 = vsel %vm883, %v1427, 0
        %1628 = vmatprep.subr.mxu0 0.0
        %1629 = vmatpush1.msra.mxu0 %v1621
        %1630 = vmatprep.subr.mxu0 0.0
        %1631 = vmatpush1.msra.mxu0 0.0
        %1632 = vmatprep.subr.mxu0 0.0
        %1633 = vmatpush1.msra.mxu0 0.0
        %1634 = vmatprep.subr.mxu0 0.0
        %1635 = vmatpush1.msra.mxu0 0.0
        %1636 = vmatprep.subr.mxu0 0.0
        %1637 = vmatpush1.msra.mxu0 0.0
        %1638 = vmatprep.subr.mxu0 0.0
        %1639 = vmatpush1.msra.mxu0 0.0
        %1640 = vmatprep.subr.mxu0 0.0
        %1641 = vmatpush1.msra.mxu0 0.0
        %1642 = vmatprep.subr.mxu0 0.0
        %1643 = vmatpush1.msra.mxu0 0.0
        %1644 = vmatprep.subr.mxu0 0.0
        %1645 = vmatpush1.msra.mxu0 0.0
        %1646 = vmatprep.subr.mxu0 0.0
        %1647 = vmatpush1.msra.mxu0 0.0
        %1648 = vmatprep.subr.mxu0 0.0
        %1649 = vmatpush1.msra.mxu0 0.0
        %1650 = vmatprep.subr.mxu0 0.0
        %1651 = vmatpush1.msra.mxu0 0.0
        %1652 = vmatprep.subr.mxu0 0.0
        %1653 = vmatpush1.msra.mxu0 0.0
        %1654 = vmatprep.subr.mxu0 0.0
        %1655 = vmatpush1.msra.mxu0 0.0
        %1656 = vmatprep.subr.mxu0 0.0
        %1657 = vmatpush1.msra.mxu0 0.0
        %1658 = vmatprep.subr.mxu0 0.0
        %1659 = vmatpush1.msra.mxu0 0.0
        %1660 = vmatprep.subr.mxu0 0.0
        %1661 = vmatpush1.msra.mxu0 0.0
        %1662 = vmatprep.subr.mxu0 0.0
        %1663 = vmatpush1.msra.mxu0 0.0
        %1664 = vmatprep.subr.mxu0 0.0
        %1665 = vmatpush1.msra.mxu0 0.0
        %1666 = vmatprep.subr.mxu0 0.0
        %1667 = vmatpush1.msra.mxu0 0.0
        %1668 = vmatprep.subr.mxu0 0.0
        %1669 = vmatpush1.msra.mxu0 0.0
        %1670 = vmatprep.subr.mxu0 0.0
        %1671 = vmatpush1.msra.mxu0 0.0
        %1672 = vmatprep.subr.mxu0 0.0
        %1673 = vmatpush1.msra.mxu0 0.0
        %1674 = vmatprep.subr.mxu0 0.0
        %1675 = vmatpush1.msra.mxu0 0.0
        %1676 = vmatprep.subr.mxu0 0.0
        %1677 = vmatpush1.msra.mxu0 0.0
        %1678 = vmatprep.subr.mxu0 0.0
        %1679 = vmatpush1.msra.mxu0 0.0
        %1680 = vmatprep.subr.mxu0 0.0
        %1681 = vmatpush1.msra.mxu0 0.0
        %1682 = vmatprep.subr.mxu0 0.0
        %1683 = vmatpush1.msra.mxu0 0.0
        %1684 = vmatprep.subr.mxu0 0.0
        %1685 = vmatpush1.msra.mxu0 0.0
        %1686 = vmatprep.subr.mxu0 0.0
        %1687 = vmatpush1.msra.mxu0 0.0
        %1688 = vmatprep.subr.mxu0 0.0
        %1689 = vmatpush1.msra.mxu0 0.0
        %1690 = vmatprep.subr.mxu0 0.0
        %1691 = vmatpush1.msra.mxu0 0.0
        %1692 = vmatprep.mubr.f32.mxu0 0.0
        %1693 = vmatmul.mubr.f32.gmra.mrb[0].mxu0 %v1623
        %v1694 = vpop.f32.mrb[0].mxu0
        %v1695 = vadd.f32 0.0, %v1694
        %v1696 = vpop.f32.mrb[0].mxu0
        %1697 = vmatprep.mubr.f32.mxu0 0.0
        %1698 = vmatmul.mubr.f32.gmra.mrb[0].mxu0 %v1626
        %v1699 = vpop.f32.mrb[0].mxu0
        %v1700 = vadd.f32 0.0, %v1699
        %v1701 = vpop.f32.mrb[0].mxu0
        %1702 = vdwg.mxu0
        %v1703 = vadd.f32 %v1618, %v1695
        %v1704 = vadd.f32 %v1619, %v1700
        %v1705 = vmax.f32 %v1703, 0.0
        %v1706 = vmax.f32 %v1704, 0.0
        %v1707 = vld [vmem:[#allocation16] sm:$0x1]
        %v1709 = vlaneseq
        %v1710 = vshrl.u32 %v1709, 7
        %v1711 = vsub.s32 0, %v1710
        %v1712 = vrot.slane %v1707, %v1711
        %v1714 = vadd.f32 %v1712, 0.0
        %v1715 = vrot.slane %v1705, 4
        %v1716 = vrot.slane %v1706, 4
        %v1717 = vsel %vm1438, %v1715, %v1716
        %v1718 = vsel %vm1438, %v1716, %v1715
        %v1719 = vsel %vm1441, %v1718, 0.0
        %v1720 = vsel %vm1442, %v1717, 0.0
        %v1721 = vld [vmem:[#allocation14] sm:$0xff]
        %v1722 = vld [vmem:[#allocation14 + $0x8] sm:$0xff]
        %vm1723 = vcmask 130048
        %v1725 = vsel %vm1723, %v1719, 0
        %v1728 = vsel %vm1723, %v1720, 0
        %1730 = vmatprep.subr.mxu0 0.0
        %1731 = vmatpush1.msra.mxu0 %v1721
        %1732 = vmatprep.subr.mxu0 0.0
        %1733 = vmatpush1.msra.mxu0 %v1722
        %1734 = vmatprep.subr.mxu0 0.0
        %1735 = vmatpush1.msra.mxu0 0.0
        %1736 = vmatprep.subr.mxu0 0.0
        %1737 = vmatpush1.msra.mxu0 0.0
        %1738 = vmatprep.subr.mxu0 0.0
        %1739 = vmatpush1.msra.mxu0 0.0
        %1740 = vmatprep.subr.mxu0 0.0
        %1741 = vmatpush1.msra.mxu0 0.0
        %1742 = vmatprep.subr.mxu0 0.0
        %1743 = vmatpush1.msra.mxu0 0.0
        %1744 = vmatprep.subr.mxu0 0.0
        %1745 = vmatpush1.msra.mxu0 0.0
        %1746 = vmatprep.subr.mxu0 0.0
        %1747 = vmatpush1.msra.mxu0 0.0
        %1748 = vmatprep.subr.mxu0 0.0
        %1749 = vmatpush1.msra.mxu0 0.0
        %1750 = vmatprep.subr.mxu0 0.0
        %1751 = vmatpush1.msra.mxu0 0.0
        %1752 = vmatprep.subr.mxu0 0.0
        %1753 = vmatpush1.msra.mxu0 0.0
        %1754 = vmatprep.subr.mxu0 0.0
        %1755 = vmatpush1.msra.mxu0 0.0
        %1756 = vmatprep.subr.mxu0 0.0
        %1757 = vmatpush1.msra.mxu0 0.0
        %1758 = vmatprep.subr.mxu0 0.0
        %1759 = vmatpush1.msra.mxu0 0.0
        %1760 = vmatprep.subr.mxu0 0.0
        %1761 = vmatpush1.msra.mxu0 0.0
        %1762 = vmatprep.subr.mxu0 0.0
        %1763 = vmatpush1.msra.mxu0 0.0
        %1764 = vmatprep.subr.mxu0 0.0
        %1765 = vmatpush1.msra.mxu0 0.0
        %1766 = vmatprep.subr.mxu0 0.0
        %1767 = vmatpush1.msra.mxu0 0.0
        %1768 = vmatprep.subr.mxu0 0.0
        %1769 = vmatpush1.msra.mxu0 0.0
        %1770 = vmatprep.subr.mxu0 0.0
        %1771 = vmatpush1.msra.mxu0 0.0
        %1772 = vmatprep.subr.mxu0 0.0
        %1773 = vmatpush1.msra.mxu0 0.0
        %1774 = vmatprep.subr.mxu0 0.0
        %1775 = vmatpush1.msra.mxu0 0.0
        %1776 = vmatprep.subr.mxu0 0.0
        %1777 = vmatpush1.msra.mxu0 0.0
        %1778 = vmatprep.subr.mxu0 0.0
        %1779 = vmatpush1.msra.mxu0 0.0
        %1780 = vmatprep.subr.mxu0 0.0
        %1781 = vmatpush1.msra.mxu0 0.0
        %1782 = vmatprep.subr.mxu0 0.0
        %1783 = vmatpush1.msra.mxu0 0.0
        %1784 = vmatprep.subr.mxu0 0.0
        %1785 = vmatpush1.msra.mxu0 0.0
        %1786 = vmatprep.subr.mxu0 0.0
        %1787 = vmatpush1.msra.mxu0 0.0
        %1788 = vmatprep.subr.mxu0 0.0
        %1789 = vmatpush1.msra.mxu0 0.0
        %1790 = vmatprep.subr.mxu0 0.0
        %1791 = vmatpush1.msra.mxu0 0.0
        %1792 = vmatprep.subr.mxu0 0.0
        %1793 = vmatpush1.msra.mxu0 0.0
        %1794 = vmatprep.mubr.f32.mxu0 0.0
        %1795 = vmatmul.mubr.f32.gmra.mrb[0].mxu0 %v1725
        %v1796 = vpop.f32.mrb[0].mxu0
        %v1797 = vadd.f32 0.0, %v1796
        %v1798 = vpop.f32.mrb[0].mxu0
        %1799 = vmatprep.mubr.f32.mxu0 0.0
        %1800 = vmatmul.mubr.f32.gmra.mrb[0].mxu0 %v1728
        %v1801 = vpop.f32.mrb[0].mxu0
        %v1802 = vadd.f32 0.0, %v1801
        %v1803 = vpop.f32.mrb[0].mxu0
        %1804 = vdwg.mxu0
        %v1805 = vadd.f32 %v1714, %v1797
        %v1806 = vadd.f32 %v1714, %v1802
        %v1807 = vrot.slane %v1705, 6
        %v1808 = vrot.slane %v1706, 6
        %v1809 = vsel %vm875, %v1807, %v1808
        %v1810 = vsel %vm875, %v1808, %v1807
        %v1811 = vsel %vm878, %v1810, 0.0
        %v1812 = vsel %vm879, %v1809, 0.0
        %s1813 = scalar_lea.vmem [#allocation14], 16
        %v1814 = vld [vmem:[%s1813] sm:$0xff]
        %v1815 = vld [vmem:[%s1813 + $0x8] sm:$0xff]
        %v1817 = vsel %vm1723, %v1811, 0
        %v1820 = vsel %vm1723, %v1812, 0
        %1822 = vmatprep.subr.mxu0 0.0
        %1823 = vmatpush1.msra.mxu0 %v1814
        %1824 = vmatprep.subr.mxu0 0.0
        %1825 = vmatpush1.msra.mxu0 %v1815
        %1826 = vmatprep.subr.mxu0 0.0
        %1827 = vmatpush1.msra.mxu0 0.0
        %1828 = vmatprep.subr.mxu0 0.0
        %1829 = vmatpush1.msra.mxu0 0.0
        %1830 = vmatprep.subr.mxu0 0.0
        %1831 = vmatpush1.msra.mxu0 0.0
        %1832 = vmatprep.subr.mxu0 0.0
        %1833 = vmatpush1.msra.mxu0 0.0
        %1834 = vmatprep.subr.mxu0 0.0
        %1835 = vmatpush1.msra.mxu0 0.0
        %1836 = vmatprep.subr.mxu0 0.0
        %1837 = vmatpush1.msra.mxu0 0.0
        %1838 = vmatprep.subr.mxu0 0.0
        %1839 = vmatpush1.msra.mxu0 0.0
        %1840 = vmatprep.subr.mxu0 0.0
        %1841 = vmatpush1.msra.mxu0 0.0
        %1842 = vmatprep.subr.mxu0 0.0
        %1843 = vmatpush1.msra.mxu0 0.0
        %1844 = vmatprep.subr.mxu0 0.0
        %1845 = vmatpush1.msra.mxu0 0.0
        %1846 = vmatprep.subr.mxu0 0.0
        %1847 = vmatpush1.msra.mxu0 0.0
        %1848 = vmatprep.subr.mxu0 0.0
        %1849 = vmatpush1.msra.mxu0 0.0
        %1850 = vmatprep.subr.mxu0 0.0
        %1851 = vmatpush1.msra.mxu0 0.0
        %1852 = vmatprep.subr.mxu0 0.0
        %1853 = vmatpush1.msra.mxu0 0.0
        %1854 = vmatprep.subr.mxu0 0.0
        %1855 = vmatpush1.msra.mxu0 0.0
        %1856 = vmatprep.subr.mxu0 0.0
        %1857 = vmatpush1.msra.mxu0 0.0
        %1858 = vmatprep.subr.mxu0 0.0
        %1859 = vmatpush1.msra.mxu0 0.0
        %1860 = vmatprep.subr.mxu0 0.0
        %1861 = vmatpush1.msra.mxu0 0.0
        %1862 = vmatprep.subr.mxu0 0.0
        %1863 = vmatpush1.msra.mxu0 0.0
        %1864 = vmatprep.subr.mxu0 0.0
        %1865 = vmatpush1.msra.mxu0 0.0
        %1866 = vmatprep.subr.mxu0 0.0
        %1867 = vmatpush1.msra.mxu0 0.0
        %1868 = vmatprep.subr.mxu0 0.0
        %1869 = vmatpush1.msra.mxu0 0.0
        %1870 = vmatprep.subr.mxu0 0.0
        %1871 = vmatpush1.msra.mxu0 0.0
        %1872 = vmatprep.subr.mxu0 0.0
        %1873 = vmatpush1.msra.mxu0 0.0
        %1874 = vmatprep.subr.mxu0 0.0
        %1875 = vmatpush1.msra.mxu0 0.0
        %1876 = vmatprep.subr.mxu0 0.0
        %1877 = vmatpush1.msra.mxu0 0.0
        %1878 = vmatprep.subr.mxu0 0.0
        %1879 = vmatpush1.msra.mxu0 0.0
        %1880 = vmatprep.subr.mxu0 0.0
        %1881 = vmatpush1.msra.mxu0 0.0
        %1882 = vmatprep.subr.mxu0 0.0
        %1883 = vmatpush1.msra.mxu0 0.0
        %1884 = vmatprep.subr.mxu0 0.0
        %1885 = vmatpush1.msra.mxu0 0.0
        %1886 = vmatprep.mubr.f32.mxu0 0.0
        %1887 = vmatmul.mubr.f32.gmra.mrb[0].mxu0 %v1817
        %v1888 = vpop.f32.mrb[0].mxu0
        %v1889 = vadd.f32 0.0, %v1888
        %v1890 = vpop.f32.mrb[0].mxu0
        %1891 = vmatprep.mubr.f32.mxu0 0.0
        %1892 = vmatmul.mubr.f32.gmra.mrb[0].mxu0 %v1820
        %v1893 = vpop.f32.mrb[0].mxu0
        %v1894 = vadd.f32 0.0, %v1893
        %v1895 = vpop.f32.mrb[0].mxu0
        %1896 = vdwg.mxu0
        %v1897 = vadd.f32 %v1805, %v1889
        %v1898 = vadd.f32 %v1806, %v1894
        %s1899 = scalar_lea.vmem [#allocation14], 32
        %v1900 = vld [vmem:[%s1899] sm:$0xff]
        %v1901 = vld [vmem:[%s1899 + $0x8] sm:$0xff]
        %v1903 = vsel %vm1723, %v1705, 0
        %v1906 = vsel %vm1723, %v1706, 0
        %1908 = vmatprep.subr.mxu0 0.0
        %1909 = vmatpush1.msra.mxu0 %v1900
        %1910 = vmatprep.subr.mxu0 0.0
        %1911 = vmatpush1.msra.mxu0 %v1901
        %1912 = vmatprep.subr.mxu0 0.0
        %1913 = vmatpush1.msra.mxu0 0.0
        %1914 = vmatprep.subr.mxu0 0.0
        %1915 = vmatpush1.msra.mxu0 0.0
        %1916 = vmatprep.subr.mxu0 0.0
        %1917 = vmatpush1.msra.mxu0 0.0
        %1918 = vmatprep.subr.mxu0 0.0
        %1919 = vmatpush1.msra.mxu0 0.0
        %1920 = vmatprep.subr.mxu0 0.0
        %1921 = vmatpush1.msra.mxu0 0.0
        %1922 = vmatprep.subr.mxu0 0.0
        %1923 = vmatpush1.msra.mxu0 0.0
        %1924 = vmatprep.subr.mxu0 0.0
        %1925 = vmatpush1.msra.mxu0 0.0
        %1926 = vmatprep.subr.mxu0 0.0
        %1927 = vmatpush1.msra.mxu0 0.0
        %1928 = vmatprep.subr.mxu0 0.0
        %1929 = vmatpush1.msra.mxu0 0.0
        %1930 = vmatprep.subr.mxu0 0.0
        %1931 = vmatpush1.msra.mxu0 0.0
        %1932 = vmatprep.subr.mxu0 0.0
        %1933 = vmatpush1.msra.mxu0 0.0
        %1934 = vmatprep.subr.mxu0 0.0
        %1935 = vmatpush1.msra.mxu0 0.0
        %1936 = vmatprep.subr.mxu0 0.0
        %1937 = vmatpush1.msra.mxu0 0.0
        %1938 = vmatprep.subr.mxu0 0.0
        %1939 = vmatpush1.msra.mxu0 0.0
        %1940 = vmatprep.subr.mxu0 0.0
        %1941 = vmatpush1.msra.mxu0 0.0
        %1942 = vmatprep.subr.mxu0 0.0
        %1943 = vmatpush1.msra.mxu0 0.0
        %1944 = vmatprep.subr.mxu0 0.0
        %1945 = vmatpush1.msra.mxu0 0.0
        %1946 = vmatprep.subr.mxu0 0.0
        %1947 = vmatpush1.msra.mxu0 0.0
        %1948 = vmatprep.subr.mxu0 0.0
        %1949 = vmatpush1.msra.mxu0 0.0
        %1950 = vmatprep.subr.mxu0 0.0
        %1951 = vmatpush1.msra.mxu0 0.0
        %1952 = vmatprep.subr.mxu0 0.0
        %1953 = vmatpush1.msra.mxu0 0.0
        %1954 = vmatprep.subr.mxu0 0.0
        %1955 = vmatpush1.msra.mxu0 0.0
        %1956 = vmatprep.subr.mxu0 0.0
        %1957 = vmatpush1.msra.mxu0 0.0
        %1958 = vmatprep.subr.mxu0 0.0
        %1959 = vmatpush1.msra.mxu0 0.0
        %1960 = vmatprep.subr.mxu0 0.0
        %1961 = vmatpush1.msra.mxu0 0.0
        %1962 = vmatprep.subr.mxu0 0.0
        %1963 = vmatpush1.msra.mxu0 0.0
        %1964 = vmatprep.subr.mxu0 0.0
        %1965 = vmatpush1.msra.mxu0 0.0
        %1966 = vmatprep.subr.mxu0 0.0
        %1967 = vmatpush1.msra.mxu0 0.0
        %1968 = vmatprep.subr.mxu0 0.0
        %1969 = vmatpush1.msra.mxu0 0.0
        %1970 = vmatprep.subr.mxu0 0.0
        %1971 = vmatpush1.msra.mxu0 0.0
        %1972 = vmatprep.mubr.f32.mxu0 0.0
        %1973 = vmatmul.mubr.f32.gmra.mrb[0].mxu0 %v1903
        %v1974 = vpop.f32.mrb[0].mxu0
        %v1975 = vadd.f32 0.0, %v1974
        %v1976 = vpop.f32.mrb[0].mxu0
        %1977 = vmatprep.mubr.f32.mxu0 0.0
        %1978 = vmatmul.mubr.f32.gmra.mrb[0].mxu0 %v1906
        %v1979 = vpop.f32.mrb[0].mxu0
        %v1980 = vadd.f32 0.0, %v1979
        %v1981 = vpop.f32.mrb[0].mxu0
        %1982 = vdwg.mxu0
        %v1983 = vadd.f32 %v1897, %v1975
        %v1984 = vadd.f32 %v1898, %v1980
        %v1985 = vmax.f32 %v1983, 0.0
        %v1986 = vmax.f32 %v1984, 0.0
        %v1987 = vld [vmem:[#allocation17] sm:$0xff]
        %v1988 = vld [vmem:[#allocation19] sm:$0x1]
        %v1990 = vlaneseq
        %v1991 = vshrl.u32 %v1990, 7
        %v1992 = vsub.s32 0, %v1991
        %v1993 = vrot.slane %v1988, %v1992
        %1995 = vmatprep.subr.mxu0 0.0
        %1996 = vmatpush1.msra.mxu0 %v1987
        %1997 = vmatprep.subr.mxu0 0.0
        %1998 = vmatpush1.msra.mxu0 0.0
        %1999 = vmatprep.subr.mxu0 0.0
        %2000 = vmatpush1.msra.mxu0 0.0
        %2001 = vmatprep.subr.mxu0 0.0
        %2002 = vmatpush1.msra.mxu0 0.0
        %2003 = vmatprep.subr.mxu0 0.0
        %2004 = vmatpush1.msra.mxu0 0.0
        %2005 = vmatprep.subr.mxu0 0.0
        %2006 = vmatpush1.msra.mxu0 0.0
        %2007 = vmatprep.subr.mxu0 0.0
        %2008 = vmatpush1.msra.mxu0 0.0
        %2009 = vmatprep.subr.mxu0 0.0
        %2010 = vmatpush1.msra.mxu0 0.0
        %2011 = vmatprep.subr.mxu0 0.0
        %2012 = vmatpush1.msra.mxu0 0.0
        %2013 = vmatprep.subr.mxu0 0.0
        %2014 = vmatpush1.msra.mxu0 0.0
        %2015 = vmatprep.subr.mxu0 0.0
        %2016 = vmatpush1.msra.mxu0 0.0
        %2017 = vmatprep.subr.mxu0 0.0
        %2018 = vmatpush1.msra.mxu0 0.0
        %2019 = vmatprep.subr.mxu0 0.0
        %2020 = vmatpush1.msra.mxu0 0.0
        %2021 = vmatprep.subr.mxu0 0.0
        %2022 = vmatpush1.msra.mxu0 0.0
        %2023 = vmatprep.subr.mxu0 0.0
        %2024 = vmatpush1.msra.mxu0 0.0
        %2025 = vmatprep.subr.mxu0 0.0
        %2026 = vmatpush1.msra.mxu0 0.0
        %2027 = vmatprep.subr.mxu0 0.0
        %2028 = vmatpush1.msra.mxu0 0.0
        %2029 = vmatprep.subr.mxu0 0.0
        %2030 = vmatpush1.msra.mxu0 0.0
        %2031 = vmatprep.subr.mxu0 0.0
        %2032 = vmatpush1.msra.mxu0 0.0
        %2033 = vmatprep.subr.mxu0 0.0
        %2034 = vmatpush1.msra.mxu0 0.0
        %2035 = vmatprep.subr.mxu0 0.0
        %2036 = vmatpush1.msra.mxu0 0.0
        %2037 = vmatprep.subr.mxu0 0.0
        %2038 = vmatpush1.msra.mxu0 0.0
        %2039 = vmatprep.subr.mxu0 0.0
        %2040 = vmatpush1.msra.mxu0 0.0
        %2041 = vmatprep.subr.mxu0 0.0
        %2042 = vmatpush1.msra.mxu0 0.0
        %2043 = vmatprep.subr.mxu0 0.0
        %2044 = vmatpush1.msra.mxu0 0.0
        %2045 = vmatprep.subr.mxu0 0.0
        %2046 = vmatpush1.msra.mxu0 0.0
        %2047 = vmatprep.subr.mxu0 0.0
        %2048 = vmatpush1.msra.mxu0 0.0
        %2049 = vmatprep.subr.mxu0 0.0
        %2050 = vmatpush1.msra.mxu0 0.0
        %2051 = vmatprep.subr.mxu0 0.0
        %2052 = vmatpush1.msra.mxu0 0.0
        %2053 = vmatprep.subr.mxu0 0.0
        %2054 = vmatpush1.msra.mxu0 0.0
        %2055 = vmatprep.subr.mxu0 0.0
        %2056 = vmatpush1.msra.mxu0 0.0
        %2057 = vmatprep.subr.mxu0 0.0
        %2058 = vmatpush1.msra.mxu0 0.0
        %2059 = vmatprep.mubr.f32.mxu0 0.0
        %2060 = vmatmul.mubr.f32.gmra.mrb[0].mxu0 %v1623
        %v2061 = vpop.f32.mrb[0].mxu0
        %v2062 = vadd.f32 %v1993, %v2061
        %v2063 = vpop.f32.mrb[0].mxu0
        %2064 = vmatprep.mubr.f32.mxu0 0.0
        %2065 = vmatmul.mubr.f32.gmra.mrb[0].mxu0 %v1626
        %v2066 = vpop.f32.mrb[0].mxu0
        %v2067 = vadd.f32 %v1993, %v2066
        %v2068 = vpop.f32.mrb[0].mxu0
        %2069 = vdwg.mxu0
        %v2070 = vadd.f32 %v1985, %v2062
        %v2071 = vadd.f32 %v1986, %v2067
        %v2072 = vmax.f32 %v2070, 0.0
        %v2073 = vmax.f32 %v2071, 0.0
        %v2074 = vld [vmem:[#allocation22] sm:$0x1]
        %v2076 = vlaneseq
        %v2077 = vshrl.u32 %v2076, 7
        %v2078 = vsub.s32 0, %v2077
        %v2079 = vrot.slane %v2074, %v2078
        %v2081 = vadd.f32 %v2079, 0.0
        %vm2082 = vcmp.ge.s32.totalorder %v871, 8
        %vm2083 = vcmp.ge.s32.totalorder %v872, 8
        %v2084 = vsel %vm2082, %v2073, 0.0
        %v2085 = vsel %vm2083, %v2072, 0.0
        %v2086 = vld [vmem:[#allocation20] sm:$0xff]
        %v2087 = vld [vmem:[#allocation20 + $0x8] sm:$0xff]
        %v2089 = vsel %vm1723, %v2084, 0
        %v2092 = vsel %vm1723, %v2085, 0
        %2094 = vmatprep.subr.mxu0 0.0
        %2095 = vmatpush1.msra.mxu0 %v2086
        %2096 = vmatprep.subr.mxu0 0.0
        %2097 = vmatpush1.msra.mxu0 %v2087
        %2098 = vmatprep.subr.mxu0 0.0
        %2099 = vmatpush1.msra.mxu0 0.0
        %2100 = vmatprep.subr.mxu0 0.0
        %2101 = vmatpush1.msra.mxu0 0.0
        %2102 = vmatprep.subr.mxu0 0.0
        %2103 = vmatpush1.msra.mxu0 0.0
        %2104 = vmatprep.subr.mxu0 0.0
        %2105 = vmatpush1.msra.mxu0 0.0
        %2106 = vmatprep.subr.mxu0 0.0
        %2107 = vmatpush1.msra.mxu0 0.0
        %2108 = vmatprep.subr.mxu0 0.0
        %2109 = vmatpush1.msra.mxu0 0.0
        %2110 = vmatprep.subr.mxu0 0.0
        %2111 = vmatpush1.msra.mxu0 0.0
        %2112 = vmatprep.subr.mxu0 0.0
        %2113 = vmatpush1.msra.mxu0 0.0
        %2114 = vmatprep.subr.mxu0 0.0
        %2115 = vmatpush1.msra.mxu0 0.0
        %2116 = vmatprep.subr.mxu0 0.0
        %2117 = vmatpush1.msra.mxu0 0.0
        %2118 = vmatprep.subr.mxu0 0.0
        %2119 = vmatpush1.msra.mxu0 0.0
        %2120 = vmatprep.subr.mxu0 0.0
        %2121 = vmatpush1.msra.mxu0 0.0
        %2122 = vmatprep.subr.mxu0 0.0
        %2123 = vmatpush1.msra.mxu0 0.0
        %2124 = vmatprep.subr.mxu0 0.0
        %2125 = vmatpush1.msra.mxu0 0.0
        %2126 = vmatprep.subr.mxu0 0.0
        %2127 = vmatpush1.msra.mxu0 0.0
        %2128 = vmatprep.subr.mxu0 0.0
        %2129 = vmatpush1.msra.mxu0 0.0
        %2130 = vmatprep.subr.mxu0 0.0
        %2131 = vmatpush1.msra.mxu0 0.0
        %2132 = vmatprep.subr.mxu0 0.0
        %2133 = vmatpush1.msra.mxu0 0.0
        %2134 = vmatprep.subr.mxu0 0.0
        %2135 = vmatpush1.msra.mxu0 0.0
        %2136 = vmatprep.subr.mxu0 0.0
        %2137 = vmatpush1.msra.mxu0 0.0
        %2138 = vmatprep.subr.mxu0 0.0
        %2139 = vmatpush1.msra.mxu0 0.0
        %2140 = vmatprep.subr.mxu0 0.0
        %2141 = vmatpush1.msra.mxu0 0.0
        %2142 = vmatprep.subr.mxu0 0.0
        %2143 = vmatpush1.msra.mxu0 0.0
        %2144 = vmatprep.subr.mxu0 0.0
        %2145 = vmatpush1.msra.mxu0 0.0
        %2146 = vmatprep.subr.mxu0 0.0
        %2147 = vmatpush1.msra.mxu0 0.0
        %2148 = vmatprep.subr.mxu0 0.0
        %2149 = vmatpush1.msra.mxu0 0.0
        %2150 = vmatprep.subr.mxu0 0.0
        %2151 = vmatpush1.msra.mxu0 0.0
        %2152 = vmatprep.subr.mxu0 0.0
        %2153 = vmatpush1.msra.mxu0 0.0
        %2154 = vmatprep.subr.mxu0 0.0
        %2155 = vmatpush1.msra.mxu0 0.0
        %2156 = vmatprep.subr.mxu0 0.0
        %2157 = vmatpush1.msra.mxu0 0.0
        %2158 = vmatprep.mubr.f32.mxu0 0.0
        %2159 = vmatmul.mubr.f32.gmra.mrb[0].mxu0 %v2089
        %v2160 = vpop.f32.mrb[0].mxu0
        %v2161 = vadd.f32 0.0, %v2160
        %v2162 = vpop.f32.mrb[0].mxu0
        %2163 = vmatprep.mubr.f32.mxu0 0.0
        %2164 = vmatmul.mubr.f32.gmra.mrb[0].mxu0 %v2092
        %v2165 = vpop.f32.mrb[0].mxu0
        %v2166 = vadd.f32 0.0, %v2165
        %v2167 = vpop.f32.mrb[0].mxu0
        %2168 = vdwg.mxu0
        %v2169 = vadd.f32 %v2081, %v2161
        %v2170 = vadd.f32 %v2081, %v2166
        %v2171 = vrot.slane %v2072, 4
        %v2172 = vrot.slane %v2073, 4
        %v2173 = vsel %vm1438, %v2171, %v2172
        %v2174 = vsel %vm1438, %v2172, %v2171
        %v2175 = vsel %vm1441, %v2174, 0.0
        %v2176 = vsel %vm1442, %v2173, 0.0
        %s2177 = scalar_lea.vmem [#allocation20], 16
        %v2178 = vld [vmem:[%s2177] sm:$0xff]
        %v2179 = vld [vmem:[%s2177 + $0x8] sm:$0xff]
        %v2181 = vsel %vm1723, %v2175, 0
        %v2184 = vsel %vm1723, %v2176, 0
        %2186 = vmatprep.subr.mxu0 0.0
        %2187 = vmatpush1.msra.mxu0 %v2178
        %2188 = vmatprep.subr.mxu0 0.0
        %2189 = vmatpush1.msra.mxu0 %v2179
        %2190 = vmatprep.subr.mxu0 0.0
        %2191 = vmatpush1.msra.mxu0 0.0
        %2192 = vmatprep.subr.mxu0 0.0
        %2193 = vmatpush1.msra.mxu0 0.0
        %2194 = vmatprep.subr.mxu0 0.0
        %2195 = vmatpush1.msra.mxu0 0.0
        %2196 = vmatprep.subr.mxu0 0.0
        %2197 = vmatpush1.msra.mxu0 0.0
        %2198 = vmatprep.subr.mxu0 0.0
        %2199 = vmatpush1.msra.mxu0 0.0
        %2200 = vmatprep.subr.mxu0 0.0
        %2201 = vmatpush1.msra.mxu0 0.0
        %2202 = vmatprep.subr.mxu0 0.0
        %2203 = vmatpush1.msra.mxu0 0.0
        %2204 = vmatprep.subr.mxu0 0.0
        %2205 = vmatpush1.msra.mxu0 0.0
        %2206 = vmatprep.subr.mxu0 0.0
        %2207 = vmatpush1.msra.mxu0 0.0
        %2208 = vmatprep.subr.mxu0 0.0
        %2209 = vmatpush1.msra.mxu0 0.0
        %2210 = vmatprep.subr.mxu0 0.0
        %2211 = vmatpush1.msra.mxu0 0.0
        %2212 = vmatprep.subr.mxu0 0.0
        %2213 = vmatpush1.msra.mxu0 0.0
        %2214 = vmatprep.subr.mxu0 0.0
        %2215 = vmatpush1.msra.mxu0 0.0
        %2216 = vmatprep.subr.mxu0 0.0
        %2217 = vmatpush1.msra.mxu0 0.0
        %2218 = vmatprep.subr.mxu0 0.0
        %2219 = vmatpush1.msra.mxu0 0.0
        %2220 = vmatprep.subr.mxu0 0.0
        %2221 = vmatpush1.msra.mxu0 0.0
        %2222 = vmatprep.subr.mxu0 0.0
        %2223 = vmatpush1.msra.mxu0 0.0
        %2224 = vmatprep.subr.mxu0 0.0
        %2225 = vmatpush1.msra.mxu0 0.0
        %2226 = vmatprep.subr.mxu0 0.0
        %2227 = vmatpush1.msra.mxu0 0.0
        %2228 = vmatprep.subr.mxu0 0.0
        %2229 = vmatpush1.msra.mxu0 0.0
        %2230 = vmatprep.subr.mxu0 0.0
        %2231 = vmatpush1.msra.mxu0 0.0
        %2232 = vmatprep.subr.mxu0 0.0
        %2233 = vmatpush1.msra.mxu0 0.0
        %2234 = vmatprep.subr.mxu0 0.0
        %2235 = vmatpush1.msra.mxu0 0.0
        %2236 = vmatprep.subr.mxu0 0.0
        %2237 = vmatpush1.msra.mxu0 0.0
        %2238 = vmatprep.subr.mxu0 0.0
        %2239 = vmatpush1.msra.mxu0 0.0
        %2240 = vmatprep.subr.mxu0 0.0
        %2241 = vmatpush1.msra.mxu0 0.0
        %2242 = vmatprep.subr.mxu0 0.0
        %2243 = vmatpush1.msra.mxu0 0.0
        %2244 = vmatprep.subr.mxu0 0.0
        %2245 = vmatpush1.msra.mxu0 0.0
        %2246 = vmatprep.subr.mxu0 0.0
        %2247 = vmatpush1.msra.mxu0 0.0
        %2248 = vmatprep.subr.mxu0 0.0
        %2249 = vmatpush1.msra.mxu0 0.0
        %2250 = vmatprep.mubr.f32.mxu0 0.0
        %2251 = vmatmul.mubr.f32.gmra.mrb[0].mxu0 %v2181
        %v2252 = vpop.f32.mrb[0].mxu0
        %v2253 = vadd.f32 0.0, %v2252
        %v2254 = vpop.f32.mrb[0].mxu0
        %2255 = vmatprep.mubr.f32.mxu0 0.0
        %2256 = vmatmul.mubr.f32.gmra.mrb[0].mxu0 %v2184
        %v2257 = vpop.f32.mrb[0].mxu0
        %v2258 = vadd.f32 0.0, %v2257
        %v2259 = vpop.f32.mrb[0].mxu0
        %2260 = vdwg.mxu0
        %v2261 = vadd.f32 %v2169, %v2253
        %v2262 = vadd.f32 %v2170, %v2258
        %s2263 = scalar_lea.vmem [#allocation20], 32
        %v2264 = vld [vmem:[%s2263] sm:$0xff]
        %v2265 = vld [vmem:[%s2263 + $0x8] sm:$0xff]
        %v2267 = vsel %vm1723, %v2072, 0
        %v2270 = vsel %vm1723, %v2073, 0
        %2272 = vmatprep.subr.mxu0 0.0
        %2273 = vmatpush1.msra.mxu0 %v2264
        %2274 = vmatprep.subr.mxu0 0.0
        %2275 = vmatpush1.msra.mxu0 %v2265
        %2276 = vmatprep.subr.mxu0 0.0
        %2277 = vmatpush1.msra.mxu0 0.0
        %2278 = vmatprep.subr.mxu0 0.0
        %2279 = vmatpush1.msra.mxu0 0.0
        %2280 = vmatprep.subr.mxu0 0.0
        %2281 = vmatpush1.msra.mxu0 0.0
        %2282 = vmatprep.subr.mxu0 0.0
        %2283 = vmatpush1.msra.mxu0 0.0
        %2284 = vmatprep.subr.mxu0 0.0
        %2285 = vmatpush1.msra.mxu0 0.0
        %2286 = vmatprep.subr.mxu0 0.0
        %2287 = vmatpush1.msra.mxu0 0.0
        %2288 = vmatprep.subr.mxu0 0.0
        %2289 = vmatpush1.msra.mxu0 0.0
        %2290 = vmatprep.subr.mxu0 0.0
        %2291 = vmatpush1.msra.mxu0 0.0
        %2292 = vmatprep.subr.mxu0 0.0
        %2293 = vmatpush1.msra.mxu0 0.0
        %2294 = vmatprep.subr.mxu0 0.0
        %2295 = vmatpush1.msra.mxu0 0.0
        %2296 = vmatprep.subr.mxu0 0.0
        %2297 = vmatpush1.msra.mxu0 0.0
        %2298 = vmatprep.subr.mxu0 0.0
        %2299 = vmatpush1.msra.mxu0 0.0
        %2300 = vmatprep.subr.mxu0 0.0
        %2301 = vmatpush1.msra.mxu0 0.0
        %2302 = vmatprep.subr.mxu0 0.0
        %2303 = vmatpush1.msra.mxu0 0.0
        %2304 = vmatprep.subr.mxu0 0.0
        %2305 = vmatpush1.msra.mxu0 0.0
        %2306 = vmatprep.subr.mxu0 0.0
        %2307 = vmatpush1.msra.mxu0 0.0
        %2308 = vmatprep.subr.mxu0 0.0
        %2309 = vmatpush1.msra.mxu0 0.0
        %2310 = vmatprep.subr.mxu0 0.0
        %2311 = vmatpush1.msra.mxu0 0.0
        %2312 = vmatprep.subr.mxu0 0.0
        %2313 = vmatpush1.msra.mxu0 0.0
        %2314 = vmatprep.subr.mxu0 0.0
        %2315 = vmatpush1.msra.mxu0 0.0
        %2316 = vmatprep.subr.mxu0 0.0
        %2317 = vmatpush1.msra.mxu0 0.0
        %2318 = vmatprep.subr.mxu0 0.0
        %2319 = vmatpush1.msra.mxu0 0.0
        %2320 = vmatprep.subr.mxu0 0.0
        %2321 = vmatpush1.msra.mxu0 0.0
        %2322 = vmatprep.subr.mxu0 0.0
        %2323 = vmatpush1.msra.mxu0 0.0
        %2324 = vmatprep.subr.mxu0 0.0
        %2325 = vmatpush1.msra.mxu0 0.0
        %2326 = vmatprep.subr.mxu0 0.0
        %2327 = vmatpush1.msra.mxu0 0.0
        %2328 = vmatprep.subr.mxu0 0.0
        %2329 = vmatpush1.msra.mxu0 0.0
        %2330 = vmatprep.subr.mxu0 0.0
        %2331 = vmatpush1.msra.mxu0 0.0
        %2332 = vmatprep.subr.mxu0 0.0
        %2333 = vmatpush1.msra.mxu0 0.0
        %2334 = vmatprep.subr.mxu0 0.0
        %2335 = vmatpush1.msra.mxu0 0.0
        %2336 = vmatprep.mubr.f32.mxu0 0.0
        %2337 = vmatmul.mubr.f32.gmra.mrb[0].mxu0 %v2267
        %v2338 = vpop.f32.mrb[0].mxu0
        %v2339 = vadd.f32 0.0, %v2338
        %v2340 = vpop.f32.mrb[0].mxu0
        %2341 = vmatprep.mubr.f32.mxu0 0.0
        %2342 = vmatmul.mubr.f32.gmra.mrb[0].mxu0 %v2270
        %v2343 = vpop.f32.mrb[0].mxu0
        %v2344 = vadd.f32 0.0, %v2343
        %v2345 = vpop.f32.mrb[0].mxu0
        %2346 = vdwg.mxu0
        %v2347 = vadd.f32 %v2261, %v2339
        %v2348 = vadd.f32 %v2262, %v2344
        %v2349 = vmax.f32 %v2347, 0.0
        %v2350 = vmax.f32 %v2348, 0.0
        %v2351 = vld [vmem:[#allocation25] sm:$0x1]
        %v2353 = vlaneseq
        %v2354 = vshrl.u32 %v2353, 7
        %v2355 = vsub.s32 0, %v2354
        %v2356 = vrot.slane %v2351, %v2355
        %v2358 = vadd.f32 %v2356, 0.0
        %v2359 = vsel %vm2082, %v2350, 0.0
        %v2360 = vsel %vm2083, %v2349, 0.0
        %v2361 = vld [vmem:[#allocation23] sm:$0xff]
        %v2363 = vsel %vm883, %v2359, 0
        %v2366 = vsel %vm883, %v2360, 0
        %2368 = vmatprep.subr.mxu0 0.0
        %2369 = vmatpush1.msra.mxu0 %v2361
        %2370 = vmatprep.subr.mxu0 0.0
        %2371 = vmatpush1.msra.mxu0 0.0
        %2372 = vmatprep.subr.mxu0 0.0
        %2373 = vmatpush1.msra.mxu0 0.0
        %2374 = vmatprep.subr.mxu0 0.0
        %2375 = vmatpush1.msra.mxu0 0.0
        %2376 = vmatprep.subr.mxu0 0.0
        %2377 = vmatpush1.msra.mxu0 0.0
        %2378 = vmatprep.subr.mxu0 0.0
        %2379 = vmatpush1.msra.mxu0 0.0
        %2380 = vmatprep.subr.mxu0 0.0
        %2381 = vmatpush1.msra.mxu0 0.0
        %2382 = vmatprep.subr.mxu0 0.0
        %2383 = vmatpush1.msra.mxu0 0.0
        %2384 = vmatprep.subr.mxu0 0.0
        %2385 = vmatpush1.msra.mxu0 0.0
        %2386 = vmatprep.subr.mxu0 0.0
        %2387 = vmatpush1.msra.mxu0 0.0
        %2388 = vmatprep.subr.mxu0 0.0
        %2389 = vmatpush1.msra.mxu0 0.0
        %2390 = vmatprep.subr.mxu0 0.0
        %2391 = vmatpush1.msra.mxu0 0.0
        %2392 = vmatprep.subr.mxu0 0.0
        %2393 = vmatpush1.msra.mxu0 0.0
        %2394 = vmatprep.subr.mxu0 0.0
        %2395 = vmatpush1.msra.mxu0 0.0
        %2396 = vmatprep.subr.mxu0 0.0
        %2397 = vmatpush1.msra.mxu0 0.0
        %2398 = vmatprep.subr.mxu0 0.0
        %2399 = vmatpush1.msra.mxu0 0.0
        %2400 = vmatprep.subr.mxu0 0.0
        %2401 = vmatpush1.msra.mxu0 0.0
        %2402 = vmatprep.subr.mxu0 0.0
        %2403 = vmatpush1.msra.mxu0 0.0
        %2404 = vmatprep.subr.mxu0 0.0
        %2405 = vmatpush1.msra.mxu0 0.0
        %2406 = vmatprep.subr.mxu0 0.0
        %2407 = vmatpush1.msra.mxu0 0.0
        %2408 = vmatprep.subr.mxu0 0.0
        %2409 = vmatpush1.msra.mxu0 0.0
        %2410 = vmatprep.subr.mxu0 0.0
        %2411 = vmatpush1.msra.mxu0 0.0
        %2412 = vmatprep.subr.mxu0 0.0
        %2413 = vmatpush1.msra.mxu0 0.0
        %2414 = vmatprep.subr.mxu0 0.0
        %2415 = vmatpush1.msra.mxu0 0.0
        %2416 = vmatprep.subr.mxu0 0.0
        %2417 = vmatpush1.msra.mxu0 0.0
        %2418 = vmatprep.subr.mxu0 0.0
        %2419 = vmatpush1.msra.mxu0 0.0
        %2420 = vmatprep.subr.mxu0 0.0
        %2421 = vmatpush1.msra.mxu0 0.0
        %2422 = vmatprep.subr.mxu0 0.0
        %2423 = vmatpush1.msra.mxu0 0.0
        %2424 = vmatprep.subr.mxu0 0.0
        %2425 = vmatpush1.msra.mxu0 0.0
        %2426 = vmatprep.subr.mxu0 0.0
        %2427 = vmatpush1.msra.mxu0 0.0
        %2428 = vmatprep.subr.mxu0 0.0
        %2429 = vmatpush1.msra.mxu0 0.0
        %2430 = vmatprep.subr.mxu0 0.0
        %2431 = vmatpush1.msra.mxu0 0.0
        %2432 = vmatprep.mubr.f32.mxu0 0.0
        %2433 = vmatmul.mubr.f32.gmra.mrb[0].mxu0 %v2363
        %v2434 = vpop.f32.mrb[0].mxu0
        %v2435 = vadd.f32 0.0, %v2434
        %v2436 = vpop.f32.mrb[0].mxu0
        %2437 = vmatprep.mubr.f32.mxu0 0.0
        %2438 = vmatmul.mubr.f32.gmra.mrb[0].mxu0 %v2366
        %v2439 = vpop.f32.mrb[0].mxu0
        %v2440 = vadd.f32 0.0, %v2439
        %v2441 = vpop.f32.mrb[0].mxu0
        %2442 = vdwg.mxu0
        %v2443 = vadd.f32 %v2358, %v2435
        %v2444 = vadd.f32 %v2358, %v2440
        %v2445 = vrot.slane %v2349, 4
        %v2446 = vrot.slane %v2350, 4
        %v2447 = vsel %vm1438, %v2445, %v2446
        %v2448 = vsel %vm1438, %v2446, %v2445
        %v2449 = vsel %vm1441, %v2448, 0.0
        %v2450 = vsel %vm1442, %v2447, 0.0
        %s2451 = scalar_lea.vmem [#allocation23], 8
        %v2452 = vld [vmem:[%s2451] sm:$0xff]
        %v2454 = vsel %vm883, %v2449, 0
        %v2457 = vsel %vm883, %v2450, 0
        %2459 = vmatprep.subr.mxu0 0.0
        %2460 = vmatpush1.msra.mxu0 %v2452
        %2461 = vmatprep.subr.mxu0 0.0
        %2462 = vmatpush1.msra.mxu0 0.0
        %2463 = vmatprep.subr.mxu0 0.0
        %2464 = vmatpush1.msra.mxu0 0.0
        %2465 = vmatprep.subr.mxu0 0.0
        %2466 = vmatpush1.msra.mxu0 0.0
        %2467 = vmatprep.subr.mxu0 0.0
        %2468 = vmatpush1.msra.mxu0 0.0
        %2469 = vmatprep.subr.mxu0 0.0
        %2470 = vmatpush1.msra.mxu0 0.0
        %2471 = vmatprep.subr.mxu0 0.0
        %2472 = vmatpush1.msra.mxu0 0.0
        %2473 = vmatprep.subr.mxu0 0.0
        %2474 = vmatpush1.msra.mxu0 0.0
        %2475 = vmatprep.subr.mxu0 0.0
        %2476 = vmatpush1.msra.mxu0 0.0
        %2477 = vmatprep.subr.mxu0 0.0
        %2478 = vmatpush1.msra.mxu0 0.0
        %2479 = vmatprep.subr.mxu0 0.0
        %2480 = vmatpush1.msra.mxu0 0.0
        %2481 = vmatprep.subr.mxu0 0.0
        %2482 = vmatpush1.msra.mxu0 0.0
        %2483 = vmatprep.subr.mxu0 0.0
        %2484 = vmatpush1.msra.mxu0 0.0
        %2485 = vmatprep.subr.mxu0 0.0
        %2486 = vmatpush1.msra.mxu0 0.0
        %2487 = vmatprep.subr.mxu0 0.0
        %2488 = vmatpush1.msra.mxu0 0.0
        %2489 = vmatprep.subr.mxu0 0.0
        %2490 = vmatpush1.msra.mxu0 0.0
        %2491 = vmatprep.subr.mxu0 0.0
        %2492 = vmatpush1.msra.mxu0 0.0
        %2493 = vmatprep.subr.mxu0 0.0
        %2494 = vmatpush1.msra.mxu0 0.0
        %2495 = vmatprep.subr.mxu0 0.0
        %2496 = vmatpush1.msra.mxu0 0.0
        %2497 = vmatprep.subr.mxu0 0.0
        %2498 = vmatpush1.msra.mxu0 0.0
        %2499 = vmatprep.subr.mxu0 0.0
        %2500 = vmatpush1.msra.mxu0 0.0
        %2501 = vmatprep.subr.mxu0 0.0
        %2502 = vmatpush1.msra.mxu0 0.0
        %2503 = vmatprep.subr.mxu0 0.0
        %2504 = vmatpush1.msra.mxu0 0.0
        %2505 = vmatprep.subr.mxu0 0.0
        %2506 = vmatpush1.msra.mxu0 0.0
        %2507 = vmatprep.subr.mxu0 0.0
        %2508 = vmatpush1.msra.mxu0 0.0
        %2509 = vmatprep.subr.mxu0 0.0
        %2510 = vmatpush1.msra.mxu0 0.0
        %2511 = vmatprep.subr.mxu0 0.0
        %2512 = vmatpush1.msra.mxu0 0.0
        %2513 = vmatprep.subr.mxu0 0.0
        %2514 = vmatpush1.msra.mxu0 0.0
        %2515 = vmatprep.subr.mxu0 0.0
        %2516 = vmatpush1.msra.mxu0 0.0
        %2517 = vmatprep.subr.mxu0 0.0
        %2518 = vmatpush1.msra.mxu0 0.0
        %2519 = vmatprep.subr.mxu0 0.0
        %2520 = vmatpush1.msra.mxu0 0.0
        %2521 = vmatprep.subr.mxu0 0.0
        %2522 = vmatpush1.msra.mxu0 0.0
        %2523 = vmatprep.mubr.f32.mxu0 0.0
        %2524 = vmatmul.mubr.f32.gmra.mrb[0].mxu0 %v2454
        %v2525 = vpop.f32.mrb[0].mxu0
        %v2526 = vadd.f32 0.0, %v2525
        %v2527 = vpop.f32.mrb[0].mxu0
        %2528 = vmatprep.mubr.f32.mxu0 0.0
        %2529 = vmatmul.mubr.f32.gmra.mrb[0].mxu0 %v2457
        %v2530 = vpop.f32.mrb[0].mxu0
        %v2531 = vadd.f32 0.0, %v2530
        %v2532 = vpop.f32.mrb[0].mxu0
        %2533 = vdwg.mxu0
        %v2534 = vadd.f32 %v2443, %v2526
        %v2535 = vadd.f32 %v2444, %v2531
        %s2536 = scalar_lea.vmem [#allocation23], 16
        %v2537 = vld [vmem:[%s2536] sm:$0xff]
        %v2539 = vsel %vm883, %v2349, 0
        %v2542 = vsel %vm883, %v2350, 0
        %2544 = vmatprep.subr.mxu0 0.0
        %2545 = vmatpush1.msra.mxu0 %v2537
        %2546 = vmatprep.subr.mxu0 0.0
        %2547 = vmatpush1.msra.mxu0 0.0
        %2548 = vmatprep.subr.mxu0 0.0
        %2549 = vmatpush1.msra.mxu0 0.0
        %2550 = vmatprep.subr.mxu0 0.0
        %2551 = vmatpush1.msra.mxu0 0.0
        %2552 = vmatprep.subr.mxu0 0.0
        %2553 = vmatpush1.msra.mxu0 0.0
        %2554 = vmatprep.subr.mxu0 0.0
        %2555 = vmatpush1.msra.mxu0 0.0
        %2556 = vmatprep.subr.mxu0 0.0
        %2557 = vmatpush1.msra.mxu0 0.0
        %2558 = vmatprep.subr.mxu0 0.0
        %2559 = vmatpush1.msra.mxu0 0.0
        %2560 = vmatprep.subr.mxu0 0.0
        %2561 = vmatpush1.msra.mxu0 0.0
        %2562 = vmatprep.subr.mxu0 0.0
        %2563 = vmatpush1.msra.mxu0 0.0
        %2564 = vmatprep.subr.mxu0 0.0
        %2565 = vmatpush1.msra.mxu0 0.0
        %2566 = vmatprep.subr.mxu0 0.0
        %2567 = vmatpush1.msra.mxu0 0.0
        %2568 = vmatprep.subr.mxu0 0.0
        %2569 = vmatpush1.msra.mxu0 0.0
        %2570 = vmatprep.subr.mxu0 0.0
        %2571 = vmatpush1.msra.mxu0 0.0
        %2572 = vmatprep.subr.mxu0 0.0
        %2573 = vmatpush1.msra.mxu0 0.0
        %2574 = vmatprep.subr.mxu0 0.0
        %2575 = vmatpush1.msra.mxu0 0.0
        %2576 = vmatprep.subr.mxu0 0.0
        %2577 = vmatpush1.msra.mxu0 0.0
        %2578 = vmatprep.subr.mxu0 0.0
        %2579 = vmatpush1.msra.mxu0 0.0
        %2580 = vmatprep.subr.mxu0 0.0
        %2581 = vmatpush1.msra.mxu0 0.0
        %2582 = vmatprep.subr.mxu0 0.0
        %2583 = vmatpush1.msra.mxu0 0.0
        %2584 = vmatprep.subr.mxu0 0.0
        %2585 = vmatpush1.msra.mxu0 0.0
        %2586 = vmatprep.subr.mxu0 0.0
        %2587 = vmatpush1.msra.mxu0 0.0
        %2588 = vmatprep.subr.mxu0 0.0
        %2589 = vmatpush1.msra.mxu0 0.0
        %2590 = vmatprep.subr.mxu0 0.0
        %2591 = vmatpush1.msra.mxu0 0.0
        %2592 = vmatprep.subr.mxu0 0.0
        %2593 = vmatpush1.msra.mxu0 0.0
        %2594 = vmatprep.subr.mxu0 0.0
        %2595 = vmatpush1.msra.mxu0 0.0
        %2596 = vmatprep.subr.mxu0 0.0
        %2597 = vmatpush1.msra.mxu0 0.0
        %2598 = vmatprep.subr.mxu0 0.0
        %2599 = vmatpush1.msra.mxu0 0.0
        %2600 = vmatprep.subr.mxu0 0.0
        %2601 = vmatpush1.msra.mxu0 0.0
        %2602 = vmatprep.subr.mxu0 0.0
        %2603 = vmatpush1.msra.mxu0 0.0
        %2604 = vmatprep.subr.mxu0 0.0
        %2605 = vmatpush1.msra.mxu0 0.0
        %2606 = vmatprep.subr.mxu0 0.0
        %2607 = vmatpush1.msra.mxu0 0.0
        %2608 = vmatprep.mubr.f32.mxu0 0.0
        %2609 = vmatmul.mubr.f32.gmra.mrb[0].mxu0 %v2539
        %v2610 = vpop.f32.mrb[0].mxu0
        %v2611 = vadd.f32 0.0, %v2610
        %v2612 = vpop.f32.mrb[0].mxu0
        %2613 = vmatprep.mubr.f32.mxu0 0.0
        %2614 = vmatmul.mubr.f32.gmra.mrb[0].mxu0 %v2542
        %v2615 = vpop.f32.mrb[0].mxu0
        %v2616 = vadd.f32 0.0, %v2615
        %v2617 = vpop.f32.mrb[0].mxu0
        %2618 = vdwg.mxu0
        %v2619 = vadd.f32 %v2534, %v2611
        %v2620 = vadd.f32 %v2535, %v2616
        %v2621 = vmax.f32 %v2619, 0.0
        %v2622 = vmax.f32 %v2620, 0.0
        %v2623 = vld [vmem:[#allocation26] sm:$0xff]
        %v2624 = vld [vmem:[#allocation26 + $0x8] sm:$0xff]
        %v2625 = vld [vmem:[#allocation28] sm:$0x1]
        %v2627 = vlaneseq
        %v2628 = vshrl.u32 %v2627, 7
        %v2629 = vsub.s32 0, %v2628
        %v2630 = vrot.slane %v2625, %v2629
        %2632 = vmatprep.subr.mxu0 0.0
        %2633 = vmatpush1.msra.mxu0 %v2623
        %2634 = vmatprep.subr.mxu0 0.0
        %2635 = vmatpush1.msra.mxu0 %v2624
        %2636 = vmatprep.subr.mxu0 0.0
        %2637 = vmatpush1.msra.mxu0 0.0
        %2638 = vmatprep.subr.mxu0 0.0
        %2639 = vmatpush1.msra.mxu0 0.0
        %2640 = vmatprep.subr.mxu0 0.0
        %2641 = vmatpush1.msra.mxu0 0.0
        %2642 = vmatprep.subr.mxu0 0.0
        %2643 = vmatpush1.msra.mxu0 0.0
        %2644 = vmatprep.subr.mxu0 0.0
        %2645 = vmatpush1.msra.mxu0 0.0
        %2646 = vmatprep.subr.mxu0 0.0
        %2647 = vmatpush1.msra.mxu0 0.0
        %2648 = vmatprep.subr.mxu0 0.0
        %2649 = vmatpush1.msra.mxu0 0.0
        %2650 = vmatprep.subr.mxu0 0.0
        %2651 = vmatpush1.msra.mxu0 0.0
        %2652 = vmatprep.subr.mxu0 0.0
        %2653 = vmatpush1.msra.mxu0 0.0
        %2654 = vmatprep.subr.mxu0 0.0
        %2655 = vmatpush1.msra.mxu0 0.0
        %2656 = vmatprep.subr.mxu0 0.0
        %2657 = vmatpush1.msra.mxu0 0.0
        %2658 = vmatprep.subr.mxu0 0.0
        %2659 = vmatpush1.msra.mxu0 0.0
        %2660 = vmatprep.subr.mxu0 0.0
        %2661 = vmatpush1.msra.mxu0 0.0
        %2662 = vmatprep.subr.mxu0 0.0
        %2663 = vmatpush1.msra.mxu0 0.0
        %2664 = vmatprep.subr.mxu0 0.0
        %2665 = vmatpush1.msra.mxu0 0.0
        %2666 = vmatprep.subr.mxu0 0.0
        %2667 = vmatpush1.msra.mxu0 0.0
        %2668 = vmatprep.subr.mxu0 0.0
        %2669 = vmatpush1.msra.mxu0 0.0
        %2670 = vmatprep.subr.mxu0 0.0
        %2671 = vmatpush1.msra.mxu0 0.0
        %2672 = vmatprep.subr.mxu0 0.0
        %2673 = vmatpush1.msra.mxu0 0.0
        %2674 = vmatprep.subr.mxu0 0.0
        %2675 = vmatpush1.msra.mxu0 0.0
        %2676 = vmatprep.subr.mxu0 0.0
        %2677 = vmatpush1.msra.mxu0 0.0
        %2678 = vmatprep.subr.mxu0 0.0
        %2679 = vmatpush1.msra.mxu0 0.0
        %2680 = vmatprep.subr.mxu0 0.0
        %2681 = vmatpush1.msra.mxu0 0.0
        %2682 = vmatprep.subr.mxu0 0.0
        %2683 = vmatpush1.msra.mxu0 0.0
        %2684 = vmatprep.subr.mxu0 0.0
        %2685 = vmatpush1.msra.mxu0 0.0
        %2686 = vmatprep.subr.mxu0 0.0
        %2687 = vmatpush1.msra.mxu0 0.0
        %2688 = vmatprep.subr.mxu0 0.0
        %2689 = vmatpush1.msra.mxu0 0.0
        %2690 = vmatprep.subr.mxu0 0.0
        %2691 = vmatpush1.msra.mxu0 0.0
        %2692 = vmatprep.subr.mxu0 0.0
        %2693 = vmatpush1.msra.mxu0 0.0
        %2694 = vmatprep.subr.mxu0 0.0
        %2695 = vmatpush1.msra.mxu0 0.0
        %2696 = vmatprep.mubr.f32.mxu0 0.0
        %2697 = vmatmul.mubr.f32.gmra.mrb[0].mxu0 %v2267
        %v2698 = vpop.f32.mrb[0].mxu0
        %v2699 = vadd.f32 %v2630, %v2698
        %v2700 = vpop.f32.mrb[0].mxu0
        %2701 = vmatprep.mubr.f32.mxu0 0.0
        %2702 = vmatmul.mubr.f32.gmra.mrb[0].mxu0 %v2270
        %v2703 = vpop.f32.mrb[0].mxu0
        %v2704 = vadd.f32 %v2630, %v2703
        %v2705 = vpop.f32.mrb[0].mxu0
        %2706 = vdwg.mxu0
        %v2707 = vadd.f32 %v2621, %v2699
        %v2708 = vadd.f32 %v2622, %v2704
        %v2709 = vmax.f32 %v2707, 0.0
        %v2710 = vmax.f32 %v2708, 0.0
        %v2711 = vadd.f32 %v2709, %v860
        %v2712 = vadd.f32 %v2710, %v861
        %v2713 = vsel %vm883, %v2711, 0.0
        %2714 = vadd.xlane.f32.xlu0 %v2713
        %v2715 = vpop.xlane.xlu0 %2714
        %v2716 = vsel %vm883, %v2712, 0.0
        %2717 = vadd.xlane.f32.xlu0 %v2716
        %v2718 = vpop.xlane.xlu0 %2717
        %v2719 = vrcp.pop 8.0
        %v2720 = vmul.f32 %v2715, %v2719
        %v2721 = vmul.f32 %v2718, %v2719
        %v2722 = vsub.f32 %v2711, %v2720
        %v2723 = vsub.f32 %v2712, %v2721
        %v2724 = vmul.f32 %v2722, %v2722
        %v2725 = vmul.f32 %v2723, %v2723
        %v2726 = vsel %vm883, %v2724, 0.0
        %2727 = vadd.xlane.f32.xlu0 %v2726
        %v2728 = vpop.xlane.xlu0 %2727
        %v2729 = vsel %vm883, %v2725, 0.0
        %2730 = vadd.xlane.f32.xlu0 %v2729
        %v2731 = vpop.xlane.xlu0 %2730
        %v2732 = vmul.f32 %v2728, %v2719
        %v2733 = vmul.f32 %v2731, %v2719
        %v2734 = vadd.f32 %v2732, 1e-12
        %v2735 = vadd.f32 %v2733, 1e-12
        %v2736 = vrsqrt.pop %v2734
        %v2737 = vrsqrt.pop %v2735
        %v2738 = vmul.f32 %v2722, %v2736
        %v2739 = vmul.f32 %v2723, %v2737
        %v2740 = vld [vmem:[#allocation29] sm:$0x1]
        %v2742 = vlaneseq
        %v2743 = vshrl.u32 %v2742, 7
        %v2744 = vsub.s32 0, %v2743
        %v2745 = vrot.slane %v2740, %v2744
        %v2747 = vmul.f32 %v2738, %v2745
        %v2748 = vmul.f32 %v2739, %v2745
        %v2749 = vld [vmem:[#allocation31] sm:$0x1]
        %v2751 = vlaneseq
        %v2752 = vshrl.u32 %v2751, 7
        %v2753 = vsub.s32 0, %v2752
        %v2754 = vrot.slane %v2749, %v2753
        %v2756 = vadd.f32 %v2747, %v2754
        %v2757 = vadd.f32 %v2748, %v2754
        %2758 = vst.msk [vmem:[%s859] sm:$0xff] %vm883, %v2756
        %2759 = vst.msk [vmem:[%s859 + $0x8] sm:$0xff] %vm883, %v2757
        %s2760 = sand.u32 %s457, 1
        %s2761 = scalar_lea.sflag [#allocation4], %s2760
        %s2762 = sand.u32 %s457, 1
        %s2763 = smul.addr %s2762, 16
        %s2764 = scalar_lea.vmem [#allocation32], %s2763
        // Predicated region
        $region173: #{tpu_custom_call.1} parent=95 // pred_check
          %p2765 = pneg %p467
        $region174: #{tpu_custom_call.1} parent=95 // pred_check_branch
          %2767 = sbr.rel (%p2765) target = $region176
        $region175: #{tpu_custom_call.1} parent=95 // pred_region
          %s2769 = ssub.s32 256, 256
          %2770 = vsyncadd %s2761, %s2769
          %s2771 = smul.addr %s45, 2
          %s2772 = smul.addr %s2771, 128
          %s2773 = scalar_lea.hbm %s19, %s2772
          %s2774 = sshll.u32 %s2764, 4
          %s2775 = int_to_ptr.vmem [resolvable:$true] %s2774
          %2780 = dma.vmem_to_hbm [thread:$0]  %s2775, 256, %s2773, %s2761, 128, 128, 8
        $region176: #{tpu_custom_call.1} parent=95 // pred_fallthru
          _
      $region96: #{tpu_custom_call.1} parent=5 // pred_fallthru
        _
      %p2781 = scmp.le.s32.totalorder 2, %s40
      // Predicated region
      $region177: #{tpu_custom_call.1} parent=5 // pred_check
        %p2782 = pneg %p2781
      $region178: #{tpu_custom_call.1} parent=5 // pred_check_branch
        %2784 = sbr.rel (%p2782) target = $region180
      $region179: #{tpu_custom_call.1} parent=5 // pred_region
        %s2785 = ssub.s32 %s40, 2
        // Predicated region
        $region181: #{tpu_custom_call.1} parent=179 // pred_check
          %p2786 = pneg %p473
        $region182: #{tpu_custom_call.1} parent=179 // pred_check_branch
          %2788 = sbr.rel (%p2786) target = $region184
        $region183: #{tpu_custom_call.1} parent=179 // pred_region
          %s2789 = sand.u32 %s458, 1
          %s2790 = scalar_lea.sflag [#allocation4], %s2789
          %s2791 = sand.u32 %s458, 1
          %s2792 = smul.addr %s2791, 16
          %s2793 = scalar_lea.vmem [#allocation32], %s2792
          %2794 = dma.done %s2790, 256
        $region184: #{tpu_custom_call.1} parent=179 // pred_fallthru
          _
      $region180: #{tpu_custom_call.1} parent=5 // pred_fallthru
        _
    $region6: #{tpu_custom_call.1} parent=1 // loop_footer
      %s44 = sadd.s32 1, %s40
    $region7: #{tpu_custom_call.1} parent=1 // loop_footer_branch
      %39 = sbr.rel target = $region3
    $region8: #{tpu_custom_call.1} parent=1 // loop_exit
      _
    %2795 = vsyncpa [#allocation3], 1
    %s2796 = scalar_lea.sflag [#allocation3], 1
    %2797 = vsyncpa %s2796, 1
    %2798 = vsyncpa [#allocation6], 1
    %2799 = vsyncpa [#allocation9], 1
    %2800 = vsyncpa [#allocation12], 1
    %2801 = vsyncpa [#allocation15], 1
    %2802 = vsyncpa [#allocation18], 1
    %2803 = vsyncpa [#allocation21], 1
    %2804 = vsyncpa [#allocation24], 1
    %2805 = vsyncpa [#allocation27], 1
    %2806 = vsyncpa [#allocation30], 1
    %2807 = vsyncpa [#allocation4], 1
    %s2808 = scalar_lea.sflag [#allocation4], 1
    %2809 = vsyncpa %s2808, 1

</llo_original>
